<compile_context>
chip_gen: v6e
topology: v6e:2x2x1
jax: 0.10.0
libtpu: 0.0.40
codegen_flags: <defaults>
</compile_context>

<pallas_src>
import math
from functools import partial

import jax
import jax.numpy as jnp
from jax.experimental import pallas as pl
from jax.experimental.pallas import tpu as pltpu

F32 = jnp.float32
BF16 = jnp.bfloat16
VMEM_LIMIT = 48 * 1024 * 1024   # safe under v7x's 64 MiB physical VMEM


# ----------------------------- in-kernel helpers -----------------------------

def _layernorm(x, g, b, eps):
    mu = jnp.mean(x, axis=-1, keepdims=True)
    xc = x - mu
    var = jnp.mean(xc * xc, axis=-1, keepdims=True)
    return xc * jax.lax.rsqrt(var + eps) * g + b


def _gelu(y):
    # TODO(synk): PyTorch nn.GELU default is exact erf; tanh approximation used
    # (Mosaic-safe elementwise ops only), max abs error ~1e-3.
    c = math.sqrt(2.0 / math.pi)
    return 0.5 * y * (1.0 + jnp.tanh(c * (y + 0.044715 * y * y * y)))


def _mha(hb, qkv_w, qkv_b, num_heads, scale):
    """Multi-head self-attention with ONE fused QKV matmul and true per-head
    dh contractions (scores contract dh, PV produces dh columns).  Scale is
    folded into q before the score matmul.  Per-head outputs are written into
    their own column slice via a lane concat (no f32 (T, D) accumulation)."""
    # TODO(synk): at real DOFA sizes (16 heads, T=197) wrap the head loop in
    # lax.fori_loop writing into a VMEM scratch to bound live (T, T) temporaries.
    T = hb.shape[0]
    D = qkv_w.shape[1] // 3
    dh = D // num_heads
    qkv = jnp.dot(hb, qkv_w, preferred_element_type=F32) + qkv_b     # (T, 3D) f32
    outs = []
    for h in range(num_heads):
        q_h = (qkv[:, h * dh:(h + 1) * dh] * scale).astype(BF16)               # (T, dh)
        k_h = qkv[:, D + h * dh:D + (h + 1) * dh].astype(BF16)                 # (T, dh)
        v_h = qkv[:, 2 * D + h * dh:2 * D + (h + 1) * dh].astype(BF16)         # (T, dh)
        s = jax.lax.dot_general(q_h, k_h, (((1,), (1,)), ((), ())),
                                preferred_element_type=F32)                    # (T, T)
        s = s - jnp.max(s, axis=-1, keepdims=True)
        p = jnp.exp(s)
        p = p * pl.reciprocal(jnp.sum(p, axis=-1, keepdims=True), approx=True)
        outs.append(jnp.dot(p.astype(BF16), v_h, preferred_element_type=F32))  # (T, dh)
    return jnp.concatenate(outs, axis=-1)                                       # (T, D)


def _full_specs(arrays):
    specs = []
    for a in arrays:
        n = a.ndim
        specs.append(pl.BlockSpec(a.shape, lambda *_, _n=n: (0,) * _n))
    return specs


# --------------------- fused whole-stack ViT blocks kernel ---------------------

def _vit_blocks_kernel(x_ref, ln1g, ln1b, qkvw, qkvb, projw, projb,
                       ln2g, ln2b, fc1w, fc1b, fc2w, fc2b,
                       o_ref, res_ref, *, num_heads, scale, eps):
    l = pl.program_id(1)

    @pl.when(l == 0)
    def _():
        res_ref[...] = x_ref[0]                      # load residual stream once per batch

    x = res_ref[...]                                 # (T, D) f32 resident across depth

    # --- attention (pre-norm) ---
    h = _layernorm(x, ln1g[0], ln1b[0], eps)
    attn = _mha(h.astype(BF16), qkvw[0], qkvb[0], num_heads, scale)
    x = x + jnp.dot(attn.astype(BF16), projw[0], preferred_element_type=F32) + projb[0]

    # --- MLP (pre-norm) ---
    h2 = _layernorm(x, ln2g[0], ln2b[0], eps)
    f = jnp.dot(h2.astype(BF16), fc1w[0], preferred_element_type=F32) + fc1b[0]
    f = _gelu(f)
    x = x + jnp.dot(f.astype(BF16), fc2w[0], preferred_element_type=F32) + fc2b[0]

    res_ref[...] = x

    @pl.when(l == pl.num_programs(1) - 1)
    def _():
        o_ref[0] = x.astype(o_ref.dtype)             # write back only after last block


def vit_blocks_pallas(x, bp, num_heads, eps=1e-5):
    B, T, D = x.shape
    depth = bp["qkv_w"].shape[0]
    names = ["ln1_g", "ln1_b", "qkv_w", "qkv_b", "proj_w", "proj_b",
             "ln2_g", "ln2_b", "fc1_w", "fc1_b", "fc2_w", "fc2_b"]
    ws = [bp[n] for n in names]

    def w_spec(a):                                   # stream layer-l weights per depth step
        n = a.ndim
        return pl.BlockSpec((1,) + a.shape[1:],
                            lambda b, l, _n=n: (l,) + (0,) * (_n - 1))

    return pl.pallas_call(
        partial(_vit_blocks_kernel, num_heads=num_heads,
                scale=(D // num_heads) ** -0.5, eps=eps),
        out_shape=jax.ShapeDtypeStruct((B, T, D), F32),
        grid=(B, depth),
        in_specs=[pl.BlockSpec((1, T, D), lambda b, l: (b, 0, 0))]
                 + [w_spec(a) for a in ws],
        out_specs=pl.BlockSpec((1, T, D), lambda b, l: (b, 0, 0)),
        scratch_shapes=[pltpu.VMEM((T, D), F32)],
        compiler_params=pltpu.CompilerParams(
            dimension_semantics=("parallel", "arbitrary"),
            vmem_limit_bytes=VMEM_LIMIT),
    )(x, *ws)


# ------------------- wavelength -> dynamic-weight generator -------------------

def _weightgen_prologue_kernel(waves_ref, fw1, fb1, fw2, fb2,
                               wtok, btok, ipw, ipb, opw, opb,
                               l1g, l1b, lin1w, lin1b, lin2w, lin2b, l2g, l2b,
                               fbw, fbb,
                               win_ref, b_out_ref,
                               *, num_heads, wt_num, eps, scaler):
    waves = waves_ref[...]                                          # (Cin, wvp) f32
    # FCResLayer (two ReLU linears + residual)
    y = jnp.maximum(jnp.dot(waves.astype(BF16), fw1[...],
                            preferred_element_type=F32) + fb1[...], 0.0)
    y = jnp.maximum(jnp.dot(y.astype(BF16), fw2[...],
                            preferred_element_type=F32) + fb2[...], 0.0)
    waves = waves + y
    cin = waves.shape[0]

    # TransformerWeightGenerator: [weight_tokens ; waves ; bias_token]
    x = jnp.concatenate([wtok[...], waves, btok[...]], axis=0)      # (S, d) f32
    S, d = x.shape
    dh = d // num_heads

    attn = _mha(x.astype(BF16), ipw[...], ipb[...], num_heads, dh ** -0.5)
    sa = jnp.dot(attn.astype(BF16), opw[...], preferred_element_type=F32) + opb[...]
    x = _layernorm(x + sa, l1g[...], l1b[...], eps)                 # post-norm encoder layer

    ff = jnp.dot(x.astype(BF16), lin1w[...], preferred_element_type=F32) + lin1b[...]
    ff = _gelu(ff)
    ff = jnp.dot(ff.astype(BF16), lin2w[...], preferred_element_type=F32) + lin2b[...]
    x = _layernorm(x + ff, l2g[...], l2b[...], eps)

    win_ref[...] = x[wt_num:wt_num + cin] + waves                   # (Cin, d)
    b_out_ref[...] = (jnp.dot(x[S - 1:S].astype(BF16), fbw[...],
                              preferred_element_type=F32) + fbb[...]) * scaler


def weightgen_prologue_pallas(waves, pe, cfg):
    fc, wg = pe["fclayer"], pe["wg"]
    cin = waves.shape[0]
    E, wvp = cfg["embed_dim"], cfg["wv_planes"]
    inputs = [waves,
              fc["w1_w"], fc["w1_b"], fc["w2_w"], fc["w2_b"],
              wg["weight_tokens"], wg["bias_token"],
              wg["in_proj_w"], wg["in_proj_b"], wg["out_proj_w"], wg["out_proj_b"],
              wg["ln1_g"], wg["ln1_b"],
              wg["lin1_w"], wg["lin1_b"], wg["lin2_w"], wg["lin2_b"],
              wg["ln2_g"], wg["ln2_b"],
              wg["fc_bias_w"], wg["fc_bias_b"]]
    return pl.pallas_call(
        partial(_weightgen_prologue_kernel, num_heads=cfg["wg_heads"],
                wt_num=cfg["wt_num"], eps=1e-5, scaler=0.01),
        out_shape=(jax.ShapeDtypeStruct((cin, wvp), F32),   # weight_in (unscaled)
                   jax.ShapeDtypeStruct((1, E), F32)),      # dynamic bias (scaled)
    )(*inputs)


def _dyn_weight_kernel(win_ref, fww_ref, fwb_ref, o_ref, *, scaler):
    o_ref[...] = ((jnp.dot(win_ref[...].astype(BF16), fww_ref[...],
                           preferred_element_type=F32) + fwb_ref[...]) * scaler
                  ).astype(o_ref.dtype)


def dyn_weight_pallas(weight_in, fww, fwb, scaler=0.01, tile_n=512):
    """Stream the huge fc_weight_w (wvp, ks*ks*E) in column tiles."""
    cin, wvp = weight_in.shape
    N = fww.shape[1]
    if (N % tile_n) or (tile_n % 128):
        tile_n = N                                   # small / irregular: single tile
    return pl.pallas_call(
        partial(_dyn_weight_kernel, scaler=scaler),
        out_shape=jax.ShapeDtypeStruct((cin, N), F32),
        grid=(N // tile_n,),
        in_specs=[pl.BlockSpec((cin, wvp), lambda j: (0, 0)),
                  pl.BlockSpec((wvp, tile_n), lambda j: (0, j)),
                  pl.BlockSpec((1, tile_n), lambda j: (0, j))],
        out_specs=pl.BlockSpec((cin, tile_n), lambda j: (0, j)),
        compiler_params=pltpu.CompilerParams(dimension_semantics=("parallel",),
                                             vmem_limit_bytes=VMEM_LIMIT),
    )(weight_in, fww, fwb)


# ---------------- fused patch-embed (dyn conv matmul + pos + cls) ----------------

def _patch_embed_kernel(cols_ref, w_ref, b_ref, pos_ref, cls_ref, o_ref):
    patches = jnp.dot(cols_ref[0], w_ref[...], preferred_element_type=F32) + b_ref[...]
    pos = pos_ref[0]                                               # (P+1, E)
    # Two direct stores instead of an in-kernel concatenate copy.
    o_ref[0, :1, :] = (cls_ref[0] + pos[:1, :]).astype(o_ref.dtype)
    o_ref[0, 1:, :] = (patches + pos[1:, :]).astype(o_ref.dtype)


def patch_embed_pallas(cols, w_flat, dyn_b, pos_embed, cls_token):
    # TODO(synk): fuse the im2col into this kernel via an index_map over patch
    # rows reading (Cin, ks, W) strips to avoid the HBM round trip of `cols`.
    B, P, K = cols.shape
    E = w_flat.shape[1]
    ws = [w_flat, dyn_b, pos_embed, cls_token]
    return pl.pallas_call(
        _patch_embed_kernel,
        out_shape=jax.ShapeDtypeStruct((B, P + 1, E), F32),
        grid=(B,),
        in_specs=[pl.BlockSpec((1, P, K), lambda b: (b, 0, 0))] + _full_specs(ws),
        out_specs=pl.BlockSpec((1, P + 1, E), lambda b: (b, 0, 0)),
        compiler_params=pltpu.CompilerParams(dimension_semantics=("parallel",)),
    )(cols, *ws)


# ---------------- fused tail: mean-pool (patch tokens) -> fc_norm -> head ----------------

def _tail_kernel(x_ref, g_ref, b_ref, hw_ref, hb_ref, o_ref, *, eps, inv_patches):
    x = x_ref[0]                                                   # (T, D), full sequence
    # mean over patch tokens = (sum over all rows - cls row) / P  (no HBM slice upstream)
    pooled = (jnp.sum(x, axis=0, keepdims=True) - x[:1, :]) * inv_patches   # (1, D)
    y = _layernorm(pooled, g_ref[...], b_ref[...], eps)
    o_ref[0] = (jnp.dot(y.astype(BF16), hw_ref[...], preferred_element_type=F32)
                + hb_ref[...]).astype(o_ref.dtype)


def tail_pallas(tokens, g, b, hw, hb, eps=1e-5):
    B, T, D = tokens.shape
    nc = hw.shape[1]
    ws = [g, b, hw, hb]
    out = pl.pallas_call(
        partial(_tail_kernel, eps=eps, inv_patches=1.0 / (T - 1)),
        out_shape=jax.ShapeDtypeStruct((B, 1, nc), F32),
        grid=(B,),
        in_specs=[pl.BlockSpec((1, T, D), lambda bb: (bb, 0, 0))] + _full_specs(ws),
        out_specs=pl.BlockSpec((1, 1, nc), lambda bb: (bb, 0, 0)),
        compiler_params=pltpu.CompilerParams(dimension_semantics=("parallel",)),
    )(tokens, *ws)
    return out.reshape(B, nc)


# ----------------------------- JAX glue -----------------------------

def get_1d_sincos(embed_dim, pos):
    omega = jnp.arange(embed_dim // 2, dtype=F32) / (embed_dim / 2.0)
    omega = 1.0 / (10000.0 ** omega)
    out = pos.reshape(-1)[:, None] * omega[None, :]
    return jnp.concatenate([jnp.sin(out), jnp.cos(out)], axis=1)


def ofa_vit_forward(params, x, wvs, cfg):
    B, Cin, H, W = x.shape
    ks, E = cfg["patch_size"], cfg["embed_dim"]

    # wavelength sincos embedding (tiny, plain JAX)
    waves = get_1d_sincos(cfg["wv_planes"], wvs * 1000.0)                   # (Cin, wvp)

    # dynamic weight generation: fused prologue + column-tiled fc_weight matmul
    pe = params["patch_embed"]
    weight_in, dyn_b = weightgen_prologue_pallas(waves, pe, cfg)
    dyn_w = dyn_weight_pallas(weight_in, pe["wg"]["fc_weight_w"],
                              pe["wg"]["fc_weight_b"])                      # (Cin, ks*ks*E)
    w_flat = dyn_w.reshape(Cin * ks * ks, E).astype(BF16)

    # F.conv2d(x, W, b, stride=ks, padding=1) -> vectorized im2col (space-to-depth)
    Hout = (H + 2 - ks) // ks + 1
    Wout = (W + 2 - ks) // ks + 1
    xp = jnp.pad(x, ((0, 0), (0, 0), (1, 1), (1, 1)))[:, :, :Hout * ks, :Wout * ks]
    cols = xp.reshape(B, Cin, Hout, ks, Wout, ks).transpose(0, 2, 4, 1, 3, 5)
    cols = cols.reshape(B, Hout * Wout, Cin * ks * ks).astype(BF16)

    # fused patch embed + pos-embed add + cls concat (one kernel)
    h = patch_embed_pallas(cols, w_flat, dyn_b,
                           params["pos_embed"], params["cls_token"])        # (B, P+1, E)

    # whole transformer stack as ONE kernel (grid=(B, depth), resident residual)
    h = vit_blocks_pallas(h, params["blocks"], cfg["num_heads"])

    # global_pool=True path: mean over patch tokens -> fc_norm -> head (one kernel)
    return tail_pallas(h, params["fc_norm_g"], params["fc_norm_b"],
                       params["head_w"], params["head_b"])


# ----------------------------- parameters -----------------------------

def init_params(key, cfg):
    E = cfg["embed_dim"]; ks = cfg["patch_size"]; wvp = cfg["wv_planes"]
    P = (cfg["img_size"] // ks) ** 2
    ff = cfg["wg_ff"]; wt_num = cfg["wt_num"]; nc = cfg["num_classes"]
    hidden = int(E * cfg["mlp_ratio"])
    cnt = [0]

    def nrm(shape, std=0.02):
        cnt[0] += 1
        return std * jax.random.normal(jax.random.fold_in(key, cnt[0]), shape, F32)

    zeros = lambda s: jnp.zeros(s, F32)
    ones = lambda s: jnp.ones(s, F32)

    wg = dict(
        weight_tokens=nrm((wt_num, wvp)), bias_token=nrm((1, wvp)),
        in_proj_w=nrm((wvp, 3 * wvp)), in_proj_b=zeros((3 * wvp,)),
        out_proj_w=nrm((wvp, wvp)), out_proj_b=zeros((wvp,)),
        ln1_g=ones((wvp,)), ln1_b=zeros((wvp,)),
        lin1_w=nrm((wvp, ff)), lin1_b=zeros((ff,)),
        lin2_w=nrm((ff, wvp)), lin2_b=zeros((wvp,)),
        ln2_g=ones((wvp,)), ln2_b=zeros((wvp,)),
        fc_weight_w=nrm((wvp, ks * ks * E)), fc_weight_b=zeros((ks * ks * E,)),
        fc_bias_w=nrm((wvp, E)), fc_bias_b=zeros((E,)),
    )
    fclayer = dict(w1_w=nrm((wvp, wvp)), w1_b=zeros((wvp,)),
                   w2_w=nrm((wvp, wvp)), w2_b=zeros((wvp,)))
    blocks = []
    for _ in range(cfg["depth"]):
        blocks.append(dict(
            ln1_g=ones((E,)), ln1_b=zeros((E,)),
            qkv_w=nrm((E, 3 * E)), qkv_b=zeros((3 * E,)),       # columns [q | k | v]
            proj_w=nrm((E, E)), proj_b=zeros((E,)),
            ln2_g=ones((E,)), ln2_b=zeros((E,)),
            fc1_w=nrm((E, hidden)), fc1_b=zeros((hidden,)),
            fc2_w=nrm((hidden, E)), fc2_b=zeros((E,)),
        ))
    return dict(
        patch_embed=dict(fclayer=fclayer, wg=wg),
        cls_token=nrm((1, 1, E)),
        pos_embed=nrm((1, P + 1, E)),   # frozen sincos in the original; synthetic here
        blocks=blocks,
        fc_norm_g=ones((E,)), fc_norm_b=zeros((E,)),
        head_w=nrm((E, nc)), head_b=zeros((nc,)),
    )


def prepare_params(raw, cfg):
    """One-time layout/dtype prep: bf16 matmul weights, (1,N) f32 biases,
    and all transformer-block weights stacked with a leading depth axis so the
    single stacked-blocks kernel can stream layer l's weights per grid step."""
    vec = lambda v: v.reshape(1, -1).astype(F32)

    wg = raw["patch_embed"]["wg"]
    wg_p = dict(
        weight_tokens=wg["weight_tokens"].astype(F32),
        bias_token=wg["bias_token"].astype(F32),
        in_proj_w=wg["in_proj_w"].astype(BF16), in_proj_b=vec(wg["in_proj_b"]),
        out_proj_w=wg["out_proj_w"].astype(BF16), out_proj_b=vec(wg["out_proj_b"]),
        ln1_g=vec(wg["ln1_g"]), ln1_b=vec(wg["ln1_b"]),
        lin1_w=wg["lin1_w"].astype(BF16), lin1_b=vec(wg["lin1_b"]),
        lin2_w=wg["lin2_w"].astype(BF16), lin2_b=vec(wg["lin2_b"]),
        ln2_g=vec(wg["ln2_g"]), ln2_b=vec(wg["ln2_b"]),
        fc_weight_w=wg["fc_weight_w"].astype(BF16), fc_weight_b=vec(wg["fc_weight_b"]),
        fc_bias_w=wg["fc_bias_w"].astype(BF16), fc_bias_b=vec(wg["fc_bias_b"]),
    )
    fc = raw["patch_embed"]["fclayer"]
    fc_p = dict(w1_w=fc["w1_w"].astype(BF16), w1_b=vec(fc["w1_b"]),
                w2_w=fc["w2_w"].astype(BF16), w2_b=vec(fc["w2_b"]))

    def stack(name, fn):
        return jnp.stack([fn(b[name]) for b in raw["blocks"]], axis=0)

    bf = lambda w: w.astype(BF16)
    blocks = dict(
        ln1_g=stack("ln1_g", vec), ln1_b=stack("ln1_b", vec),
        qkv_w=stack("qkv_w", bf), qkv_b=stack("qkv_b", vec),
        proj_w=stack("proj_w", bf), proj_b=stack("proj_b", vec),
        ln2_g=stack("ln2_g", vec), ln2_b=stack("ln2_b", vec),
        fc1_w=stack("fc1_w", bf), fc1_b=stack("fc1_b", vec),
        fc2_w=stack("fc2_w", bf), fc2_b=stack("fc2_b", vec),
    )
    return dict(
        patch_embed=dict(fclayer=fc_p, wg=wg_p),
        cls_token=raw["cls_token"].astype(F32),
        pos_embed=raw["pos_embed"].astype(F32),
        blocks=blocks,
        fc_norm_g=vec(raw["fc_norm_g"]), fc_norm_b=vec(raw["fc_norm_b"]),
        head_w=raw["head_w"].astype(BF16), head_b=vec(raw["head_b"]),
    )


# ----------------------------- main -----------------------------

if __name__ == "__main__":
    # Toy config (real DOFA: img 224, patch 16, E=1024, depth=24, heads=16).
    cfg = dict(
        img_size=32, patch_size=8,      # num_patches = (32//8)^2 = 16
        embed_dim=32, depth=2, num_heads=4, mlp_ratio=4.0,
        wv_planes=32, wg_heads=4, wg_ff=64, wt_num=8,
        num_classes=10,
    )
    key = jax.random.PRNGKey(0)
    kx, kp = jax.random.split(key)

    B, Cin = 2, 3
    x = jax.random.normal(kx, (B, Cin, cfg["img_size"], cfg["img_size"]), F32)
    wave_list = [0.665, 0.560, 0.490]   # RGB center wavelengths (micrometers)
    wvs = jnp.asarray(wave_list, F32)

    params = prepare_params(init_params(kp, cfg), cfg)
    fwd = jax.jit(lambda p, xi, w: ofa_vit_forward(p, xi, w, cfg))
    out = jax.block_until_ready(fwd(params, x, wvs))

    assert out.shape == (B, cfg["num_classes"]) and out.dtype == jnp.float32
    assert bool(jnp.all(jnp.isfinite(out)))
    print("KERNEL_OK")
</pallas_src>

<mosaic_0001>
module attributes {stable_mosaic.version = 11 : i64} {
  func.func @_weightgen_prologue_kernel(%arg0: memref<3x32xf32, #tpu.memory_space<vmem>>, %arg1: memref<32x32xbf16, #tpu.memory_space<vmem>>, %arg2: memref<1x32xf32, #tpu.memory_space<vmem>>, %arg3: memref<32x32xbf16, #tpu.memory_space<vmem>>, %arg4: memref<1x32xf32, #tpu.memory_space<vmem>>, %arg5: memref<8x32xf32, #tpu.memory_space<vmem>>, %arg6: memref<1x32xf32, #tpu.memory_space<vmem>>, %arg7: memref<32x96xbf16, #tpu.memory_space<vmem>>, %arg8: memref<1x96xf32, #tpu.memory_space<vmem>>, %arg9: memref<32x32xbf16, #tpu.memory_space<vmem>>, %arg10: memref<1x32xf32, #tpu.memory_space<vmem>>, %arg11: memref<1x32xf32, #tpu.memory_space<vmem>>, %arg12: memref<1x32xf32, #tpu.memory_space<vmem>>, %arg13: memref<32x64xbf16, #tpu.memory_space<vmem>>, %arg14: memref<1x64xf32, #tpu.memory_space<vmem>>, %arg15: memref<64x32xbf16, #tpu.memory_space<vmem>>, %arg16: memref<1x32xf32, #tpu.memory_space<vmem>>, %arg17: memref<1x32xf32, #tpu.memory_space<vmem>>, %arg18: memref<1x32xf32, #tpu.memory_space<vmem>>, %arg19: memref<32x32xbf16, #tpu.memory_space<vmem>>, %arg20: memref<1x32xf32, #tpu.memory_space<vmem>>, %arg21: memref<3x32xf32, #tpu.memory_space<vmem>>, %arg22: memref<1x32xf32, #tpu.memory_space<vmem>>) attributes {dimension_semantics = [], scalar_prefetch = 0 : i64, scratch_operands = 0 : i64, tpu.core_type = #tpu.core_type<tc>} {
    %c0 = arith.constant 0 : index
    %c0_0 = arith.constant 0 : index
    %0 = vector.load %arg0[%c0, %c0_0] : memref<3x32xf32, #tpu.memory_space<vmem>>, vector<3x32xf32>
    %1 = arith.truncf %0 : vector<3x32xf32> to vector<3x32xbf16>
    %c0_1 = arith.constant 0 : index
    %c0_2 = arith.constant 0 : index
    %2 = vector.load %arg1[%c0_1, %c0_2] : memref<32x32xbf16, #tpu.memory_space<vmem>>, vector<32x32xbf16>
    %cst = arith.constant dense<0.000000e+00> : vector<3x32xf32>
    %3 = tpu.matmul %1, %2, %cst {dimension_numbers = #tpu.dot_dimension_numbers<[1], [0], [0], [1], [0, 0, 1, 1], [], []>} : vector<3x32xbf16>, vector<32x32xbf16>, vector<3x32xf32> -> vector<3x32xf32>
    %c0_3 = arith.constant 0 : index
    %c0_4 = arith.constant 0 : index
    %4 = vector.load %arg2[%c0_3, %c0_4] : memref<1x32xf32, #tpu.memory_space<vmem>>, vector<1x32xf32>
    %5 = vector.broadcast %4 : vector<1x32xf32> to vector<3x32xf32>
    %6 = arith.addf %3, %5 : vector<3x32xf32>
    %cst_5 = arith.constant 0.000000e+00 : f32
    %7 = vector.broadcast %cst_5 : f32 to vector<3x32xf32>
    %8 = arith.maximumf %6, %7 : vector<3x32xf32>
    %9 = arith.truncf %8 : vector<3x32xf32> to vector<3x32xbf16>
    %c0_6 = arith.constant 0 : index
    %c0_7 = arith.constant 0 : index
    %10 = vector.load %arg3[%c0_6, %c0_7] : memref<32x32xbf16, #tpu.memory_space<vmem>>, vector<32x32xbf16>
    %cst_8 = arith.constant dense<0.000000e+00> : vector<3x32xf32>
    %11 = tpu.matmul %9, %10, %cst_8 {dimension_numbers = #tpu.dot_dimension_numbers<[1], [0], [0], [1], [0, 0, 1, 1], [], []>} : vector<3x32xbf16>, vector<32x32xbf16>, vector<3x32xf32> -> vector<3x32xf32>
    %c0_9 = arith.constant 0 : index
    %c0_10 = arith.constant 0 : index
    %12 = vector.load %arg4[%c0_9, %c0_10] : memref<1x32xf32, #tpu.memory_space<vmem>>, vector<1x32xf32>
    %13 = vector.broadcast %12 : vector<1x32xf32> to vector<3x32xf32>
    %14 = arith.addf %11, %13 : vector<3x32xf32>
    %cst_11 = arith.constant 0.000000e+00 : f32
    %15 = vector.broadcast %cst_11 : f32 to vector<3x32xf32>
    %16 = arith.maximumf %14, %15 : vector<3x32xf32>
    %17 = arith.addf %0, %16 : vector<3x32xf32>
    %c0_12 = arith.constant 0 : index
    %c0_13 = arith.constant 0 : index
    %18 = vector.load %arg5[%c0_12, %c0_13] : memref<8x32xf32, #tpu.memory_space<vmem>>, vector<8x32xf32>
    %c0_14 = arith.constant 0 : index
    %c0_15 = arith.constant 0 : index
    %19 = vector.load %arg6[%c0_14, %c0_15] : memref<1x32xf32, #tpu.memory_space<vmem>>, vector<1x32xf32>
    %20 = tpu.concatenate %18, %17, %19 in 0 : vector<8x32xf32>, vector<3x32xf32>, vector<1x32xf32> -> vector<12x32xf32>
    %21 = arith.truncf %20 : vector<12x32xf32> to vector<12x32xbf16>
    %c0_16 = arith.constant 0 : index
    %c0_17 = arith.constant 0 : index
    %22 = vector.load %arg7[%c0_16, %c0_17] : memref<32x96xbf16, #tpu.memory_space<vmem>>, vector<32x96xbf16>
    %c0_18 = arith.constant 0 : index
    %c0_19 = arith.constant 0 : index
    %23 = vector.load %arg8[%c0_18, %c0_19] : memref<1x96xf32, #tpu.memory_space<vmem>>, vector<1x96xf32>
    %cst_20 = arith.constant dense<0.000000e+00> : vector<12x96xf32>
    %24 = tpu.matmul %21, %22, %cst_20 {dimension_numbers = #tpu.dot_dimension_numbers<[1], [0], [0], [1], [0, 0, 1, 1], [], []>} : vector<12x32xbf16>, vector<32x96xbf16>, vector<12x96xf32> -> vector<12x96xf32>
    %25 = vector.broadcast %23 : vector<1x96xf32> to vector<12x96xf32>
    %26 = arith.addf %24, %25 : vector<12x96xf32>
    %27 = vector.extract_strided_slice %26 {offsets = [0, 0], sizes = [12, 8], strides = [1, 1]} : vector<12x96xf32> to vector<12x8xf32>
    %cst_21 = arith.constant 0.353553385 : f32
    %28 = vector.broadcast %cst_21 : f32 to vector<12x8xf32>
    %29 = arith.mulf %27, %28 : vector<12x8xf32>
    %30 = arith.truncf %29 : vector<12x8xf32> to vector<12x8xbf16>
    %31 = vector.extract_strided_slice %26 {offsets = [0, 32], sizes = [12, 8], strides = [1, 1]} : vector<12x96xf32> to vector<12x8xf32>
    %32 = arith.truncf %31 : vector<12x8xf32> to vector<12x8xbf16>
    %33 = vector.extract_strided_slice %26 {offsets = [0, 64], sizes = [12, 8], strides = [1, 1]} : vector<12x96xf32> to vector<12x8xf32>
    %34 = arith.truncf %33 : vector<12x8xf32> to vector<12x8xbf16>
    %cst_22 = arith.constant dense<0.000000e+00> : vector<12x12xf32>
    %35 = tpu.matmul %30, %32, %cst_22 {dimension_numbers = #tpu.dot_dimension_numbers<[1], [1], [0], [0], [0, 0, 1, 0], [], []>} : vector<12x8xbf16>, vector<12x8xbf16>, vector<12x12xf32> -> vector<12x12xf32>
    %cst_23 = arith.constant dense<0xFF800000> : vector<12xf32>
    %36 = vector.multi_reduction <maximumf>, %35, %cst_23 [1] : vector<12x12xf32> to vector<12xf32>
    %37 = vector.shape_cast %36 : vector<12xf32> to vector<12x1xf32>
    %38 = vector.broadcast %37 : vector<12x1xf32> to vector<12x12xf32>
    %39 = arith.subf %35, %38 : vector<12x12xf32>
    %40 = math.exp %39 : vector<12x12xf32>
    %cst_24 = arith.constant dense<0.000000e+00> : vector<12xf32>
    %41 = vector.multi_reduction <add>, %40, %cst_24 [1] : vector<12x12xf32> to vector<12xf32>
    %42 = vector.shape_cast %41 : vector<12xf32> to vector<12x1xf32>
    %43 = tpu.reciprocal %42 {approx = true} : vector<12x1xf32> -> vector<12x1xf32>
    %44 = vector.broadcast %43 : vector<12x1xf32> to vector<12x12xf32>
    %45 = arith.mulf %40, %44 : vector<12x12xf32>
    %46 = arith.truncf %45 : vector<12x12xf32> to vector<12x12xbf16>
    %cst_25 = arith.constant dense<0.000000e+00> : vector<12x8xf32>
    %47 = tpu.matmul %46, %34, %cst_25 {dimension_numbers = #tpu.dot_dimension_numbers<[1], [0], [0], [1], [0, 0, 1, 1], [], []>} : vector<12x12xbf16>, vector<12x8xbf16>, vector<12x8xf32> -> vector<12x8xf32>
    %48 = vector.extract_strided_slice %26 {offsets = [0, 8], sizes = [12, 8], strides = [1, 1]} : vector<12x96xf32> to vector<12x8xf32>
    %cst_26 = arith.constant 0.353553385 : f32
    %49 = vector.broadcast %cst_26 : f32 to vector<12x8xf32>
    %50 = arith.mulf %48, %49 : vector<12x8xf32>
    %51 = arith.truncf %50 : vector<12x8xf32> to vector<12x8xbf16>
    %52 = vector.extract_strided_slice %26 {offsets = [0, 40], sizes = [12, 8], strides = [1, 1]} : vector<12x96xf32> to vector<12x8xf32>
    %53 = arith.truncf %52 : vector<12x8xf32> to vector<12x8xbf16>
    %54 = vector.extract_strided_slice %26 {offsets = [0, 72], sizes = [12, 8], strides = [1, 1]} : vector<12x96xf32> to vector<12x8xf32>
    %55 = arith.truncf %54 : vector<12x8xf32> to vector<12x8xbf16>
    %cst_27 = arith.constant dense<0.000000e+00> : vector<12x12xf32>
    %56 = tpu.matmul %51, %53, %cst_27 {dimension_numbers = #tpu.dot_dimension_numbers<[1], [1], [0], [0], [0, 0, 1, 0], [], []>} : vector<12x8xbf16>, vector<12x8xbf16>, vector<12x12xf32> -> vector<12x12xf32>
    %cst_28 = arith.constant dense<0xFF800000> : vector<12xf32>
    %57 = vector.multi_reduction <maximumf>, %56, %cst_28 [1] : vector<12x12xf32> to vector<12xf32>
    %58 = vector.shape_cast %57 : vector<12xf32> to vector<12x1xf32>
    %59 = vector.broadcast %58 : vector<12x1xf32> to vector<12x12xf32>
    %60 = arith.subf %56, %59 : vector<12x12xf32>
    %61 = math.exp %60 : vector<12x12xf32>
    %cst_29 = arith.constant dense<0.000000e+00> : vector<12xf32>
    %62 = vector.multi_reduction <add>, %61, %cst_29 [1] : vector<12x12xf32> to vector<12xf32>
    %63 = vector.shape_cast %62 : vector<12xf32> to vector<12x1xf32>
    %64 = tpu.reciprocal %63 {approx = true} : vector<12x1xf32> -> vector<12x1xf32>
    %65 = vector.broadcast %64 : vector<12x1xf32> to vector<12x12xf32>
    %66 = arith.mulf %61, %65 : vector<12x12xf32>
    %67 = arith.truncf %66 : vector<12x12xf32> to vector<12x12xbf16>
    %cst_30 = arith.constant dense<0.000000e+00> : vector<12x8xf32>
    %68 = tpu.matmul %67, %55, %cst_30 {dimension_numbers = #tpu.dot_dimension_numbers<[1], [0], [0], [1], [0, 0, 1, 1], [], []>} : vector<12x12xbf16>, vector<12x8xbf16>, vector<12x8xf32> -> vector<12x8xf32>
    %69 = vector.extract_strided_slice %26 {offsets = [0, 16], sizes = [12, 8], strides = [1, 1]} : vector<12x96xf32> to vector<12x8xf32>
    %cst_31 = arith.constant 0.353553385 : f32
    %70 = vector.broadcast %cst_31 : f32 to vector<12x8xf32>
    %71 = arith.mulf %69, %70 : vector<12x8xf32>
    %72 = arith.truncf %71 : vector<12x8xf32> to vector<12x8xbf16>
    %73 = vector.extract_strided_slice %26 {offsets = [0, 48], sizes = [12, 8], strides = [1, 1]} : vector<12x96xf32> to vector<12x8xf32>
    %74 = arith.truncf %73 : vector<12x8xf32> to vector<12x8xbf16>
    %75 = vector.extract_strided_slice %26 {offsets = [0, 80], sizes = [12, 8], strides = [1, 1]} : vector<12x96xf32> to vector<12x8xf32>
    %76 = arith.truncf %75 : vector<12x8xf32> to vector<12x8xbf16>
    %cst_32 = arith.constant dense<0.000000e+00> : vector<12x12xf32>
    %77 = tpu.matmul %72, %74, %cst_32 {dimension_numbers = #tpu.dot_dimension_numbers<[1], [1], [0], [0], [0, 0, 1, 0], [], []>} : vector<12x8xbf16>, vector<12x8xbf16>, vector<12x12xf32> -> vector<12x12xf32>
    %cst_33 = arith.constant dense<0xFF800000> : vector<12xf32>
    %78 = vector.multi_reduction <maximumf>, %77, %cst_33 [1] : vector<12x12xf32> to vector<12xf32>
    %79 = vector.shape_cast %78 : vector<12xf32> to vector<12x1xf32>
    %80 = vector.broadcast %79 : vector<12x1xf32> to vector<12x12xf32>
    %81 = arith.subf %77, %80 : vector<12x12xf32>
    %82 = math.exp %81 : vector<12x12xf32>
    %cst_34 = arith.constant dense<0.000000e+00> : vector<12xf32>
    %83 = vector.multi_reduction <add>, %82, %cst_34 [1] : vector<12x12xf32> to vector<12xf32>
    %84 = vector.shape_cast %83 : vector<12xf32> to vector<12x1xf32>
    %85 = tpu.reciprocal %84 {approx = true} : vector<12x1xf32> -> vector<12x1xf32>
    %86 = vector.broadcast %85 : vector<12x1xf32> to vector<12x12xf32>
    %87 = arith.mulf %82, %86 : vector<12x12xf32>
    %88 = arith.truncf %87 : vector<12x12xf32> to vector<12x12xbf16>
    %cst_35 = arith.constant dense<0.000000e+00> : vector<12x8xf32>
    %89 = tpu.matmul %88, %76, %cst_35 {dimension_numbers = #tpu.dot_dimension_numbers<[1], [0], [0], [1], [0, 0, 1, 1], [], []>} : vector<12x12xbf16>, vector<12x8xbf16>, vector<12x8xf32> -> vector<12x8xf32>
    %90 = vector.extract_strided_slice %26 {offsets = [0, 24], sizes = [12, 8], strides = [1, 1]} : vector<12x96xf32> to vector<12x8xf32>
    %cst_36 = arith.constant 0.353553385 : f32
    %91 = vector.broadcast %cst_36 : f32 to vector<12x8xf32>
    %92 = arith.mulf %90, %91 : vector<12x8xf32>
    %93 = arith.truncf %92 : vector<12x8xf32> to vector<12x8xbf16>
    %94 = vector.extract_strided_slice %26 {offsets = [0, 56], sizes = [12, 8], strides = [1, 1]} : vector<12x96xf32> to vector<12x8xf32>
    %95 = arith.truncf %94 : vector<12x8xf32> to vector<12x8xbf16>
    %96 = vector.extract_strided_slice %26 {offsets = [0, 88], sizes = [12, 8], strides = [1, 1]} : vector<12x96xf32> to vector<12x8xf32>
    %97 = arith.truncf %96 : vector<12x8xf32> to vector<12x8xbf16>
    %cst_37 = arith.constant dense<0.000000e+00> : vector<12x12xf32>
    %98 = tpu.matmul %93, %95, %cst_37 {dimension_numbers = #tpu.dot_dimension_numbers<[1], [1], [0], [0], [0, 0, 1, 0], [], []>} : vector<12x8xbf16>, vector<12x8xbf16>, vector<12x12xf32> -> vector<12x12xf32>
    %cst_38 = arith.constant dense<0xFF800000> : vector<12xf32>
    %99 = vector.multi_reduction <maximumf>, %98, %cst_38 [1] : vector<12x12xf32> to vector<12xf32>
    %100 = vector.shape_cast %99 : vector<12xf32> to vector<12x1xf32>
    %101 = vector.broadcast %100 : vector<12x1xf32> to vector<12x12xf32>
    %102 = arith.subf %98, %101 : vector<12x12xf32>
    %103 = math.exp %102 : vector<12x12xf32>
    %cst_39 = arith.constant dense<0.000000e+00> : vector<12xf32>
    %104 = vector.multi_reduction <add>, %103, %cst_39 [1] : vector<12x12xf32> to vector<12xf32>
    %105 = vector.shape_cast %104 : vector<12xf32> to vector<12x1xf32>
    %106 = tpu.reciprocal %105 {approx = true} : vector<12x1xf32> -> vector<12x1xf32>
    %107 = vector.broadcast %106 : vector<12x1xf32> to vector<12x12xf32>
    %108 = arith.mulf %103, %107 : vector<12x12xf32>
    %109 = arith.truncf %108 : vector<12x12xf32> to vector<12x12xbf16>
    %cst_40 = arith.constant dense<0.000000e+00> : vector<12x8xf32>
    %110 = tpu.matmul %109, %97, %cst_40 {dimension_numbers = #tpu.dot_dimension_numbers<[1], [0], [0], [1], [0, 0, 1, 1], [], []>} : vector<12x12xbf16>, vector<12x8xbf16>, vector<12x8xf32> -> vector<12x8xf32>
    %111 = tpu.concatenate %47, %68, %89, %110 in 1 : vector<12x8xf32>, vector<12x8xf32>, vector<12x8xf32>, vector<12x8xf32> -> vector<12x32xf32>
    %112 = arith.truncf %111 : vector<12x32xf32> to vector<12x32xbf16>
    %c0_41 = arith.constant 0 : index
    %c0_42 = arith.constant 0 : index
    %113 = vector.load %arg9[%c0_41, %c0_42] : memref<32x32xbf16, #tpu.memory_space<vmem>>, vector<32x32xbf16>
    %cst_43 = arith.constant dense<0.000000e+00> : vector<12x32xf32>
    %114 = tpu.matmul %112, %113, %cst_43 {dimension_numbers = #tpu.dot_dimension_numbers<[1], [0], [0], [1], [0, 0, 1, 1], [], []>} : vector<12x32xbf16>, vector<32x32xbf16>, vector<12x32xf32> -> vector<12x32xf32>
    %c0_44 = arith.constant 0 : index
    %c0_45 = arith.constant 0 : index
    %115 = vector.load %arg10[%c0_44, %c0_45] : memref<1x32xf32, #tpu.memory_space<vmem>>, vector<1x32xf32>
    %116 = vector.broadcast %115 : vector<1x32xf32> to vector<12x32xf32>
    %117 = arith.addf %114, %116 : vector<12x32xf32>
    %118 = arith.addf %20, %117 : vector<12x32xf32>
    %c0_46 = arith.constant 0 : index
    %c0_47 = arith.constant 0 : index
    %119 = vector.load %arg11[%c0_46, %c0_47] : memref<1x32xf32, #tpu.memory_space<vmem>>, vector<1x32xf32>
    %c0_48 = arith.constant 0 : index
    %c0_49 = arith.constant 0 : index
    %120 = vector.load %arg12[%c0_48, %c0_49] : memref<1x32xf32, #tpu.memory_space<vmem>>, vector<1x32xf32>
    %cst_50 = arith.constant dense<0.000000e+00> : vector<12xf32>
    %121 = vector.multi_reduction <add>, %118, %cst_50 [1] : vector<12x32xf32> to vector<12xf32>
    %122 = vector.shape_cast %121 : vector<12xf32> to vector<12x1xf32>
    %cst_51 = arith.constant 3.200000e+01 : f32
    %123 = vector.broadcast %cst_51 : f32 to vector<12x1xf32>
    %124 = arith.divf %122, %123 : vector<12x1xf32>
    %125 = vector.broadcast %124 : vector<12x1xf32> to vector<12x32xf32>
    %126 = arith.subf %118, %125 : vector<12x32xf32>
    %127 = arith.mulf %126, %126 : vector<12x32xf32>
    %cst_52 = arith.constant dense<0.000000e+00> : vector<12xf32>
    %128 = vector.multi_reduction <add>, %127, %cst_52 [1] : vector<12x32xf32> to vector<12xf32>
    %129 = vector.shape_cast %128 : vector<12xf32> to vector<12x1xf32>
    %cst_53 = arith.constant 3.200000e+01 : f32
    %130 = vector.broadcast %cst_53 : f32 to vector<12x1xf32>
    %131 = arith.divf %129, %130 : vector<12x1xf32>
    %cst_54 = arith.constant 9.99999974E-6 : f32
    %132 = vector.broadcast %cst_54 : f32 to vector<12x1xf32>
    %133 = arith.addf %131, %132 : vector<12x1xf32>
    %134 = math.rsqrt %133 : vector<12x1xf32>
    %135 = vector.broadcast %134 : vector<12x1xf32> to vector<12x32xf32>
    %136 = arith.mulf %126, %135 : vector<12x32xf32>
    %137 = vector.broadcast %119 : vector<1x32xf32> to vector<12x32xf32>
    %138 = arith.mulf %136, %137 : vector<12x32xf32>
    %139 = vector.broadcast %120 : vector<1x32xf32> to vector<12x32xf32>
    %140 = arith.addf %138, %139 : vector<12x32xf32>
    %141 = arith.truncf %140 : vector<12x32xf32> to vector<12x32xbf16>
    %c0_55 = arith.constant 0 : index
    %c0_56 = arith.constant 0 : index
    %142 = vector.load %arg13[%c0_55, %c0_56] : memref<32x64xbf16, #tpu.memory_space<vmem>>, vector<32x64xbf16>
    %cst_57 = arith.constant dense<0.000000e+00> : vector<12x64xf32>
    %143 = tpu.matmul %141, %142, %cst_57 {dimension_numbers = #tpu.dot_dimension_numbers<[1], [0], [0], [1], [0, 0, 1, 1], [], []>} : vector<12x32xbf16>, vector<32x64xbf16>, vector<12x64xf32> -> vector<12x64xf32>
    %c0_58 = arith.constant 0 : index
    %c0_59 = arith.constant 0 : index
    %144 = vector.load %arg14[%c0_58, %c0_59] : memref<1x64xf32, #tpu.memory_space<vmem>>, vector<1x64xf32>
    %145 = vector.broadcast %144 : vector<1x64xf32> to vector<12x64xf32>
    %146 = arith.addf %143, %145 : vector<12x64xf32>
    %cst_60 = arith.constant 5.000000e-01 : f32
    %147 = vector.broadcast %cst_60 : f32 to vector<12x64xf32>
    %148 = arith.mulf %147, %146 : vector<12x64xf32>
    %cst_61 = arith.constant 4.471500e-02 : f32
    %149 = vector.broadcast %cst_61 : f32 to vector<12x64xf32>
    %150 = arith.mulf %149, %146 : vector<12x64xf32>
    %151 = arith.mulf %150, %146 : vector<12x64xf32>
    %152 = arith.mulf %151, %146 : vector<12x64xf32>
    %153 = arith.addf %146, %152 : vector<12x64xf32>
    %cst_62 = arith.constant 0.797884583 : f32
    %154 = vector.broadcast %cst_62 : f32 to vector<12x64xf32>
    %155 = arith.mulf %154, %153 : vector<12x64xf32>
    %156 = math.tanh %155 : vector<12x64xf32>
    %cst_63 = arith.constant 1.000000e+00 : f32
    %157 = vector.broadcast %cst_63 : f32 to vector<12x64xf32>
    %158 = arith.addf %157, %156 : vector<12x64xf32>
    %159 = arith.mulf %148, %158 : vector<12x64xf32>
    %160 = arith.truncf %159 : vector<12x64xf32> to vector<12x64xbf16>
    %c0_64 = arith.constant 0 : index
    %c0_65 = arith.constant 0 : index
    %161 = vector.load %arg15[%c0_64, %c0_65] : memref<64x32xbf16, #tpu.memory_space<vmem>>, vector<64x32xbf16>
    %cst_66 = arith.constant dense<0.000000e+00> : vector<12x32xf32>
    %162 = tpu.matmul %160, %161, %cst_66 {dimension_numbers = #tpu.dot_dimension_numbers<[1], [0], [0], [1], [0, 0, 1, 1], [], []>} : vector<12x64xbf16>, vector<64x32xbf16>, vector<12x32xf32> -> vector<12x32xf32>
    %c0_67 = arith.constant 0 : index
    %c0_68 = arith.constant 0 : index
    %163 = vector.load %arg16[%c0_67, %c0_68] : memref<1x32xf32, #tpu.memory_space<vmem>>, vector<1x32xf32>
    %164 = vector.broadcast %163 : vector<1x32xf32> to vector<12x32xf32>
    %165 = arith.addf %162, %164 : vector<12x32xf32>
    %166 = arith.addf %140, %165 : vector<12x32xf32>
    %c0_69 = arith.constant 0 : index
    %c0_70 = arith.constant 0 : index
    %167 = vector.load %arg17[%c0_69, %c0_70] : memref<1x32xf32, #tpu.memory_space<vmem>>, vector<1x32xf32>
    %c0_71 = arith.constant 0 : index
    %c0_72 = arith.constant 0 : index
    %168 = vector.load %arg18[%c0_71, %c0_72] : memref<1x32xf32, #tpu.memory_space<vmem>>, vector<1x32xf32>
    %cst_73 = arith.constant dense<0.000000e+00> : vector<12xf32>
    %169 = vector.multi_reduction <add>, %166, %cst_73 [1] : vector<12x32xf32> to vector<12xf32>
    %170 = vector.shape_cast %169 : vector<12xf32> to vector<12x1xf32>
    %cst_74 = arith.constant 3.200000e+01 : f32
    %171 = vector.broadcast %cst_74 : f32 to vector<12x1xf32>
    %172 = arith.divf %170, %171 : vector<12x1xf32>
    %173 = vector.broadcast %172 : vector<12x1xf32> to vector<12x32xf32>
    %174 = arith.subf %166, %173 : vector<12x32xf32>
    %175 = arith.mulf %174, %174 : vector<12x32xf32>
    %cst_75 = arith.constant dense<0.000000e+00> : vector<12xf32>
    %176 = vector.multi_reduction <add>, %175, %cst_75 [1] : vector<12x32xf32> to vector<12xf32>
    %177 = vector.shape_cast %176 : vector<12xf32> to vector<12x1xf32>
    %cst_76 = arith.constant 3.200000e+01 : f32
    %178 = vector.broadcast %cst_76 : f32 to vector<12x1xf32>
    %179 = arith.divf %177, %178 : vector<12x1xf32>
    %cst_77 = arith.constant 9.99999974E-6 : f32
    %180 = vector.broadcast %cst_77 : f32 to vector<12x1xf32>
    %181 = arith.addf %179, %180 : vector<12x1xf32>
    %182 = math.rsqrt %181 : vector<12x1xf32>
    %183 = vector.broadcast %182 : vector<12x1xf32> to vector<12x32xf32>
    %184 = arith.mulf %174, %183 : vector<12x32xf32>
    %185 = vector.broadcast %167 : vector<1x32xf32> to vector<12x32xf32>
    %186 = arith.mulf %184, %185 : vector<12x32xf32>
    %187 = vector.broadcast %168 : vector<1x32xf32> to vector<12x32xf32>
    %188 = arith.addf %186, %187 : vector<12x32xf32>
    %189 = vector.extract_strided_slice %188 {offsets = [8, 0], sizes = [3, 32], strides = [1, 1]} : vector<12x32xf32> to vector<3x32xf32>
    %190 = arith.addf %189, %17 : vector<3x32xf32>
    %c0_78 = arith.constant 0 : index
    %c0_79 = arith.constant 0 : index
    %191 = vector.load %arg21[%c0_78, %c0_79] : memref<3x32xf32, #tpu.memory_space<vmem>>, vector<3x32xf32>
    tpu.vector_store %arg21[%c0_78, %c0_79], %190 {strides = array<i32>} : memref<3x32xf32, #tpu.memory_space<vmem>>, vector<3x32xf32>,
    %192 = vector.extract_strided_slice %188 {offsets = [11, 0], sizes = [1, 32], strides = [1, 1]} : vector<12x32xf32> to vector<1x32xf32>
    %193 = arith.truncf %192 : vector<1x32xf32> to vector<1x32xbf16>
    %c0_80 = arith.constant 0 : index
    %c0_81 = arith.constant 0 : index
    %194 = vector.load %arg19[%c0_80, %c0_81] : memref<32x32xbf16, #tpu.memory_space<vmem>>, vector<32x32xbf16>
    %cst_82 = arith.constant dense<0.000000e+00> : vector<1x32xf32>
    %195 = tpu.matmul %193, %194, %cst_82 {dimension_numbers = #tpu.dot_dimension_numbers<[1], [0], [0], [1], [0, 0, 1, 1], [], []>} : vector<1x32xbf16>, vector<32x32xbf16>, vector<1x32xf32> -> vector<1x32xf32>
    %c0_83 = arith.constant 0 : index
    %c0_84 = arith.constant 0 : index
    %196 = vector.load %arg20[%c0_83, %c0_84] : memref<1x32xf32, #tpu.memory_space<vmem>>, vector<1x32xf32>
    %197 = arith.addf %195, %196 : vector<1x32xf32>
    %cst_85 = arith.constant 0.00999999977 : f32
    %198 = vector.broadcast %cst_85 : f32 to vector<1x32xf32>
    %199 = arith.mulf %197, %198 : vector<1x32xf32>
    %c0_86 = arith.constant 0 : index
    %c0_87 = arith.constant 0 : index
    %200 = vector.load %arg22[%c0_86, %c0_87] : memref<1x32xf32, #tpu.memory_space<vmem>>, vector<1x32xf32>
    tpu.vector_store %arg22[%c0_86, %c0_87], %199 {strides = array<i32>} : memref<1x32xf32, #tpu.memory_space<vmem>>, vector<1x32xf32>,
    return
  }
}

module attributes {stable_mosaic.version = 11 : i64} {
  func.func @_dyn_weight_kernel(%arg0: i32, %arg1: memref<3x32xf32, #tpu.memory_space<vmem>>, %arg2: memref<32x512xbf16, #tpu.memory_space<vmem>>, %arg3: memref<1x512xf32, #tpu.memory_space<vmem>>, %arg4: memref<3x512xf32, #tpu.memory_space<vmem>>) attributes {dimension_semantics = [#tpu.dimension_semantics<parallel>], iteration_bounds = array<i64: 4>, scalar_prefetch = 0 : i64, scratch_operands = 0 : i64, tpu.core_type = #tpu.core_type<tc>, window_params = [{pipeline_mode = #tpu.pipeline_mode<synchronous>, transform_indices = @transform_0, window_bounds = array<i64: 3, 32>}, {transform_indices = @transform_1, window_bounds = array<i64: 32, 512>}, {transform_indices = @transform_2, window_bounds = array<i64: 1, 512>}, {transform_indices = @transform_3, window_bounds = array<i64: 3, 512>}]} {
    %c0 = arith.constant 0 : index
    %c0_0 = arith.constant 0 : index
    %0 = vector.load %arg1[%c0, %c0_0] : memref<3x32xf32, #tpu.memory_space<vmem>>, vector<3x32xf32>
    %1 = arith.truncf %0 : vector<3x32xf32> to vector<3x32xbf16>
    %c0_1 = arith.constant 0 : index
    %c0_2 = arith.constant 0 : index
    %2 = vector.load %arg2[%c0_1, %c0_2] : memref<32x512xbf16, #tpu.memory_space<vmem>>, vector<32x512xbf16>
    %cst = arith.constant dense<0.000000e+00> : vector<3x512xf32>
    %3 = tpu.matmul %1, %2, %cst {dimension_numbers = #tpu.dot_dimension_numbers<[1], [0], [0], [1], [0, 0, 1, 1], [], []>} : vector<3x32xbf16>, vector<32x512xbf16>, vector<3x512xf32> -> vector<3x512xf32>
    %c0_3 = arith.constant 0 : index
    %c0_4 = arith.constant 0 : index
    %4 = vector.load %arg3[%c0_3, %c0_4] : memref<1x512xf32, #tpu.memory_space<vmem>>, vector<1x512xf32>
    %5 = vector.broadcast %4 : vector<1x512xf32> to vector<3x512xf32>
    %6 = arith.addf %3, %5 : vector<3x512xf32>
    %cst_5 = arith.constant 0.00999999977 : f32
    %7 = vector.broadcast %cst_5 : f32 to vector<3x512xf32>
    %8 = arith.mulf %6, %7 : vector<3x512xf32>
    %c0_6 = arith.constant 0 : index
    %c0_7 = arith.constant 0 : index
    %9 = vector.load %arg4[%c0_6, %c0_7] : memref<3x512xf32, #tpu.memory_space<vmem>>, vector<3x512xf32>
    tpu.vector_store %arg4[%c0_6, %c0_7], %8 {strides = array<i32>} : memref<3x512xf32, #tpu.memory_space<vmem>>, vector<3x512xf32>,
    return
  }
  func.func @transform_0(%arg0: i32) -> (i32, i32) {
    %c0_i32 = arith.constant 0 : i32
    %c0_i32_0 = arith.constant 0 : i32
    %c0_i32_1 = arith.constant 0 : i32
    return %c0_i32, %c0_i32_0 : i32, i32
  }
  func.func @transform_1(%arg0: i32) -> (i32, i32) {
    %c0_i32 = arith.constant 0 : i32
    %c0_i32_0 = arith.constant 0 : i32
    return %c0_i32, %arg0 : i32, i32
  }
  func.func @transform_2(%arg0: i32) -> (i32, i32) {
    %c0_i32 = arith.constant 0 : i32
    %c0_i32_0 = arith.constant 0 : i32
    return %c0_i32, %arg0 : i32, i32
  }
  func.func @transform_3(%arg0: i32) -> (i32, i32) {
    %c0_i32 = arith.constant 0 : i32
    %c0_i32_0 = arith.constant 0 : i32
    return %c0_i32, %arg0 : i32, i32
  }
}

module attributes {stable_mosaic.version = 11 : i64} {
  func.func @_patch_embed_kernel(%arg0: i32, %arg1: memref<1x16x192xbf16, #tpu.memory_space<vmem>>, %arg2: memref<192x32xbf16, #tpu.memory_space<vmem>>, %arg3: memref<1x32xf32, #tpu.memory_space<vmem>>, %arg4: memref<1x17x32xf32, #tpu.memory_space<vmem>>, %arg5: memref<1x1x32xf32, #tpu.memory_space<vmem>>, %arg6: memref<1x17x32xf32, #tpu.memory_space<vmem>>) attributes {dimension_semantics = [#tpu.dimension_semantics<parallel>], iteration_bounds = array<i64: 2>, scalar_prefetch = 0 : i64, scratch_operands = 0 : i64, tpu.core_type = #tpu.core_type<tc>, window_params = [{transform_indices = @transform_0, window_bounds = array<i64: 1, 16, 192>}, {pipeline_mode = #tpu.pipeline_mode<synchronous>, transform_indices = @transform_1, window_bounds = array<i64: 192, 32>}, {pipeline_mode = #tpu.pipeline_mode<synchronous>, transform_indices = @transform_2, window_bounds = array<i64: 1, 32>}, {pipeline_mode = #tpu.pipeline_mode<synchronous>, transform_indices = @transform_3, window_bounds = array<i64: 1, 17, 32>}, {pipeline_mode = #tpu.pipeline_mode<synchronous>, transform_indices = @transform_4, window_bounds = array<i64: 1, 1, 32>}, {transform_indices = @transform_5, window_bounds = array<i64: 1, 17, 32>}]} {
    %c0 = arith.constant 0 : index
    %c0_0 = arith.constant 0 : index
    %c0_1 = arith.constant 0 : index
    %0 = vector.load %arg1[%c0, %c0_0, %c0_1] : memref<1x16x192xbf16, #tpu.memory_space<vmem>>, vector<1x16x192xbf16>
    %1 = vector.shape_cast %0 : vector<1x16x192xbf16> to vector<16x192xbf16>
    %c0_2 = arith.constant 0 : index
    %c0_3 = arith.constant 0 : index
    %2 = vector.load %arg2[%c0_2, %c0_3] : memref<192x32xbf16, #tpu.memory_space<vmem>>, vector<192x32xbf16>
    %cst = arith.constant dense<0.000000e+00> : vector<16x32xf32>
    %3 = tpu.matmul %1, %2, %cst {dimension_numbers = #tpu.dot_dimension_numbers<[1], [0], [0], [1], [0, 0, 1, 1], [], []>} : vector<16x192xbf16>, vector<192x32xbf16>, vector<16x32xf32> -> vector<16x32xf32>
    %c0_4 = arith.constant 0 : index
    %c0_5 = arith.constant 0 : index
    %4 = vector.load %arg3[%c0_4, %c0_5] : memref<1x32xf32, #tpu.memory_space<vmem>>, vector<1x32xf32>
    %5 = vector.broadcast %4 : vector<1x32xf32> to vector<16x32xf32>
    %6 = arith.addf %3, %5 : vector<16x32xf32>
    %c0_6 = arith.constant 0 : index
    %c0_7 = arith.constant 0 : index
    %c0_8 = arith.constant 0 : index
    %7 = vector.load %arg4[%c0_6, %c0_7, %c0_8] : memref<1x17x32xf32, #tpu.memory_space<vmem>>, vector<1x17x32xf32>
    %8 = vector.shape_cast %7 : vector<1x17x32xf32> to vector<17x32xf32>
    %c0_9 = arith.constant 0 : index
    %c0_10 = arith.constant 0 : index
    %c0_11 = arith.constant 0 : index
    %9 = vector.load %arg5[%c0_9, %c0_10, %c0_11] : memref<1x1x32xf32, #tpu.memory_space<vmem>>, vector<1x1x32xf32>
    %10 = vector.shape_cast %9 : vector<1x1x32xf32> to vector<1x32xf32>
    %11 = vector.extract_strided_slice %8 {offsets = [0, 0], sizes = [1, 32], strides = [1, 1]} : vector<17x32xf32> to vector<1x32xf32>
    %12 = arith.addf %10, %11 : vector<1x32xf32>
    %c0_12 = arith.constant 0 : index
    %c0_13 = arith.constant 0 : index
    %c0_14 = arith.constant 0 : index
    %13 = vector.load %arg6[%c0_12, %c0_13, %c0_14] : memref<1x17x32xf32, #tpu.memory_space<vmem>>, vector<1x1x32xf32>
    %14 = vector.shape_cast %13 : vector<1x1x32xf32> to vector<1x32xf32>
    %15 = vector.shape_cast %12 : vector<1x32xf32> to vector<1x1x32xf32>
    tpu.vector_store %arg6[%c0_12, %c0_13, %c0_14], %15 {strides = array<i32>} : memref<1x17x32xf32, #tpu.memory_space<vmem>>, vector<1x1x32xf32>,
    %16 = vector.extract_strided_slice %8 {offsets = [1, 0], sizes = [16, 32], strides = [1, 1]} : vector<17x32xf32> to vector<16x32xf32>
    %17 = arith.addf %6, %16 : vector<16x32xf32>
    %c0_15 = arith.constant 0 : index
    %c1 = arith.constant 1 : index
    %c0_16 = arith.constant 0 : index
    %18 = vector.load %arg6[%c0_15, %c1, %c0_16] : memref<1x17x32xf32, #tpu.memory_space<vmem>>, vector<1x16x32xf32>
    %19 = vector.shape_cast %18 : vector<1x16x32xf32> to vector<16x32xf32>
    %20 = vector.shape_cast %17 : vector<16x32xf32> to vector<1x16x32xf32>
    tpu.vector_store %arg6[%c0_15, %c1, %c0_16], %20 {strides = array<i32>} : memref<1x17x32xf32, #tpu.memory_space<vmem>>, vector<1x16x32xf32>,
    return
  }
  func.func @transform_0(%arg0: i32) -> (i32, i32, i32) {
    %c0_i32 = arith.constant 0 : i32
    %c0_i32_0 = arith.constant 0 : i32
    %c0_i32_1 = arith.constant 0 : i32
    return %arg0, %c0_i32, %c0_i32_0 : i32, i32, i32
  }
  func.func @transform_1(%arg0: i32) -> (i32, i32) {
    %c0_i32 = arith.constant 0 : i32
    %c0_i32_0 = arith.constant 0 : i32
    %c0_i32_1 = arith.constant 0 : i32
    return %c0_i32, %c0_i32_0 : i32, i32
  }
  func.func @transform_2(%arg0: i32) -> (i32, i32) {
    %c0_i32 = arith.constant 0 : i32
    %c0_i32_0 = arith.constant 0 : i32
    %c0_i32_1 = arith.constant 0 : i32
    return %c0_i32, %c0_i32_0 : i32, i32
  }
  func.func @transform_3(%arg0: i32) -> (i32, i32, i32) {
    %c0_i32 = arith.constant 0 : i32
    %c0_i32_0 = arith.constant 0 : i32
    %c0_i32_1 = arith.constant 0 : i32
    %c0_i32_2 = arith.constant 0 : i32
    return %c0_i32, %c0_i32_0, %c0_i32_1 : i32, i32, i32
  }
  func.func @transform_4(%arg0: i32) -> (i32, i32, i32) {
    %c0_i32 = arith.constant 0 : i32
    %c0_i32_0 = arith.constant 0 : i32
    %c0_i32_1 = arith.constant 0 : i32
    %c0_i32_2 = arith.constant 0 : i32
    return %c0_i32, %c0_i32_0, %c0_i32_1 : i32, i32, i32
  }
  func.func @transform_5(%arg0: i32) -> (i32, i32, i32) {
    %c0_i32 = arith.constant 0 : i32
    %c0_i32_0 = arith.constant 0 : i32
    %c0_i32_1 = arith.constant 0 : i32
    return %arg0, %c0_i32, %c0_i32_0 : i32, i32, i32
  }
}

module attributes {stable_mosaic.version = 11 : i64} {
  func.func @_vit_blocks_kernel(%arg0: i32, %arg1: i32, %arg2: memref<1x17x32xf32, #tpu.memory_space<vmem>>, %arg3: memref<1x1x32xf32, #tpu.memory_space<vmem>>, %arg4: memref<1x1x32xf32, #tpu.memory_space<vmem>>, %arg5: memref<1x32x96xbf16, #tpu.memory_space<vmem>>, %arg6: memref<1x1x96xf32, #tpu.memory_space<vmem>>, %arg7: memref<1x32x32xbf16, #tpu.memory_space<vmem>>, %arg8: memref<1x1x32xf32, #tpu.memory_space<vmem>>, %arg9: memref<1x1x32xf32, #tpu.memory_space<vmem>>, %arg10: memref<1x1x32xf32, #tpu.memory_space<vmem>>, %arg11: memref<1x32x128xbf16, #tpu.memory_space<vmem>>, %arg12: memref<1x1x128xf32, #tpu.memory_space<vmem>>, %arg13: memref<1x128x32xbf16, #tpu.memory_space<vmem>>, %arg14: memref<1x1x32xf32, #tpu.memory_space<vmem>>, %arg15: memref<1x17x32xf32, #tpu.memory_space<vmem>>, %arg16: memref<17x32xf32, #tpu.memory_space<vmem>>) attributes {dimension_semantics = [#tpu.dimension_semantics<parallel>, #tpu.dimension_semantics<arbitrary>], iteration_bounds = array<i64: 2, 2>, scalar_prefetch = 0 : i64, scratch_operands = 1 : i64, tpu.core_type = #tpu.core_type<tc>, window_params = [{transform_indices = @transform_0, window_bounds = array<i64: 1, 17, 32>}, {transform_indices = @transform_1, window_bounds = array<i64: 1, 1, 32>}, {transform_indices = @transform_2, window_bounds = array<i64: 1, 1, 32>}, {transform_indices = @transform_3, window_bounds = array<i64: 1, 32, 96>}, {transform_indices = @transform_4, window_bounds = array<i64: 1, 1, 96>}, {transform_indices = @transform_5, window_bounds = array<i64: 1, 32, 32>}, {transform_indices = @transform_6, window_bounds = array<i64: 1, 1, 32>}, {transform_indices = @transform_7, window_bounds = array<i64: 1, 1, 32>}, {transform_indices = @transform_8, window_bounds = array<i64: 1, 1, 32>}, {transform_indices = @transform_9, window_bounds = array<i64: 1, 32, 128>}, {transform_indices = @transform_10, window_bounds = array<i64: 1, 1, 128>}, {transform_indices = @transform_11, window_bounds = array<i64: 1, 128, 32>}, {transform_indices = @transform_12, window_bounds = array<i64: 1, 1, 32>}, {transform_indices = @transform_13, window_bounds = array<i64: 1, 17, 32>}]} {
    %c0_i32 = arith.constant 0 : i32
    %0 = arith.cmpi eq, %arg1, %c0_i32 : i32
    %1 = arith.extui %0 : i1 to i32
    %c0_i32_0 = arith.constant 0 : i32
    %2 = arith.cmpi ne, %1, %c0_i32_0 : i32
    scf.if %2 {
      %c0_78 = arith.constant 0 : index
      %c0_79 = arith.constant 0 : index
      %c0_80 = arith.constant 0 : index
      %188 = vector.load %arg2[%c0_78, %c0_79, %c0_80] : memref<1x17x32xf32, #tpu.memory_space<vmem>>, vector<1x17x32xf32>
      %189 = vector.shape_cast %188 : vector<1x17x32xf32> to vector<17x32xf32>
      %c0_81 = arith.constant 0 : index
      %c0_82 = arith.constant 0 : index
      %190 = vector.load %arg16[%c0_81, %c0_82] : memref<17x32xf32, #tpu.memory_space<vmem>>, vector<17x32xf32>
      tpu.vector_store %arg16[%c0_81, %c0_82], %189 {strides = array<i32>} : memref<17x32xf32, #tpu.memory_space<vmem>>, vector<17x32xf32>,
    } else {
    }
    %c0 = arith.constant 0 : index
    %c0_1 = arith.constant 0 : index
    %3 = vector.load %arg16[%c0, %c0_1] : memref<17x32xf32, #tpu.memory_space<vmem>>, vector<17x32xf32>
    %c0_2 = arith.constant 0 : index
    %c0_3 = arith.constant 0 : index
    %c0_4 = arith.constant 0 : index
    %4 = vector.load %arg3[%c0_2, %c0_3, %c0_4] : memref<1x1x32xf32, #tpu.memory_space<vmem>>, vector<1x1x32xf32>
    %5 = vector.shape_cast %4 : vector<1x1x32xf32> to vector<1x32xf32>
    %c0_5 = arith.constant 0 : index
    %c0_6 = arith.constant 0 : index
    %c0_7 = arith.constant 0 : index
    %6 = vector.load %arg4[%c0_5, %c0_6, %c0_7] : memref<1x1x32xf32, #tpu.memory_space<vmem>>, vector<1x1x32xf32>
    %7 = vector.shape_cast %6 : vector<1x1x32xf32> to vector<1x32xf32>
    %cst = arith.constant dense<0.000000e+00> : vector<17xf32>
    %8 = vector.multi_reduction <add>, %3, %cst [1] : vector<17x32xf32> to vector<17xf32>
    %9 = vector.shape_cast %8 : vector<17xf32> to vector<17x1xf32>
    %cst_8 = arith.constant 3.200000e+01 : f32
    %10 = vector.broadcast %cst_8 : f32 to vector<17x1xf32>
    %11 = arith.divf %9, %10 : vector<17x1xf32>
    %12 = vector.broadcast %11 : vector<17x1xf32> to vector<17x32xf32>
    %13 = arith.subf %3, %12 : vector<17x32xf32>
    %14 = arith.mulf %13, %13 : vector<17x32xf32>
    %cst_9 = arith.constant dense<0.000000e+00> : vector<17xf32>
    %15 = vector.multi_reduction <add>, %14, %cst_9 [1] : vector<17x32xf32> to vector<17xf32>
    %16 = vector.shape_cast %15 : vector<17xf32> to vector<17x1xf32>
    %cst_10 = arith.constant 3.200000e+01 : f32
    %17 = vector.broadcast %cst_10 : f32 to vector<17x1xf32>
    %18 = arith.divf %16, %17 : vector<17x1xf32>
    %cst_11 = arith.constant 9.99999974E-6 : f32
    %19 = vector.broadcast %cst_11 : f32 to vector<17x1xf32>
    %20 = arith.addf %18, %19 : vector<17x1xf32>
    %21 = math.rsqrt %20 : vector<17x1xf32>
    %22 = vector.broadcast %21 : vector<17x1xf32> to vector<17x32xf32>
    %23 = arith.mulf %13, %22 : vector<17x32xf32>
    %24 = vector.broadcast %5 : vector<1x32xf32> to vector<17x32xf32>
    %25 = arith.mulf %23, %24 : vector<17x32xf32>
    %26 = vector.broadcast %7 : vector<1x32xf32> to vector<17x32xf32>
    %27 = arith.addf %25, %26 : vector<17x32xf32>
    %28 = arith.truncf %27 : vector<17x32xf32> to vector<17x32xbf16>
    %c0_12 = arith.constant 0 : index
    %c0_13 = arith.constant 0 : index
    %c0_14 = arith.constant 0 : index
    %29 = vector.load %arg5[%c0_12, %c0_13, %c0_14] : memref<1x32x96xbf16, #tpu.memory_space<vmem>>, vector<1x32x96xbf16>
    %30 = vector.shape_cast %29 : vector<1x32x96xbf16> to vector<32x96xbf16>
    %c0_15 = arith.constant 0 : index
    %c0_16 = arith.constant 0 : index
    %c0_17 = arith.constant 0 : index
    %31 = vector.load %arg6[%c0_15, %c0_16, %c0_17] : memref<1x1x96xf32, #tpu.memory_space<vmem>>, vector<1x1x96xf32>
    %32 = vector.shape_cast %31 : vector<1x1x96xf32> to vector<1x96xf32>
    %cst_18 = arith.constant dense<0.000000e+00> : vector<17x96xf32>
    %33 = tpu.matmul %28, %30, %cst_18 {dimension_numbers = #tpu.dot_dimension_numbers<[1], [0], [0], [1], [0, 0, 1, 1], [], []>} : vector<17x32xbf16>, vector<32x96xbf16>, vector<17x96xf32> -> vector<17x96xf32>
    %34 = vector.broadcast %32 : vector<1x96xf32> to vector<17x96xf32>
    %35 = arith.addf %33, %34 : vector<17x96xf32>
    %36 = vector.extract_strided_slice %35 {offsets = [0, 0], sizes = [17, 8], strides = [1, 1]} : vector<17x96xf32> to vector<17x8xf32>
    %cst_19 = arith.constant 0.353553385 : f32
    %37 = vector.broadcast %cst_19 : f32 to vector<17x8xf32>
    %38 = arith.mulf %36, %37 : vector<17x8xf32>
    %39 = arith.truncf %38 : vector<17x8xf32> to vector<17x8xbf16>
    %40 = vector.extract_strided_slice %35 {offsets = [0, 32], sizes = [17, 8], strides = [1, 1]} : vector<17x96xf32> to vector<17x8xf32>
    %41 = arith.truncf %40 : vector<17x8xf32> to vector<17x8xbf16>
    %42 = vector.extract_strided_slice %35 {offsets = [0, 64], sizes = [17, 8], strides = [1, 1]} : vector<17x96xf32> to vector<17x8xf32>
    %43 = arith.truncf %42 : vector<17x8xf32> to vector<17x8xbf16>
    %cst_20 = arith.constant dense<0.000000e+00> : vector<17x17xf32>
    %44 = tpu.matmul %39, %41, %cst_20 {dimension_numbers = #tpu.dot_dimension_numbers<[1], [1], [0], [0], [0, 0, 1, 0], [], []>} : vector<17x8xbf16>, vector<17x8xbf16>, vector<17x17xf32> -> vector<17x17xf32>
    %cst_21 = arith.constant dense<0xFF800000> : vector<17xf32>
    %45 = vector.multi_reduction <maximumf>, %44, %cst_21 [1] : vector<17x17xf32> to vector<17xf32>
    %46 = vector.shape_cast %45 : vector<17xf32> to vector<17x1xf32>
    %47 = vector.broadcast %46 : vector<17x1xf32> to vector<17x17xf32>
    %48 = arith.subf %44, %47 : vector<17x17xf32>
    %49 = math.exp %48 : vector<17x17xf32>
    %cst_22 = arith.constant dense<0.000000e+00> : vector<17xf32>
    %50 = vector.multi_reduction <add>, %49, %cst_22 [1] : vector<17x17xf32> to vector<17xf32>
    %51 = vector.shape_cast %50 : vector<17xf32> to vector<17x1xf32>
    %52 = tpu.reciprocal %51 {approx = true} : vector<17x1xf32> -> vector<17x1xf32>
    %53 = vector.broadcast %52 : vector<17x1xf32> to vector<17x17xf32>
    %54 = arith.mulf %49, %53 : vector<17x17xf32>
    %55 = arith.truncf %54 : vector<17x17xf32> to vector<17x17xbf16>
    %cst_23 = arith.constant dense<0.000000e+00> : vector<17x8xf32>
    %56 = tpu.matmul %55, %43, %cst_23 {dimension_numbers = #tpu.dot_dimension_numbers<[1], [0], [0], [1], [0, 0, 1, 1], [], []>} : vector<17x17xbf16>, vector<17x8xbf16>, vector<17x8xf32> -> vector<17x8xf32>
    %57 = vector.extract_strided_slice %35 {offsets = [0, 8], sizes = [17, 8], strides = [1, 1]} : vector<17x96xf32> to vector<17x8xf32>
    %cst_24 = arith.constant 0.353553385 : f32
    %58 = vector.broadcast %cst_24 : f32 to vector<17x8xf32>
    %59 = arith.mulf %57, %58 : vector<17x8xf32>
    %60 = arith.truncf %59 : vector<17x8xf32> to vector<17x8xbf16>
    %61 = vector.extract_strided_slice %35 {offsets = [0, 40], sizes = [17, 8], strides = [1, 1]} : vector<17x96xf32> to vector<17x8xf32>
    %62 = arith.truncf %61 : vector<17x8xf32> to vector<17x8xbf16>
    %63 = vector.extract_strided_slice %35 {offsets = [0, 72], sizes = [17, 8], strides = [1, 1]} : vector<17x96xf32> to vector<17x8xf32>
    %64 = arith.truncf %63 : vector<17x8xf32> to vector<17x8xbf16>
    %cst_25 = arith.constant dense<0.000000e+00> : vector<17x17xf32>
    %65 = tpu.matmul %60, %62, %cst_25 {dimension_numbers = #tpu.dot_dimension_numbers<[1], [1], [0], [0], [0, 0, 1, 0], [], []>} : vector<17x8xbf16>, vector<17x8xbf16>, vector<17x17xf32> -> vector<17x17xf32>
    %cst_26 = arith.constant dense<0xFF800000> : vector<17xf32>
    %66 = vector.multi_reduction <maximumf>, %65, %cst_26 [1] : vector<17x17xf32> to vector<17xf32>
    %67 = vector.shape_cast %66 : vector<17xf32> to vector<17x1xf32>
    %68 = vector.broadcast %67 : vector<17x1xf32> to vector<17x17xf32>
    %69 = arith.subf %65, %68 : vector<17x17xf32>
    %70 = math.exp %69 : vector<17x17xf32>
    %cst_27 = arith.constant dense<0.000000e+00> : vector<17xf32>
    %71 = vector.multi_reduction <add>, %70, %cst_27 [1] : vector<17x17xf32> to vector<17xf32>
    %72 = vector.shape_cast %71 : vector<17xf32> to vector<17x1xf32>
    %73 = tpu.reciprocal %72 {approx = true} : vector<17x1xf32> -> vector<17x1xf32>
    %74 = vector.broadcast %73 : vector<17x1xf32> to vector<17x17xf32>
    %75 = arith.mulf %70, %74 : vector<17x17xf32>
    %76 = arith.truncf %75 : vector<17x17xf32> to vector<17x17xbf16>
    %cst_28 = arith.constant dense<0.000000e+00> : vector<17x8xf32>
    %77 = tpu.matmul %76, %64, %cst_28 {dimension_numbers = #tpu.dot_dimension_numbers<[1], [0], [0], [1], [0, 0, 1, 1], [], []>} : vector<17x17xbf16>, vector<17x8xbf16>, vector<17x8xf32> -> vector<17x8xf32>
    %78 = vector.extract_strided_slice %35 {offsets = [0, 16], sizes = [17, 8], strides = [1, 1]} : vector<17x96xf32> to vector<17x8xf32>
    %cst_29 = arith.constant 0.353553385 : f32
    %79 = vector.broadcast %cst_29 : f32 to vector<17x8xf32>
    %80 = arith.mulf %78, %79 : vector<17x8xf32>
    %81 = arith.truncf %80 : vector<17x8xf32> to vector<17x8xbf16>
    %82 = vector.extract_strided_slice %35 {offsets = [0, 48], sizes = [17, 8], strides = [1, 1]} : vector<17x96xf32> to vector<17x8xf32>
    %83 = arith.truncf %82 : vector<17x8xf32> to vector<17x8xbf16>
    %84 = vector.extract_strided_slice %35 {offsets = [0, 80], sizes = [17, 8], strides = [1, 1]} : vector<17x96xf32> to vector<17x8xf32>
    %85 = arith.truncf %84 : vector<17x8xf32> to vector<17x8xbf16>
    %cst_30 = arith.constant dense<0.000000e+00> : vector<17x17xf32>
    %86 = tpu.matmul %81, %83, %cst_30 {dimension_numbers = #tpu.dot_dimension_numbers<[1], [1], [0], [0], [0, 0, 1, 0], [], []>} : vector<17x8xbf16>, vector<17x8xbf16>, vector<17x17xf32> -> vector<17x17xf32>
    %cst_31 = arith.constant dense<0xFF800000> : vector<17xf32>
    %87 = vector.multi_reduction <maximumf>, %86, %cst_31 [1] : vector<17x17xf32> to vector<17xf32>
    %88 = vector.shape_cast %87 : vector<17xf32> to vector<17x1xf32>
    %89 = vector.broadcast %88 : vector<17x1xf32> to vector<17x17xf32>
    %90 = arith.subf %86, %89 : vector<17x17xf32>
    %91 = math.exp %90 : vector<17x17xf32>
    %cst_32 = arith.constant dense<0.000000e+00> : vector<17xf32>
    %92 = vector.multi_reduction <add>, %91, %cst_32 [1] : vector<17x17xf32> to vector<17xf32>
    %93 = vector.shape_cast %92 : vector<17xf32> to vector<17x1xf32>
    %94 = tpu.reciprocal %93 {approx = true} : vector<17x1xf32> -> vector<17x1xf32>
    %95 = vector.broadcast %94 : vector<17x1xf32> to vector<17x17xf32>
    %96 = arith.mulf %91, %95 : vector<17x17xf32>
    %97 = arith.truncf %96 : vector<17x17xf32> to vector<17x17xbf16>
    %cst_33 = arith.constant dense<0.000000e+00> : vector<17x8xf32>
    %98 = tpu.matmul %97, %85, %cst_33 {dimension_numbers = #tpu.dot_dimension_numbers<[1], [0], [0], [1], [0, 0, 1, 1], [], []>} : vector<17x17xbf16>, vector<17x8xbf16>, vector<17x8xf32> -> vector<17x8xf32>
    %99 = vector.extract_strided_slice %35 {offsets = [0, 24], sizes = [17, 8], strides = [1, 1]} : vector<17x96xf32> to vector<17x8xf32>
    %cst_34 = arith.constant 0.353553385 : f32
    %100 = vector.broadcast %cst_34 : f32 to vector<17x8xf32>
    %101 = arith.mulf %99, %100 : vector<17x8xf32>
    %102 = arith.truncf %101 : vector<17x8xf32> to vector<17x8xbf16>
    %103 = vector.extract_strided_slice %35 {offsets = [0, 56], sizes = [17, 8], strides = [1, 1]} : vector<17x96xf32> to vector<17x8xf32>
    %104 = arith.truncf %103 : vector<17x8xf32> to vector<17x8xbf16>
    %105 = vector.extract_strided_slice %35 {offsets = [0, 88], sizes = [17, 8], strides = [1, 1]} : vector<17x96xf32> to vector<17x8xf32>
    %106 = arith.truncf %105 : vector<17x8xf32> to vector<17x8xbf16>
    %cst_35 = arith.constant dense<0.000000e+00> : vector<17x17xf32>
    %107 = tpu.matmul %102, %104, %cst_35 {dimension_numbers = #tpu.dot_dimension_numbers<[1], [1], [0], [0], [0, 0, 1, 0], [], []>} : vector<17x8xbf16>, vector<17x8xbf16>, vector<17x17xf32> -> vector<17x17xf32>
    %cst_36 = arith.constant dense<0xFF800000> : vector<17xf32>
    %108 = vector.multi_reduction <maximumf>, %107, %cst_36 [1] : vector<17x17xf32> to vector<17xf32>
    %109 = vector.shape_cast %108 : vector<17xf32> to vector<17x1xf32>
    %110 = vector.broadcast %109 : vector<17x1xf32> to vector<17x17xf32>
    %111 = arith.subf %107, %110 : vector<17x17xf32>
    %112 = math.exp %111 : vector<17x17xf32>
    %cst_37 = arith.constant dense<0.000000e+00> : vector<17xf32>
    %113 = vector.multi_reduction <add>, %112, %cst_37 [1] : vector<17x17xf32> to vector<17xf32>
    %114 = vector.shape_cast %113 : vector<17xf32> to vector<17x1xf32>
    %115 = tpu.reciprocal %114 {approx = true} : vector<17x1xf32> -> vector<17x1xf32>
    %116 = vector.broadcast %115 : vector<17x1xf32> to vector<17x17xf32>
    %117 = arith.mulf %112, %116 : vector<17x17xf32>
    %118 = arith.truncf %117 : vector<17x17xf32> to vector<17x17xbf16>
    %cst_38 = arith.constant dense<0.000000e+00> : vector<17x8xf32>
    %119 = tpu.matmul %118, %106, %cst_38 {dimension_numbers = #tpu.dot_dimension_numbers<[1], [0], [0], [1], [0, 0, 1, 1], [], []>} : vector<17x17xbf16>, vector<17x8xbf16>, vector<17x8xf32> -> vector<17x8xf32>
    %120 = tpu.concatenate %56, %77, %98, %119 in 1 : vector<17x8xf32>, vector<17x8xf32>, vector<17x8xf32>, vector<17x8xf32> -> vector<17x32xf32>
    %121 = arith.truncf %120 : vector<17x32xf32> to vector<17x32xbf16>
    %c0_39 = arith.constant 0 : index
    %c0_40 = arith.constant 0 : index
    %c0_41 = arith.constant 0 : index
    %122 = vector.load %arg7[%c0_39, %c0_40, %c0_41] : memref<1x32x32xbf16, #tpu.memory_space<vmem>>, vector<1x32x32xbf16>
    %123 = vector.shape_cast %122 : vector<1x32x32xbf16> to vector<32x32xbf16>
    %cst_42 = arith.constant dense<0.000000e+00> : vector<17x32xf32>
    %124 = tpu.matmul %121, %123, %cst_42 {dimension_numbers = #tpu.dot_dimension_numbers<[1], [0], [0], [1], [0, 0, 1, 1], [], []>} : vector<17x32xbf16>, vector<32x32xbf16>, vector<17x32xf32> -> vector<17x32xf32>
    %125 = arith.addf %3, %124 : vector<17x32xf32>
    %c0_43 = arith.constant 0 : index
    %c0_44 = arith.constant 0 : index
    %c0_45 = arith.constant 0 : index
    %126 = vector.load %arg8[%c0_43, %c0_44, %c0_45] : memref<1x1x32xf32, #tpu.memory_space<vmem>>, vector<1x1x32xf32>
    %127 = vector.shape_cast %126 : vector<1x1x32xf32> to vector<1x32xf32>
    %128 = vector.broadcast %127 : vector<1x32xf32> to vector<17x32xf32>
    %129 = arith.addf %125, %128 : vector<17x32xf32>
    %c0_46 = arith.constant 0 : index
    %c0_47 = arith.constant 0 : index
    %c0_48 = arith.constant 0 : index
    %130 = vector.load %arg9[%c0_46, %c0_47, %c0_48] : memref<1x1x32xf32, #tpu.memory_space<vmem>>, vector<1x1x32xf32>
    %131 = vector.shape_cast %130 : vector<1x1x32xf32> to vector<1x32xf32>
    %c0_49 = arith.constant 0 : index
    %c0_50 = arith.constant 0 : index
    %c0_51 = arith.constant 0 : index
    %132 = vector.load %arg10[%c0_49, %c0_50, %c0_51] : memref<1x1x32xf32, #tpu.memory_space<vmem>>, vector<1x1x32xf32>
    %133 = vector.shape_cast %132 : vector<1x1x32xf32> to vector<1x32xf32>
    %cst_52 = arith.constant dense<0.000000e+00> : vector<17xf32>
    %134 = vector.multi_reduction <add>, %129, %cst_52 [1] : vector<17x32xf32> to vector<17xf32>
    %135 = vector.shape_cast %134 : vector<17xf32> to vector<17x1xf32>
    %cst_53 = arith.constant 3.200000e+01 : f32
    %136 = vector.broadcast %cst_53 : f32 to vector<17x1xf32>
    %137 = arith.divf %135, %136 : vector<17x1xf32>
    %138 = vector.broadcast %137 : vector<17x1xf32> to vector<17x32xf32>
    %139 = arith.subf %129, %138 : vector<17x32xf32>
    %140 = arith.mulf %139, %139 : vector<17x32xf32>
    %cst_54 = arith.constant dense<0.000000e+00> : vector<17xf32>
    %141 = vector.multi_reduction <add>, %140, %cst_54 [1] : vector<17x32xf32> to vector<17xf32>
    %142 = vector.shape_cast %141 : vector<17xf32> to vector<17x1xf32>
    %cst_55 = arith.constant 3.200000e+01 : f32
    %143 = vector.broadcast %cst_55 : f32 to vector<17x1xf32>
    %144 = arith.divf %142, %143 : vector<17x1xf32>
    %cst_56 = arith.constant 9.99999974E-6 : f32
    %145 = vector.broadcast %cst_56 : f32 to vector<17x1xf32>
    %146 = arith.addf %144, %145 : vector<17x1xf32>
    %147 = math.rsqrt %146 : vector<17x1xf32>
    %148 = vector.broadcast %147 : vector<17x1xf32> to vector<17x32xf32>
    %149 = arith.mulf %139, %148 : vector<17x32xf32>
    %150 = vector.broadcast %131 : vector<1x32xf32> to vector<17x32xf32>
    %151 = arith.mulf %149, %150 : vector<17x32xf32>
    %152 = vector.broadcast %133 : vector<1x32xf32> to vector<17x32xf32>
    %153 = arith.addf %151, %152 : vector<17x32xf32>
    %154 = arith.truncf %153 : vector<17x32xf32> to vector<17x32xbf16>
    %c0_57 = arith.constant 0 : index
    %c0_58 = arith.constant 0 : index
    %c0_59 = arith.constant 0 : index
    %155 = vector.load %arg11[%c0_57, %c0_58, %c0_59] : memref<1x32x128xbf16, #tpu.memory_space<vmem>>, vector<1x32x128xbf16>
    %156 = vector.shape_cast %155 : vector<1x32x128xbf16> to vector<32x128xbf16>
    %cst_60 = arith.constant dense<0.000000e+00> : vector<17x128xf32>
    %157 = tpu.matmul %154, %156, %cst_60 {dimension_numbers = #tpu.dot_dimension_numbers<[1], [0], [0], [1], [0, 0, 1, 1], [], []>} : vector<17x32xbf16>, vector<32x128xbf16>, vector<17x128xf32> -> vector<17x128xf32>
    %c0_61 = arith.constant 0 : index
    %c0_62 = arith.constant 0 : index
    %c0_63 = arith.constant 0 : index
    %158 = vector.load %arg12[%c0_61, %c0_62, %c0_63] : memref<1x1x128xf32, #tpu.memory_space<vmem>>, vector<1x1x128xf32>
    %159 = vector.shape_cast %158 : vector<1x1x128xf32> to vector<1x128xf32>
    %160 = vector.broadcast %159 : vector<1x128xf32> to vector<17x128xf32>
    %161 = arith.addf %157, %160 : vector<17x128xf32>
    %cst_64 = arith.constant 5.000000e-01 : f32
    %162 = vector.broadcast %cst_64 : f32 to vector<17x128xf32>
    %163 = arith.mulf %162, %161 : vector<17x128xf32>
    %cst_65 = arith.constant 4.471500e-02 : f32
    %164 = vector.broadcast %cst_65 : f32 to vector<17x128xf32>
    %165 = arith.mulf %164, %161 : vector<17x128xf32>
    %166 = arith.mulf %165, %161 : vector<17x128xf32>
    %167 = arith.mulf %166, %161 : vector<17x128xf32>
    %168 = arith.addf %161, %167 : vector<17x128xf32>
    %cst_66 = arith.constant 0.797884583 : f32
    %169 = vector.broadcast %cst_66 : f32 to vector<17x128xf32>
    %170 = arith.mulf %169, %168 : vector<17x128xf32>
    %171 = math.tanh %170 : vector<17x128xf32>
    %cst_67 = arith.constant 1.000000e+00 : f32
    %172 = vector.broadcast %cst_67 : f32 to vector<17x128xf32>
    %173 = arith.addf %172, %171 : vector<17x128xf32>
    %174 = arith.mulf %163, %173 : vector<17x128xf32>
    %175 = arith.truncf %174 : vector<17x128xf32> to vector<17x128xbf16>
    %c0_68 = arith.constant 0 : index
    %c0_69 = arith.constant 0 : index
    %c0_70 = arith.constant 0 : index
    %176 = vector.load %arg13[%c0_68, %c0_69, %c0_70] : memref<1x128x32xbf16, #tpu.memory_space<vmem>>, vector<1x128x32xbf16>
    %177 = vector.shape_cast %176 : vector<1x128x32xbf16> to vector<128x32xbf16>
    %cst_71 = arith.constant dense<0.000000e+00> : vector<17x32xf32>
    %178 = tpu.matmul %175, %177, %cst_71 {dimension_numbers = #tpu.dot_dimension_numbers<[1], [0], [0], [1], [0, 0, 1, 1], [], []>} : vector<17x128xbf16>, vector<128x32xbf16>, vector<17x32xf32> -> vector<17x32xf32>
    %179 = arith.addf %129, %178 : vector<17x32xf32>
    %c0_72 = arith.constant 0 : index
    %c0_73 = arith.constant 0 : index
    %c0_74 = arith.constant 0 : index
    %180 = vector.load %arg14[%c0_72, %c0_73, %c0_74] : memref<1x1x32xf32, #tpu.memory_space<vmem>>, vector<1x1x32xf32>
    %181 = vector.shape_cast %180 : vector<1x1x32xf32> to vector<1x32xf32>
    %182 = vector.broadcast %181 : vector<1x32xf32> to vector<17x32xf32>
    %183 = arith.addf %179, %182 : vector<17x32xf32>
    %c0_75 = arith.constant 0 : index
    %c0_76 = arith.constant 0 : index
    %184 = vector.load %arg16[%c0_75, %c0_76] : memref<17x32xf32, #tpu.memory_space<vmem>>, vector<17x32xf32>
    tpu.vector_store %arg16[%c0_75, %c0_76], %183 {strides = array<i32>} : memref<17x32xf32, #tpu.memory_space<vmem>>, vector<17x32xf32>,
    %c1_i32 = arith.constant 1 : i32
    %185 = arith.cmpi eq, %arg1, %c1_i32 : i32
    %186 = arith.extui %185 : i1 to i32
    %c0_i32_77 = arith.constant 0 : i32
    %187 = arith.cmpi ne, %186, %c0_i32_77 : i32
    scf.if %187 {
      %c0_78 = arith.constant 0 : index
      %c0_79 = arith.constant 0 : index
      %c0_80 = arith.constant 0 : index
      %188 = vector.load %arg15[%c0_78, %c0_79, %c0_80] : memref<1x17x32xf32, #tpu.memory_space<vmem>>, vector<1x17x32xf32>
      %189 = vector.shape_cast %188 : vector<1x17x32xf32> to vector<17x32xf32>
      %190 = vector.shape_cast %183 : vector<17x32xf32> to vector<1x17x32xf32>
      tpu.vector_store %arg15[%c0_78, %c0_79, %c0_80], %190 {strides = array<i32>} : memref<1x17x32xf32, #tpu.memory_space<vmem>>, vector<1x17x32xf32>,
    } else {
    }
    return
  }
  func.func @transform_0(%arg0: i32, %arg1: i32) -> (i32, i32, i32) {
    %c0_i32 = arith.constant 0 : i32
    %c0_i32_0 = arith.constant 0 : i32
    %c0_i32_1 = arith.constant 0 : i32
    return %arg0, %c0_i32, %c0_i32_0 : i32, i32, i32
  }
  func.func @transform_1(%arg0: i32, %arg1: i32) -> (i32, i32, i32) {
    %c0_i32 = arith.constant 0 : i32
    %c0_i32_0 = arith.constant 0 : i32
    %c0_i32_1 = arith.constant 0 : i32
    return %arg1, %c0_i32, %c0_i32_0 : i32, i32, i32
  }
  func.func @transform_2(%arg0: i32, %arg1: i32) -> (i32, i32, i32) {
    %c0_i32 = arith.constant 0 : i32
    %c0_i32_0 = arith.constant 0 : i32
    %c0_i32_1 = arith.constant 0 : i32
    return %arg1, %c0_i32, %c0_i32_0 : i32, i32, i32
  }
  func.func @transform_3(%arg0: i32, %arg1: i32) -> (i32, i32, i32) {
    %c0_i32 = arith.constant 0 : i32
    %c0_i32_0 = arith.constant 0 : i32
    %c0_i32_1 = arith.constant 0 : i32
    return %arg1, %c0_i32, %c0_i32_0 : i32, i32, i32
  }
  func.func @transform_4(%arg0: i32, %arg1: i32) -> (i32, i32, i32) {
    %c0_i32 = arith.constant 0 : i32
    %c0_i32_0 = arith.constant 0 : i32
    %c0_i32_1 = arith.constant 0 : i32
    return %arg1, %c0_i32, %c0_i32_0 : i32, i32, i32
  }
  func.func @transform_5(%arg0: i32, %arg1: i32) -> (i32, i32, i32) {
    %c0_i32 = arith.constant 0 : i32
    %c0_i32_0 = arith.constant 0 : i32
    %c0_i32_1 = arith.constant 0 : i32
    return %arg1, %c0_i32, %c0_i32_0 : i32, i32, i32
  }
  func.func @transform_6(%arg0: i32, %arg1: i32) -> (i32, i32, i32) {
    %c0_i32 = arith.constant 0 : i32
    %c0_i32_0 = arith.constant 0 : i32
    %c0_i32_1 = arith.constant 0 : i32
    return %arg1, %c0_i32, %c0_i32_0 : i32, i32, i32
  }
  func.func @transform_7(%arg0: i32, %arg1: i32) -> (i32, i32, i32) {
    %c0_i32 = arith.constant 0 : i32
    %c0_i32_0 = arith.constant 0 : i32
    %c0_i32_1 = arith.constant 0 : i32
    return %arg1, %c0_i32, %c0_i32_0 : i32, i32, i32
  }
  func.func @transform_8(%arg0: i32, %arg1: i32) -> (i32, i32, i32) {
    %c0_i32 = arith.constant 0 : i32
    %c0_i32_0 = arith.constant 0 : i32
    %c0_i32_1 = arith.constant 0 : i32
    return %arg1, %c0_i32, %c0_i32_0 : i32, i32, i32
  }
  func.func @transform_9(%arg0: i32, %arg1: i32) -> (i32, i32, i32) {
    %c0_i32 = arith.constant 0 : i32
    %c0_i32_0 = arith.constant 0 : i32
    %c0_i32_1 = arith.constant 0 : i32
    return %arg1, %c0_i32, %c0_i32_0 : i32, i32, i32
  }
  func.func @transform_10(%arg0: i32, %arg1: i32) -> (i32, i32, i32) {
    %c0_i32 = arith.constant 0 : i32
    %c0_i32_0 = arith.constant 0 : i32
    %c0_i32_1 = arith.constant 0 : i32
    return %arg1, %c0_i32, %c0_i32_0 : i32, i32, i32
  }
  func.func @transform_11(%arg0: i32, %arg1: i32) -> (i32, i32, i32) {
    %c0_i32 = arith.constant 0 : i32
    %c0_i32_0 = arith.constant 0 : i32
    %c0_i32_1 = arith.constant 0 : i32
    return %arg1, %c0_i32, %c0_i32_0 : i32, i32, i32
  }
  func.func @transform_12(%arg0: i32, %arg1: i32) -> (i32, i32, i32) {
    %c0_i32 = arith.constant 0 : i32
    %c0_i32_0 = arith.constant 0 : i32
    %c0_i32_1 = arith.constant 0 : i32
    return %arg1, %c0_i32, %c0_i32_0 : i32, i32, i32
  }
  func.func @transform_13(%arg0: i32, %arg1: i32) -> (i32, i32, i32) {
    %c0_i32 = arith.constant 0 : i32
    %c0_i32_0 = arith.constant 0 : i32
    %c0_i32_1 = arith.constant 0 : i32
    return %arg0, %c0_i32, %c0_i32_0 : i32, i32, i32
  }
}

module attributes {stable_mosaic.version = 11 : i64} {
  func.func @_tail_kernel(%arg0: i32, %arg1: memref<1x17x32xf32, #tpu.memory_space<vmem>>, %arg2: memref<1x32xf32, #tpu.memory_space<vmem>>, %arg3: memref<1x32xf32, #tpu.memory_space<vmem>>, %arg4: memref<32x10xbf16, #tpu.memory_space<vmem>>, %arg5: memref<1x10xf32, #tpu.memory_space<vmem>>, %arg6: memref<1x1x10xf32, #tpu.memory_space<vmem>>) attributes {dimension_semantics = [#tpu.dimension_semantics<parallel>], iteration_bounds = array<i64: 2>, scalar_prefetch = 0 : i64, scratch_operands = 0 : i64, tpu.core_type = #tpu.core_type<tc>, window_params = [{transform_indices = @transform_0, window_bounds = array<i64: 1, 17, 32>}, {pipeline_mode = #tpu.pipeline_mode<synchronous>, transform_indices = @transform_1, window_bounds = array<i64: 1, 32>}, {pipeline_mode = #tpu.pipeline_mode<synchronous>, transform_indices = @transform_2, window_bounds = array<i64: 1, 32>}, {pipeline_mode = #tpu.pipeline_mode<synchronous>, transform_indices = @transform_3, window_bounds = array<i64: 32, 10>}, {pipeline_mode = #tpu.pipeline_mode<synchronous>, transform_indices = @transform_4, window_bounds = array<i64: 1, 10>}, {transform_indices = @transform_5, window_bounds = array<i64: 1, 1, 10>}]} {
    %c0 = arith.constant 0 : index
    %c0_0 = arith.constant 0 : index
    %c0_1 = arith.constant 0 : index
    %0 = vector.load %arg1[%c0, %c0_0, %c0_1] : memref<1x17x32xf32, #tpu.memory_space<vmem>>, vector<1x17x32xf32>
    %1 = vector.shape_cast %0 : vector<1x17x32xf32> to vector<17x32xf32>
    %cst = arith.constant dense<0.000000e+00> : vector<32xf32>
    %2 = vector.multi_reduction <add>, %1, %cst [0] : vector<17x32xf32> to vector<32xf32>
    %3 = vector.shape_cast %2 : vector<32xf32> to vector<1x32xf32>
    %4 = vector.extract_strided_slice %1 {offsets = [0, 0], sizes = [1, 32], strides = [1, 1]} : vector<17x32xf32> to vector<1x32xf32>
    %5 = arith.subf %3, %4 : vector<1x32xf32>
    %cst_2 = arith.constant 6.250000e-02 : f32
    %6 = vector.broadcast %cst_2 : f32 to vector<1x32xf32>
    %7 = arith.mulf %5, %6 : vector<1x32xf32>
    %c0_3 = arith.constant 0 : index
    %c0_4 = arith.constant 0 : index
    %8 = vector.load %arg2[%c0_3, %c0_4] : memref<1x32xf32, #tpu.memory_space<vmem>>, vector<1x32xf32>
    %c0_5 = arith.constant 0 : index
    %c0_6 = arith.constant 0 : index
    %9 = vector.load %arg3[%c0_5, %c0_6] : memref<1x32xf32, #tpu.memory_space<vmem>>, vector<1x32xf32>
    %cst_7 = arith.constant dense<0.000000e+00> : vector<1xf32>
    %10 = vector.multi_reduction <add>, %7, %cst_7 [1] : vector<1x32xf32> to vector<1xf32>
    %11 = vector.shape_cast %10 : vector<1xf32> to vector<1x1xf32>
    %cst_8 = arith.constant 3.200000e+01 : f32
    %12 = vector.broadcast %cst_8 : f32 to vector<1x1xf32>
    %13 = arith.divf %11, %12 : vector<1x1xf32>
    %14 = vector.broadcast %13 : vector<1x1xf32> to vector<1x32xf32>
    %15 = arith.subf %7, %14 : vector<1x32xf32>
    %16 = arith.mulf %15, %15 : vector<1x32xf32>
    %cst_9 = arith.constant dense<0.000000e+00> : vector<1xf32>
    %17 = vector.multi_reduction <add>, %16, %cst_9 [1] : vector<1x32xf32> to vector<1xf32>
    %18 = vector.shape_cast %17 : vector<1xf32> to vector<1x1xf32>
    %cst_10 = arith.constant 3.200000e+01 : f32
    %19 = vector.broadcast %cst_10 : f32 to vector<1x1xf32>
    %20 = arith.divf %18, %19 : vector<1x1xf32>
    %cst_11 = arith.constant 9.99999974E-6 : f32
    %21 = vector.broadcast %cst_11 : f32 to vector<1x1xf32>
    %22 = arith.addf %20, %21 : vector<1x1xf32>
    %23 = math.rsqrt %22 : vector<1x1xf32>
    %24 = vector.broadcast %23 : vector<1x1xf32> to vector<1x32xf32>
    %25 = arith.mulf %15, %24 : vector<1x32xf32>
    %26 = arith.mulf %25, %8 : vector<1x32xf32>
    %27 = arith.addf %26, %9 : vector<1x32xf32>
    %28 = arith.truncf %27 : vector<1x32xf32> to vector<1x32xbf16>
    %c0_12 = arith.constant 0 : index
    %c0_13 = arith.constant 0 : index
    %29 = vector.load %arg4[%c0_12, %c0_13] : memref<32x10xbf16, #tpu.memory_space<vmem>>, vector<32x10xbf16>
    %cst_14 = arith.constant dense<0.000000e+00> : vector<1x10xf32>
    %30 = tpu.matmul %28, %29, %cst_14 {dimension_numbers = #tpu.dot_dimension_numbers<[1], [0], [0], [1], [0, 0, 1, 1], [], []>} : vector<1x32xbf16>, vector<32x10xbf16>, vector<1x10xf32> -> vector<1x10xf32>
    %c0_15 = arith.constant 0 : index
    %c0_16 = arith.constant 0 : index
    %31 = vector.load %arg5[%c0_15, %c0_16] : memref<1x10xf32, #tpu.memory_space<vmem>>, vector<1x10xf32>
    %32 = arith.addf %30, %31 : vector<1x10xf32>
    %c0_17 = arith.constant 0 : index
    %c0_18 = arith.constant 0 : index
    %c0_19 = arith.constant 0 : index
    %33 = vector.load %arg6[%c0_17, %c0_18, %c0_19] : memref<1x1x10xf32, #tpu.memory_space<vmem>>, vector<1x1x10xf32>
    %34 = vector.shape_cast %33 : vector<1x1x10xf32> to vector<1x10xf32>
    %35 = vector.shape_cast %32 : vector<1x10xf32> to vector<1x1x10xf32>
    tpu.vector_store %arg6[%c0_17, %c0_18, %c0_19], %35 {strides = array<i32>} : memref<1x1x10xf32, #tpu.memory_space<vmem>>, vector<1x1x10xf32>,
    return
  }
  func.func @transform_0(%arg0: i32) -> (i32, i32, i32) {
    %c0_i32 = arith.constant 0 : i32
    %c0_i32_0 = arith.constant 0 : i32
    %c0_i32_1 = arith.constant 0 : i32
    return %arg0, %c0_i32, %c0_i32_0 : i32, i32, i32
  }
  func.func @transform_1(%arg0: i32) -> (i32, i32) {
    %c0_i32 = arith.constant 0 : i32
    %c0_i32_0 = arith.constant 0 : i32
    %c0_i32_1 = arith.constant 0 : i32
    return %c0_i32, %c0_i32_0 : i32, i32
  }
  func.func @transform_2(%arg0: i32) -> (i32, i32) {
    %c0_i32 = arith.constant 0 : i32
    %c0_i32_0 = arith.constant 0 : i32
    %c0_i32_1 = arith.constant 0 : i32
    return %c0_i32, %c0_i32_0 : i32, i32
  }
  func.func @transform_3(%arg0: i32) -> (i32, i32) {
    %c0_i32 = arith.constant 0 : i32
    %c0_i32_0 = arith.constant 0 : i32
    %c0_i32_1 = arith.constant 0 : i32
    return %c0_i32, %c0_i32_0 : i32, i32
  }
  func.func @transform_4(%arg0: i32) -> (i32, i32) {
    %c0_i32 = arith.constant 0 : i32
    %c0_i32_0 = arith.constant 0 : i32
    %c0_i32_1 = arith.constant 0 : i32
    return %c0_i32, %c0_i32_0 : i32, i32
  }
  func.func @transform_5(%arg0: i32) -> (i32, i32, i32) {
    %c0_i32 = arith.constant 0 : i32
    %c0_i32_0 = arith.constant 0 : i32
    %c0_i32_1 = arith.constant 0 : i32
    return %arg0, %c0_i32, %c0_i32_0 : i32, i32, i32
  }
}

</mosaic_0001>

<llo_original>
// kernel: _lambda_.6
$region0: #{_lambda_.6}
  #allocation0 [shape = 'u32[]', space=smem, size = 0x4, offset = 0x4, fixed_abs, tag = 'smem constant byte address 0x4 - core index']
  #allocation1 [shape = 'u32[144,128]{1,0:T(1,128)}', space=vmem, size = 0x12000, scoped, tag = 'internal scratch']
  %s0 = inlined_call_operand.vmem [shape: f32[3,32], index: 0, kind: input, shape index: {}]
  %s1 = inlined_call_operand.vmem [shape: bf16[32,2048], index: 1, kind: input, shape index: {}]
  %s2 = inlined_call_operand.vmem [shape: f32[1,2048], index: 2, kind: input, shape index: {}]
  %s3 = inlined_call_operand.vmem [shape: f32[3,2048], index: 3, kind: output, shape index: {}]
  %s4 = sld [smem:[#allocation0]]
  $region68: #{_lambda_.6} parent=0
    _
  %s6 = ssub.s32 1, %s4
  %s7 = scalar_select 0, %s6, %s4
  $region1: #{_lambda_.6} parent=0
    #allocation2 [shape = 'u8[65536]{0}', space=vmem, size = 0x10000, scoped, tag = 'input window, operand 1']
    loop: start=0, step=1, limit=6
    $region2: #{_lambda_.6} parent=1 // loop_pre_header
      _
    $region3: #{_lambda_.6} parent=1 // loop_header
      %s9 = sphi 0, %s13
      %p10 = scmp.ge.s32.totalorder %s9, 6
      %s17 = sphi 0, %s17
      %s19 = sphi 0, %s17
      %s20 = sphi 0, %s19
      %s34 = sphi 0, %s20
      %s40 = sphi 0, %s42
      %s43 = sphi 0, %s40
      %s44 = sphi 0, %s43
      %s60 = sphi 0, %s44
      %s66 = sphi 0, %s68
      %s69 = sphi 0, %s66
      %s70 = sphi 0, %s69
      %s86 = sphi 0, %s70
      %s92 = sphi 0, %s94
      %s95 = sphi 0, %s92
      %s96 = sphi 0, %s95
      %s112 = sphi 0, %s96
    $region4: #{_lambda_.6} parent=1 // loop_header_branch
      %12 = sbr.rel (%p10) target = $region8
    $region5: #{_lambda_.6} parent=1 // loop_body
      %s14 = ssub.s32 %s9, 1
      %s15 = ssub.s32 %s9, 2
      %s16 = sadd.s32 %s9, 1
      %s18 = sadd.s32 %s17, 1
      %p21 = scmp.eq.s32.totalorder %s9, 3
      %p22 = scmp.ne.s32.totalorder %s17, %s19
      %p23 = scmp.eq.s32.totalorder %s9, 0
      %p24 = por %p22, %p23
      %p25 = scmp.ne.s32.totalorder %s17, %s19
      %p26 = scmp.eq.s32.totalorder %s14, 3
      %p27 = por %p25, %p26
      %p28 = scmp.ne.s32.totalorder %s19, %s20
      %p29 = scmp.eq.s32.totalorder %s14, 0
      %p30 = por %p28, %p29
      %p31 = scmp.ne.s32.totalorder %s19, %s20
      %p32 = scmp.eq.s32.totalorder %s15, 3
      %p33 = por %p31, %p32
      %p35 = scmp.ne.s32.totalorder %s20, %s34
      %p36 = scmp.eq.s32.totalorder %s15, 0
      %p37 = por %p35, %p36
      %s38 = ssub.s32 %s9, %s16
      %p39 = scmp.eq.s32.totalorder %s38, 0
      %s41 = sadd.s32 %s40, 1
      %s42 = scalar_select %p39, %s40, %s41
      %p45 = pneg %p39
      %p46 = scmp.eq.s32.totalorder %s9, 3
      %p47 = por %p45, %p46
      %p48 = scmp.ne.s32.totalorder %s40, %s43
      %p49 = scmp.eq.s32.totalorder %s9, 0
      %p50 = por %p48, %p49
      %p51 = scmp.ne.s32.totalorder %s40, %s43
      %p52 = scmp.eq.s32.totalorder %s14, 3
      %p53 = por %p51, %p52
      %p54 = scmp.ne.s32.totalorder %s43, %s44
      %p55 = scmp.eq.s32.totalorder %s14, 0
      %p56 = por %p54, %p55
      %p57 = scmp.ne.s32.totalorder %s43, %s44
      %p58 = scmp.eq.s32.totalorder %s15, 3
      %p59 = por %p57, %p58
      %p61 = scmp.ne.s32.totalorder %s44, %s60
      %p62 = scmp.eq.s32.totalorder %s15, 0
      %p63 = por %p61, %p62
      %s64 = ssub.s32 %s9, %s16
      %p65 = scmp.eq.s32.totalorder %s64, 0
      %s67 = sadd.s32 %s66, 1
      %s68 = scalar_select %p65, %s66, %s67
      %p71 = pneg %p65
      %p72 = scmp.eq.s32.totalorder %s9, 3
      %p73 = por %p71, %p72
      %p74 = scmp.ne.s32.totalorder %s66, %s69
      %p75 = scmp.eq.s32.totalorder %s9, 0
      %p76 = por %p74, %p75
      %p77 = scmp.ne.s32.totalorder %s66, %s69
      %p78 = scmp.eq.s32.totalorder %s14, 3
      %p79 = por %p77, %p78
      %p80 = scmp.ne.s32.totalorder %s69, %s70
      %p81 = scmp.eq.s32.totalorder %s14, 0
      %p82 = por %p80, %p81
      %p83 = scmp.ne.s32.totalorder %s69, %s70
      %p84 = scmp.eq.s32.totalorder %s15, 3
      %p85 = por %p83, %p84
      %p87 = scmp.ne.s32.totalorder %s70, %s86
      %p88 = scmp.eq.s32.totalorder %s15, 0
      %p89 = por %p87, %p88
      %s90 = ssub.s32 %s9, %s16
      %p91 = scmp.eq.s32.totalorder %s90, 0
      %s93 = sadd.s32 %s92, 1
      %s94 = scalar_select %p91, %s92, %s93
      %p97 = pneg %p91
      %p98 = scmp.eq.s32.totalorder %s9, 3
      %p99 = por %p97, %p98
      %p100 = scmp.ne.s32.totalorder %s92, %s95
      %p101 = scmp.eq.s32.totalorder %s9, 0
      %p102 = por %p100, %p101
      %p103 = scmp.ne.s32.totalorder %s92, %s95
      %p104 = scmp.eq.s32.totalorder %s14, 3
      %p105 = por %p103, %p104
      %p106 = scmp.ne.s32.totalorder %s95, %s96
      %p107 = scmp.eq.s32.totalorder %s14, 0
      %p108 = por %p106, %p107
      %p109 = scmp.ne.s32.totalorder %s95, %s96
      %p110 = scmp.eq.s32.totalorder %s15, 3
      %p111 = por %p109, %p110
      %p113 = scmp.ne.s32.totalorder %s96, %s112
      %p114 = scmp.eq.s32.totalorder %s15, 0
      %p115 = por %p113, %p114
      %p116 = scmp.le.s32.totalorder 1, %s9
      %p117 = scmp.lt.s32.totalorder %s9, 5
      %p118 = pnand %p116, %p117
      %p119 = pneg %p118
      // Predicated region
      $region9: #{_lambda_.6} parent=5 // pred_check
        _
      $region10: #{_lambda_.6} parent=5 // pred_check_branch
        %121 = sbr.rel (%p118) target = $region12
      $region11: #{_lambda_.6} parent=5 // pred_region
        %s122 = ssub.s32 %s9, 1
        // Predicated region
        $region13: #{_lambda_.6} parent=11 // pred_check
          %p123 = pneg %p30
        $region14: #{_lambda_.6} parent=11 // pred_check_branch
          %125 = sbr.rel (%p123) target = $region16
        $region15: #{_lambda_.6} parent=11 // pred_region
          _
        $region16: #{_lambda_.6} parent=11 // pred_fallthru
          _
      $region12: #{_lambda_.6} parent=5 // pred_fallthru
        _
      %p126 = scmp.lt.s32.totalorder %s9, 4
      // Predicated region
      $region17: #{_lambda_.6} parent=5 // pred_check
        %p127 = pneg %p126
      $region18: #{_lambda_.6} parent=5 // pred_check_branch
        %129 = sbr.rel (%p127) target = $region20
      $region19: #{_lambda_.6} parent=5 // pred_region
        // Predicated region
        $region21: #{_lambda_.6} parent=19 // pred_check
          %p130 = pneg %p50
        $region22: #{_lambda_.6} parent=19 // pred_check_branch
          %132 = sbr.rel (%p130) target = $region24
        $region23: #{_lambda_.6} parent=19 // pred_region
          %s133 = sand.u32 %s40, 1
          %s134 = sand.u32 %s40, 1
          %s135 = smul.addr %s134, 64
          %s136 = scalar_lea.vmem [#allocation2], %s135
          %s137 = smul.u32 4, %s9
          %s138 = smul.addr %s137, 4
          %s139 = scalar_lea.vmem %s1, %s138
          // Predicated region
          $region25: #{_lambda_.6} parent=23 // pred_check
            _
          $region26: #{_lambda_.6} parent=23 // pred_check_branch
            %141 = sbr.rel (0) target = $region28
          $region27: #{_lambda_.6} parent=23 // pred_region
            // Predicated region
            $region29: #{_lambda_.6} parent=27 // pred_check
              _
            $region30: #{_lambda_.6} parent=27 // pred_check_branch
              %143 = sbr.rel (0) target = $region32
            $region31: #{_lambda_.6} parent=27 // pred_region
              loop: start=0, step=1, limit=1
              $region33: #{_lambda_.6} parent=31 // loop_pre_header
                _
              $region34: #{_lambda_.6} parent=31 // loop_header
                %s145 = sphi 0, %s149
                %p146 = scmp.ge.s32.totalorder %s145, 1
                %s150 = sphi %s139, %s139
                %s151 = sphi %s136, %s136
              $region35: #{_lambda_.6} parent=31 // loop_header_branch
                %148 = sbr.rel (%p146) target = $region39
              $region36: #{_lambda_.6} parent=31 // loop_body
                %v152 = vld [vmem:[%s150] sm:$0xff]
                %153 = vst [vmem:[%s151] sm:$0xff] %v152
                %v154 = vld [vmem:[%s150 + $0x8] sm:$0xff]
                %155 = vst [vmem:[%s151 + $0x8] sm:$0xff] %v154
                %v156 = vld [vmem:[%s150 + $0x40] sm:$0xff]
                %157 = vst [vmem:[%s151 + $0x10] sm:$0xff] %v156
                %v158 = vld [vmem:[%s150 + $0x48] sm:$0xff]
                %159 = vst [vmem:[%s151 + $0x18] sm:$0xff] %v158
                %v160 = vld [vmem:[%s150 + $0x80] sm:$0xff]
                %161 = vst [vmem:[%s151 + $0x20] sm:$0xff] %v160
                %v162 = vld [vmem:[%s150 + $0x88] sm:$0xff]
                %163 = vst [vmem:[%s151 + $0x28] sm:$0xff] %v162
                %v164 = vld [vmem:[%s150 + $0xc0] sm:$0xff]
                %165 = vst [vmem:[%s151 + $0x30] sm:$0xff] %v164
                %v166 = vld [vmem:[%s150 + $0xc8] sm:$0xff]
                %167 = vst [vmem:[%s151 + $0x38] sm:$0xff] %v166
              $region37: #{_lambda_.6} parent=31 // loop_footer
                %s149 = sadd.s32 1, %s145
              $region38: #{_lambda_.6} parent=31 // loop_footer_branch
                %144 = sbr.rel target = $region34
              $region39: #{_lambda_.6} parent=31 // loop_exit
                _
            $region32: #{_lambda_.6} parent=27 // pred_fallthru
              _
            // Predicated region
            $region40: #{_lambda_.6} parent=27 // pred_check
              _
            $region41: #{_lambda_.6} parent=27 // pred_check_branch
              %169 = sbr.rel target = $region43
            $region42: #{_lambda_.6} parent=27 // pred_region
              _
            $region43: #{_lambda_.6} parent=27 // pred_fallthru
              _
          $region28: #{_lambda_.6} parent=23 // pred_fallthru
            _
          %170 = vnop
        $region24: #{_lambda_.6} parent=19 // pred_fallthru
          _
        // Predicated region
        $region44: #{_lambda_.6} parent=19 // pred_check
          %p171 = pneg %p76
        $region45: #{_lambda_.6} parent=19 // pred_check_branch
          %173 = sbr.rel (%p171) target = $region47
        $region46: #{_lambda_.6} parent=19 // pred_region
          %s174 = smul.u32 4, %s9
          %p175 = scmp.lt.s32.totalorder %s174, 15
          %s176 = scalar_select %p175, %s174, 15
          %s177 = scalar_lea.vmem %s2, %s176
          %s178 = smul.u32 4, %s9
        $region47: #{_lambda_.6} parent=19 // pred_fallthru
          _
      $region20: #{_lambda_.6} parent=5 // pred_fallthru
        _
      %p179 = scmp.le.s32.totalorder 1, %s9
      %p180 = scmp.lt.s32.totalorder %s9, 5
      %p181 = pnand %p179, %p180
      %p182 = pneg %p181
      // Predicated region
      $region48: #{_lambda_.6} parent=5 // pred_check
        _
      $region49: #{_lambda_.6} parent=5 // pred_check_branch
        %184 = sbr.rel (%p181) target = $region51
      $region50: #{_lambda_.6} parent=5 // pred_region
        %s185 = ssub.s32 %s9, 1
        %s186 = sand.u32 %s43, 1
        %s187 = sand.u32 %s43, 1
        %s188 = smul.addr %s187, 64
        %s189 = scalar_lea.vmem [#allocation2], %s188
        // Predicated region
        $region52: #{_lambda_.6} parent=50 // pred_check
          %p190 = pneg %p56
        $region53: #{_lambda_.6} parent=50 // pred_check_branch
          %192 = sbr.rel (%p190) target = $region55
        $region54: #{_lambda_.6} parent=50 // pred_region
          _
        $region55: #{_lambda_.6} parent=50 // pred_fallthru
          _
        %p193 = pneg %p30
        %p194 = pneg %p27
        %s195 = sand.u32 %s43, 1
        %s196 = sand.u32 %s43, 1
        %s197 = smul.addr %s196, 64
        %s198 = scalar_lea.vmem [#allocation2], %s197
        %p199 = pneg %p56
        %p200 = pneg %p53
        %s201 = smul.u32 4, %s14
        %p202 = scmp.lt.s32.totalorder %s201, 15
        %s203 = scalar_select %p202, %s201, 15
        %s204 = scalar_lea.vmem %s2, %s203
        %p205 = pneg %p82
        %p206 = pneg %p79
        %p207 = pneg %p108
        %p208 = pneg %p105
        %s209 = smul.u32 4, %s14
        %p210 = scmp.lt.s32.totalorder %s209, 15
        %s211 = scalar_select %p210, %s209, 15
        %s212 = smul.addr %s211, 4
        %s213 = scalar_lea.vmem %s3, %s212
        %s214 = smul.u32 4, %s14
        %s215 = smul.u32 4, %s14
        %p216 = scmp.lt.s32.totalorder %s215, 15
        %s217 = scalar_select %p216, %s215, 15
        %s218 = scalar_lea.vmem %s2, %s217
        %s219 = smul.u32 4, %s14
        %s220 = smul.u32 4, %s14
        %p221 = scmp.lt.s32.totalorder %s220, 15
        %s222 = scalar_select %p221, %s220, 15
        %s223 = smul.addr %s222, 4
        %s224 = scalar_lea.vmem %s3, %s223
        %s225 = smul.u32 4, %s14
        %v227 = vld [vmem:[%s0] sm:$0x7]
        %v228 = vpack.c.bf16 %v227, %v227
        %v229 = vld [vmem:[%s189] sm:$0xff]
        %v230 = vld [vmem:[%s189 + $0x8] sm:$0xff]
        %v231 = vld [vmem:[%s189 + $0x10] sm:$0xff]
        %v232 = vld [vmem:[%s189 + $0x18] sm:$0xff]
        %v233 = vld [vmem:[%s189 + $0x20] sm:$0xff]
        %v234 = vld [vmem:[%s189 + $0x28] sm:$0xff]
        %v235 = vld [vmem:[%s189 + $0x30] sm:$0xff]
        %v236 = vld [vmem:[%s189 + $0x38] sm:$0xff]
        %v237 = vld [vmem:[%s218] sm:$0xf]
        %v239 = vlaneseq
        %v240 = vshrl.u32 %v239, 7
        %v241 = vsub.s32 0, %v240
        %v242 = vrot.slane %v237, %v241
        %v243 = vlaneseq
        %v244 = vshrl.u32 %v243, 7
        %v245 = vsub.s32 1, %v244
        %v246 = vrot.slane %v237, %v245
        %v247 = vlaneseq
        %v248 = vshrl.u32 %v247, 7
        %v249 = vsub.s32 2, %v248
        %v250 = vrot.slane %v237, %v249
        %v251 = vlaneseq
        %v252 = vshrl.u32 %v251, 7
        %v253 = vsub.s32 3, %v252
        %v254 = vrot.slane %v237, %v253
        %v267 = vunpack.c.l.b16 %v229
        %v268 = vunpack.c.h.b16 %v229
        %v269 = vunpack.c.l.b16 %v230
        %v270 = vunpack.c.h.b16 %v230
        %v271 = vunpack.c.l.b16 %v231
        %v272 = vunpack.c.h.b16 %v231
        %v273 = vunpack.c.l.b16 %v232
        %v274 = vunpack.c.h.b16 %v232
        %v275 = vunpack.c.l.b16 %v233
        %v276 = vunpack.c.h.b16 %v233
        %v277 = vunpack.c.l.b16 %v234
        %v278 = vunpack.c.h.b16 %v234
        %v279 = vunpack.c.l.b16 %v235
        %v280 = vunpack.c.h.b16 %v235
        %v281 = vunpack.c.l.b16 %v236
        %v282 = vunpack.c.h.b16 %v236
        %v283 = vpack.c.b16 %v271, %v267
        %v284 = vpack.c.b16 %v272, %v268
        %v285 = vpack.c.b16 %v273, %v269
        %v286 = vpack.c.b16 %v274, %v270
        %v287 = vpack.c.b16 %v279, %v275
        %v288 = vpack.c.b16 %v280, %v276
        %v289 = vpack.c.b16 %v281, %v277
        %v290 = vpack.c.b16 %v282, %v278
        %vm299 = vcmask 261120
        %v301 = vsel %vm299, %v228, 0
        %303 = vmatprep.subr.bf16.mxu0 0
        %304 = vmatpush1.bf16.msra.mxu0 0
        %305 = vmatprep.subr.bf16.mxu0 0
        %306 = vmatpush1.bf16.msra.mxu0 0
        %307 = vmatprep.subr.bf16.mxu0 0
        %308 = vmatpush1.bf16.msra.mxu0 0
        %309 = vmatprep.subr.bf16.mxu0 0
        %310 = vmatpush1.bf16.msra.mxu0 0
        %311 = vmatprep.subr.bf16.mxu0 0
        %312 = vmatpush1.bf16.msra.mxu0 0
        %313 = vmatprep.subr.bf16.mxu0 0
        %314 = vmatpush1.bf16.msra.mxu0 0
        %315 = vmatprep.subr.bf16.mxu0 %v288
        %316 = vmatpush1.bf16.msra.mxu0 %v287
        %317 = vmatprep.subr.bf16.mxu0 %v284
        %318 = vmatpush1.bf16.msra.mxu0 %v283
        %319 = vmatprep.subr.bf16.mxu0 0
        %320 = vmatpush2.bf16.msra.mxu0 0
        %321 = vmatprep.subr.bf16.mxu0 0
        %322 = vmatpush2.bf16.msra.mxu0 0
        %323 = vmatprep.subr.bf16.mxu0 0
        %324 = vmatpush2.bf16.msra.mxu0 0
        %325 = vmatprep.subr.bf16.mxu0 0
        %326 = vmatpush2.bf16.msra.mxu0 0
        %327 = vmatprep.subr.bf16.mxu0 0
        %328 = vmatpush2.bf16.msra.mxu0 0
        %329 = vmatprep.subr.bf16.mxu0 0
        %330 = vmatpush2.bf16.msra.mxu0 0
        %331 = vmatprep.subr.bf16.mxu0 0
        %332 = vmatpush2.bf16.msra.mxu0 0
        %333 = vmatprep.subr.bf16.mxu0 0
        %334 = vmatpush2.bf16.msra.mxu0 0
        %335 = vmatprep.mubr.bf16.mxu0 0
        %336 = vmatmul.mubr.bf16.gmra.mxu0 %v301
        %v337 = vpop.f32.mrf.mxu0
        %v338 = vadd.f32 %v242, %v337
        %v339 = vpop.f32.mrf.mxu0
        %v340 = vadd.f32 %v246, %v339
        %v341 = vpop.f32.mrf.mxu0
        %v342 = vpop.f32.mrf.mxu0
        %343 = vdwg.mxu0
        %344 = vmatprep.subr.bf16.mxu0 0
        %345 = vmatpush1.bf16.msra.mxu0 0
        %346 = vmatprep.subr.bf16.mxu0 0
        %347 = vmatpush1.bf16.msra.mxu0 0
        %348 = vmatprep.subr.bf16.mxu0 0
        %349 = vmatpush1.bf16.msra.mxu0 0
        %350 = vmatprep.subr.bf16.mxu0 0
        %351 = vmatpush1.bf16.msra.mxu0 0
        %352 = vmatprep.subr.bf16.mxu0 0
        %353 = vmatpush1.bf16.msra.mxu0 0
        %354 = vmatprep.subr.bf16.mxu0 0
        %355 = vmatpush1.bf16.msra.mxu0 0
        %356 = vmatprep.subr.bf16.mxu0 %v290
        %357 = vmatpush1.bf16.msra.mxu0 %v289
        %358 = vmatprep.subr.bf16.mxu0 %v286
        %359 = vmatpush1.bf16.msra.mxu0 %v285
        %360 = vmatprep.subr.bf16.mxu0 0
        %361 = vmatpush2.bf16.msra.mxu0 0
        %362 = vmatprep.subr.bf16.mxu0 0
        %363 = vmatpush2.bf16.msra.mxu0 0
        %364 = vmatprep.subr.bf16.mxu0 0
        %365 = vmatpush2.bf16.msra.mxu0 0
        %366 = vmatprep.subr.bf16.mxu0 0
        %367 = vmatpush2.bf16.msra.mxu0 0
        %368 = vmatprep.subr.bf16.mxu0 0
        %369 = vmatpush2.bf16.msra.mxu0 0
        %370 = vmatprep.subr.bf16.mxu0 0
        %371 = vmatpush2.bf16.msra.mxu0 0
        %372 = vmatprep.subr.bf16.mxu0 0
        %373 = vmatpush2.bf16.msra.mxu0 0
        %374 = vmatprep.subr.bf16.mxu0 0
        %375 = vmatpush2.bf16.msra.mxu0 0
        %376 = vmatprep.mubr.bf16.mxu0 0
        %377 = vmatmul.mubr.bf16.gmra.mxu0 %v301
        %v378 = vpop.f32.mrf.mxu0
        %v379 = vadd.f32 %v250, %v378
        %v380 = vpop.f32.mrf.mxu0
        %v381 = vadd.f32 %v254, %v380
        %v382 = vpop.f32.mrf.mxu0
        %v383 = vpop.f32.mrf.mxu0
        %384 = vdwg.mxu0
        %v385 = vmul.f32 %v338, 0.01
        %v386 = vmul.f32 %v340, 0.01
        %v387 = vmul.f32 %v379, 0.01
        %v388 = vmul.f32 %v381, 0.01
        %v393 = vcombine.low %v385, %v386
        %v394 = vcombine.low %v387, %v388
        %397 = vst [vmem:[%s224] sm:$0x77] %v393
        %398 = vst [vmem:[%s224 + $0x8] sm:$0x77] %v394
        %s399 = smul.u32 4, %s14
        %p400 = scmp.lt.s32.totalorder %s399, 15
        %s401 = scalar_select %p400, %s399, 15
        %s402 = smul.addr %s401, 4
        %s403 = scalar_lea.vmem %s3, %s402
        // Predicated region
        $region56: #{_lambda_.6} parent=50 // pred_check
          %p404 = pneg %p105
        $region57: #{_lambda_.6} parent=50 // pred_check_branch
          %406 = sbr.rel (%p404) target = $region59
        $region58: #{_lambda_.6} parent=50 // pred_region
          %s407 = smul.u32 4, %s14
        $region59: #{_lambda_.6} parent=50 // pred_fallthru
          _
      $region51: #{_lambda_.6} parent=5 // pred_fallthru
        _
      %p408 = scmp.le.s32.totalorder 2, %s9
      // Predicated region
      $region60: #{_lambda_.6} parent=5 // pred_check
        %p409 = pneg %p408
      $region61: #{_lambda_.6} parent=5 // pred_check_branch
        %411 = sbr.rel (%p409) target = $region63
      $region62: #{_lambda_.6} parent=5 // pred_region
        %s412 = ssub.s32 %s9, 2
        // Predicated region
        $region64: #{_lambda_.6} parent=62 // pred_check
          %p413 = pneg %p111
        $region65: #{_lambda_.6} parent=62 // pred_check_branch
          %415 = sbr.rel (%p413) target = $region67
        $region66: #{_lambda_.6} parent=62 // pred_region
          %s416 = smul.u32 4, %s15
          %p417 = scmp.lt.s32.totalorder %s416, 15
          %s418 = scalar_select %p417, %s416, 15
          %s419 = smul.addr %s418, 4
          %s420 = scalar_lea.vmem %s3, %s419
        $region67: #{_lambda_.6} parent=62 // pred_fallthru
          _
      $region63: #{_lambda_.6} parent=5 // pred_fallthru
        _
    $region6: #{_lambda_.6} parent=1 // loop_footer
      %s13 = sadd.s32 1, %s9
    $region7: #{_lambda_.6} parent=1 // loop_footer_branch
      %8 = sbr.rel target = $region3
    $region8: #{_lambda_.6} parent=1 // loop_exit
      _

// kernel: _lambda_.5
$region0: #{_lambda_.5}
  #allocation0 [shape = 'u32[]', space=smem, size = 0x4, offset = 0x4, fixed_abs, tag = 'smem constant byte address 0x4 - core index']
  #allocation1 [shape = 'u32[144,128]{1,0:T(1,128)}', space=vmem, size = 0x12000, scoped, tag = 'internal scratch']
  %s0 = inlined_call_operand.vmem [shape: f32[3,32], index: 0, kind: input, shape index: {}]
  %s1 = inlined_call_operand.vmem [shape: bf16[32,32], index: 1, kind: input, shape index: {}]
  %s2 = inlined_call_operand.vmem [shape: f32[1,32], index: 2, kind: input, shape index: {}]
  %s3 = inlined_call_operand.vmem [shape: bf16[32,32], index: 3, kind: input, shape index: {}]
  %s4 = inlined_call_operand.vmem [shape: f32[1,32], index: 4, kind: input, shape index: {}]
  %s5 = inlined_call_operand.vmem [shape: f32[8,32], index: 5, kind: input, shape index: {}]
  %s6 = inlined_call_operand.vmem [shape: f32[1,32], index: 6, kind: input, shape index: {}]
  %s7 = inlined_call_operand.vmem [shape: bf16[32,96], index: 7, kind: input, shape index: {}]
  %s8 = inlined_call_operand.vmem [shape: f32[1,96], index: 8, kind: input, shape index: {}]
  %s9 = inlined_call_operand.vmem [shape: bf16[32,32], index: 9, kind: input, shape index: {}]
  %s10 = inlined_call_operand.vmem [shape: f32[1,32], index: 10, kind: input, shape index: {}]
  %s11 = inlined_call_operand.vmem [shape: f32[1,32], index: 11, kind: input, shape index: {}]
  %s12 = inlined_call_operand.vmem [shape: f32[1,32], index: 12, kind: input, shape index: {}]
  %s13 = inlined_call_operand.vmem [shape: bf16[32,64], index: 13, kind: input, shape index: {}]
  %s14 = inlined_call_operand.vmem [shape: f32[1,64], index: 14, kind: input, shape index: {}]
  %s15 = inlined_call_operand.vmem [shape: bf16[64,32], index: 15, kind: input, shape index: {}]
  %s16 = inlined_call_operand.vmem [shape: f32[1,32], index: 16, kind: input, shape index: {}]
  %s17 = inlined_call_operand.vmem [shape: f32[1,32], index: 17, kind: input, shape index: {}]
  %s18 = inlined_call_operand.vmem [shape: f32[1,32], index: 18, kind: input, shape index: {}]
  %s19 = inlined_call_operand.vmem [shape: bf16[32,32], index: 19, kind: input, shape index: {}]
  %s20 = inlined_call_operand.vmem [shape: f32[1,32], index: 20, kind: input, shape index: {}]
  %s21 = inlined_call_operand.vmem [shape: f32[3,32], index: 21, kind: output, shape index: {0}]
  %s22 = inlined_call_operand.vmem [shape: f32[1,32], index: 22, kind: output, shape index: {1}]
  %23 = xla_tuple %s21, %s22
  %s24 = sld [smem:[#allocation0]]
  $region102: #{_lambda_.5} parent=0
    _
  %s26 = ssub.s32 1, %s24
  %s27 = scalar_select 0, %s26, %s24
  // Predicated region
  $region2: #{_lambda_.5} parent=0 // pred_check
    _
  $region3: #{_lambda_.5} parent=0 // pred_check_branch
    %29 = sbr.rel (0) target = $region5
  $region4: #{_lambda_.5} parent=0 // pred_region
    _
  $region5: #{_lambda_.5} parent=0 // pred_fallthru
    _
  // Predicated region
  $region6: #{_lambda_.5} parent=0 // pred_check
    _
  $region7: #{_lambda_.5} parent=0 // pred_check_branch
    %31 = sbr.rel (0) target = $region9
  $region8: #{_lambda_.5} parent=0 // pred_region
    _
  $region9: #{_lambda_.5} parent=0 // pred_fallthru
    _
  // Predicated region
  $region10: #{_lambda_.5} parent=0 // pred_check
    _
  $region11: #{_lambda_.5} parent=0 // pred_check_branch
    %33 = sbr.rel (0) target = $region13
  $region12: #{_lambda_.5} parent=0 // pred_region
    _
  $region13: #{_lambda_.5} parent=0 // pred_fallthru
    _
  // Predicated region
  $region14: #{_lambda_.5} parent=0 // pred_check
    _
  $region15: #{_lambda_.5} parent=0 // pred_check_branch
    %35 = sbr.rel (0) target = $region17
  $region16: #{_lambda_.5} parent=0 // pred_region
    _
  $region17: #{_lambda_.5} parent=0 // pred_fallthru
    _
  // Predicated region
  $region18: #{_lambda_.5} parent=0 // pred_check
    _
  $region19: #{_lambda_.5} parent=0 // pred_check_branch
    %37 = sbr.rel (0) target = $region21
  $region20: #{_lambda_.5} parent=0 // pred_region
    _
  $region21: #{_lambda_.5} parent=0 // pred_fallthru
    _
  // Predicated region
  $region22: #{_lambda_.5} parent=0 // pred_check
    _
  $region23: #{_lambda_.5} parent=0 // pred_check_branch
    %39 = sbr.rel (0) target = $region25
  $region24: #{_lambda_.5} parent=0 // pred_region
    _
  $region25: #{_lambda_.5} parent=0 // pred_fallthru
    _
  // Predicated region
  $region26: #{_lambda_.5} parent=0 // pred_check
    _
  $region27: #{_lambda_.5} parent=0 // pred_check_branch
    %41 = sbr.rel (0) target = $region29
  $region28: #{_lambda_.5} parent=0 // pred_region
    _
  $region29: #{_lambda_.5} parent=0 // pred_fallthru
    _
  // Predicated region
  $region30: #{_lambda_.5} parent=0 // pred_check
    _
  $region31: #{_lambda_.5} parent=0 // pred_check_branch
    %43 = sbr.rel (0) target = $region33
  $region32: #{_lambda_.5} parent=0 // pred_region
    _
  $region33: #{_lambda_.5} parent=0 // pred_fallthru
    _
  // Predicated region
  $region34: #{_lambda_.5} parent=0 // pred_check
    _
  $region35: #{_lambda_.5} parent=0 // pred_check_branch
    %45 = sbr.rel (0) target = $region37
  $region36: #{_lambda_.5} parent=0 // pred_region
    _
  $region37: #{_lambda_.5} parent=0 // pred_fallthru
    _
  // Predicated region
  $region38: #{_lambda_.5} parent=0 // pred_check
    _
  $region39: #{_lambda_.5} parent=0 // pred_check_branch
    %47 = sbr.rel (0) target = $region41
  $region40: #{_lambda_.5} parent=0 // pred_region
    _
  $region41: #{_lambda_.5} parent=0 // pred_fallthru
    _
  // Predicated region
  $region42: #{_lambda_.5} parent=0 // pred_check
    _
  $region43: #{_lambda_.5} parent=0 // pred_check_branch
    %49 = sbr.rel (0) target = $region45
  $region44: #{_lambda_.5} parent=0 // pred_region
    _
  $region45: #{_lambda_.5} parent=0 // pred_fallthru
    _
  // Predicated region
  $region46: #{_lambda_.5} parent=0 // pred_check
    _
  $region47: #{_lambda_.5} parent=0 // pred_check_branch
    %51 = sbr.rel (0) target = $region49
  $region48: #{_lambda_.5} parent=0 // pred_region
    _
  $region49: #{_lambda_.5} parent=0 // pred_fallthru
    _
  // Predicated region
  $region50: #{_lambda_.5} parent=0 // pred_check
    _
  $region51: #{_lambda_.5} parent=0 // pred_check_branch
    %53 = sbr.rel (0) target = $region53
  $region52: #{_lambda_.5} parent=0 // pred_region
    _
  $region53: #{_lambda_.5} parent=0 // pred_fallthru
    _
  // Predicated region
  $region54: #{_lambda_.5} parent=0 // pred_check
    _
  $region55: #{_lambda_.5} parent=0 // pred_check_branch
    %55 = sbr.rel (0) target = $region57
  $region56: #{_lambda_.5} parent=0 // pred_region
    _
  $region57: #{_lambda_.5} parent=0 // pred_fallthru
    _
  // Predicated region
  $region58: #{_lambda_.5} parent=0 // pred_check
    _
  $region59: #{_lambda_.5} parent=0 // pred_check_branch
    %57 = sbr.rel (0) target = $region61
  $region60: #{_lambda_.5} parent=0 // pred_region
    _
  $region61: #{_lambda_.5} parent=0 // pred_fallthru
    _
  // Predicated region
  $region62: #{_lambda_.5} parent=0 // pred_check
    _
  $region63: #{_lambda_.5} parent=0 // pred_check_branch
    %59 = sbr.rel (0) target = $region65
  $region64: #{_lambda_.5} parent=0 // pred_region
    _
  $region65: #{_lambda_.5} parent=0 // pred_fallthru
    _
  // Predicated region
  $region66: #{_lambda_.5} parent=0 // pred_check
    _
  $region67: #{_lambda_.5} parent=0 // pred_check_branch
    %61 = sbr.rel (0) target = $region69
  $region68: #{_lambda_.5} parent=0 // pred_region
    _
  $region69: #{_lambda_.5} parent=0 // pred_fallthru
    _
  // Predicated region
  $region70: #{_lambda_.5} parent=0 // pred_check
    _
  $region71: #{_lambda_.5} parent=0 // pred_check_branch
    %63 = sbr.rel (0) target = $region73
  $region72: #{_lambda_.5} parent=0 // pred_region
    _
  $region73: #{_lambda_.5} parent=0 // pred_fallthru
    _
  // Predicated region
  $region74: #{_lambda_.5} parent=0 // pred_check
    _
  $region75: #{_lambda_.5} parent=0 // pred_check_branch
    %65 = sbr.rel (0) target = $region77
  $region76: #{_lambda_.5} parent=0 // pred_region
    _
  $region77: #{_lambda_.5} parent=0 // pred_fallthru
    _
  // Predicated region
  $region78: #{_lambda_.5} parent=0 // pred_check
    _
  $region79: #{_lambda_.5} parent=0 // pred_check_branch
    %67 = sbr.rel (0) target = $region81
  $region80: #{_lambda_.5} parent=0 // pred_region
    _
  $region81: #{_lambda_.5} parent=0 // pred_fallthru
    _
  // Predicated region
  $region82: #{_lambda_.5} parent=0 // pred_check
    _
  $region83: #{_lambda_.5} parent=0 // pred_check_branch
    %69 = sbr.rel (0) target = $region85
  $region84: #{_lambda_.5} parent=0 // pred_region
    _
  $region85: #{_lambda_.5} parent=0 // pred_fallthru
    _
  %v71 = vld [vmem:[%s0] sm:$0x7]
  %v72 = vpack.c.bf16 %v71, %v71
  %v73 = vld [vmem:[%s1] sm:$0xf]
  %v74 = vld [vmem:[%s1 + $0x4] sm:$0xf]
  %v75 = vld [vmem:[%s1 + $0x8] sm:$0xf]
  %v76 = vld [vmem:[%s1 + $0xc] sm:$0xf]
  %v77 = vld [vmem:[%s2] sm:$0x1]
  %v79 = vlaneseq
  %v80 = vshrl.u32 %v79, 7
  %v81 = vsub.s32 0, %v80
  %v82 = vrot.slane %v77, %v81
  %v88 = vunpack.c.l.b16 %v73
  %v89 = vunpack.c.l.b16 %v74
  %v90 = vunpack.c.l.b16 %v75
  %v91 = vunpack.c.l.b16 %v76
  %v92 = vpack.c.b16 %v89, %v88
  %v93 = vpack.c.b16 %v91, %v90
  %vm96 = vcmask 261120
  %v98 = vsel %vm96, %v72, 0
  %100 = vmatprep.subr.bf16.mxu0 0
  %101 = vmatpush1.bf16.msra.mxu0 0
  %102 = vmatprep.subr.bf16.mxu0 0
  %103 = vmatpush1.bf16.msra.mxu0 0
  %104 = vmatprep.subr.bf16.mxu0 0
  %105 = vmatpush1.bf16.msra.mxu0 0
  %106 = vmatprep.subr.bf16.mxu0 0
  %107 = vmatpush1.bf16.msra.mxu0 0
  %108 = vmatprep.subr.bf16.mxu0 0
  %109 = vmatpush1.bf16.msra.mxu0 0
  %110 = vmatprep.subr.bf16.mxu0 0
  %111 = vmatpush1.bf16.msra.mxu0 0
  %112 = vmatprep.subr.bf16.mxu0 0
  %113 = vmatpush1.bf16.msra.mxu0 %v93
  %114 = vmatprep.subr.bf16.mxu0 0
  %115 = vmatpush1.bf16.msra.mxu0 %v92
  %116 = vmatprep.subr.bf16.mxu0 0
  %117 = vmatpush2.bf16.msra.mxu0 0
  %118 = vmatprep.subr.bf16.mxu0 0
  %119 = vmatpush2.bf16.msra.mxu0 0
  %120 = vmatprep.subr.bf16.mxu0 0
  %121 = vmatpush2.bf16.msra.mxu0 0
  %122 = vmatprep.subr.bf16.mxu0 0
  %123 = vmatpush2.bf16.msra.mxu0 0
  %124 = vmatprep.subr.bf16.mxu0 0
  %125 = vmatpush2.bf16.msra.mxu0 0
  %126 = vmatprep.subr.bf16.mxu0 0
  %127 = vmatpush2.bf16.msra.mxu0 0
  %128 = vmatprep.subr.bf16.mxu0 0
  %129 = vmatpush2.bf16.msra.mxu0 0
  %130 = vmatprep.subr.bf16.mxu0 0
  %131 = vmatpush2.bf16.msra.mxu0 0
  %132 = vmatprep.mubr.bf16.mxu0 0
  %133 = vmatmul.mubr.bf16.gmra.mxu0 %v98
  %v134 = vpop.f32.mrf.mxu0
  %v135 = vadd.f32 %v82, %v134
  %v136 = vpop.f32.mrf.mxu0
  %v137 = vpop.f32.mrf.mxu0
  %v138 = vpop.f32.mrf.mxu0
  %139 = vdwg.mxu0
  %v140 = vmax.f32 %v135, 0.0
  %v141 = vpack.c.bf16 %v140, %v140
  %v142 = vld [vmem:[%s3] sm:$0xf]
  %v143 = vld [vmem:[%s3 + $0x4] sm:$0xf]
  %v144 = vld [vmem:[%s3 + $0x8] sm:$0xf]
  %v145 = vld [vmem:[%s3 + $0xc] sm:$0xf]
  %v146 = vld [vmem:[%s4] sm:$0x1]
  %v148 = vlaneseq
  %v149 = vshrl.u32 %v148, 7
  %v150 = vsub.s32 0, %v149
  %v151 = vrot.slane %v146, %v150
  %v157 = vunpack.c.l.b16 %v142
  %v158 = vunpack.c.l.b16 %v143
  %v159 = vunpack.c.l.b16 %v144
  %v160 = vunpack.c.l.b16 %v145
  %v161 = vpack.c.b16 %v158, %v157
  %v162 = vpack.c.b16 %v160, %v159
  %v166 = vsel %vm96, %v141, 0
  %168 = vmatprep.subr.bf16.mxu0 0
  %169 = vmatpush1.bf16.msra.mxu0 0
  %170 = vmatprep.subr.bf16.mxu0 0
  %171 = vmatpush1.bf16.msra.mxu0 0
  %172 = vmatprep.subr.bf16.mxu0 0
  %173 = vmatpush1.bf16.msra.mxu0 0
  %174 = vmatprep.subr.bf16.mxu0 0
  %175 = vmatpush1.bf16.msra.mxu0 0
  %176 = vmatprep.subr.bf16.mxu0 0
  %177 = vmatpush1.bf16.msra.mxu0 0
  %178 = vmatprep.subr.bf16.mxu0 0
  %179 = vmatpush1.bf16.msra.mxu0 0
  %180 = vmatprep.subr.bf16.mxu0 0
  %181 = vmatpush1.bf16.msra.mxu0 %v162
  %182 = vmatprep.subr.bf16.mxu0 0
  %183 = vmatpush1.bf16.msra.mxu0 %v161
  %184 = vmatprep.subr.bf16.mxu0 0
  %185 = vmatpush2.bf16.msra.mxu0 0
  %186 = vmatprep.subr.bf16.mxu0 0
  %187 = vmatpush2.bf16.msra.mxu0 0
  %188 = vmatprep.subr.bf16.mxu0 0
  %189 = vmatpush2.bf16.msra.mxu0 0
  %190 = vmatprep.subr.bf16.mxu0 0
  %191 = vmatpush2.bf16.msra.mxu0 0
  %192 = vmatprep.subr.bf16.mxu0 0
  %193 = vmatpush2.bf16.msra.mxu0 0
  %194 = vmatprep.subr.bf16.mxu0 0
  %195 = vmatpush2.bf16.msra.mxu0 0
  %196 = vmatprep.subr.bf16.mxu0 0
  %197 = vmatpush2.bf16.msra.mxu0 0
  %198 = vmatprep.subr.bf16.mxu0 0
  %199 = vmatpush2.bf16.msra.mxu0 0
  %200 = vmatprep.mubr.bf16.mxu0 0
  %201 = vmatmul.mubr.bf16.gmra.mxu0 %v166
  %v202 = vpop.f32.mrf.mxu0
  %v203 = vadd.f32 %v151, %v202
  %v204 = vpop.f32.mrf.mxu0
  %v205 = vpop.f32.mrf.mxu0
  %v206 = vpop.f32.mrf.mxu0
  %207 = vdwg.mxu0
  %v208 = vmax.f32 %v203, 0.0
  %v209 = vadd.f32 %v71, %v208
  %v210 = vld [vmem:[%s5] sm:$0xff]
  %v211 = vld [vmem:[%s6] sm:$0x1]
  %v213 = vlaneseq
  %v214 = vshrl.u32 %v213, 7
  %v215 = vsub.s32 0, %v214
  %v216 = vrot.slane %v211, %v215
  %vm218 = vcmask 1042432
  %v219 = vsel %vm218, %v209, %v216
  %v220 = vpack.c.bf16 %v219, %v210
  %v221 = vld [vmem:[%s7] sm:$0xf]
  %v222 = vld [vmem:[%s7 + $0x4] sm:$0xf]
  %v223 = vld [vmem:[%s7 + $0x8] sm:$0xf]
  %v224 = vld [vmem:[%s7 + $0xc] sm:$0xf]
  %v225 = vld [vmem:[%s8] sm:$0x1]
  %v227 = vlaneseq
  %v228 = vshrl.u32 %v227, 7
  %v229 = vsub.s32 0, %v228
  %v230 = vrot.slane %v225, %v229
  %v236 = vunpack.c.l.b16 %v221
  %v237 = vunpack.c.l.b16 %v222
  %v238 = vunpack.c.l.b16 %v223
  %v239 = vunpack.c.l.b16 %v224
  %v240 = vpack.c.b16 %v237, %v236
  %v241 = vpack.c.b16 %v239, %v238
  %v245 = vsel %vm96, %v220, 0
  %247 = vmatprep.subr.bf16.mxu0 0
  %248 = vmatpush1.bf16.msra.mxu0 0
  %249 = vmatprep.subr.bf16.mxu0 0
  %250 = vmatpush1.bf16.msra.mxu0 0
  %251 = vmatprep.subr.bf16.mxu0 0
  %252 = vmatpush1.bf16.msra.mxu0 0
  %253 = vmatprep.subr.bf16.mxu0 0
  %254 = vmatpush1.bf16.msra.mxu0 0
  %255 = vmatprep.subr.bf16.mxu0 0
  %256 = vmatpush1.bf16.msra.mxu0 0
  %257 = vmatprep.subr.bf16.mxu0 0
  %258 = vmatpush1.bf16.msra.mxu0 0
  %259 = vmatprep.subr.bf16.mxu0 0
  %260 = vmatpush1.bf16.msra.mxu0 %v241
  %261 = vmatprep.subr.bf16.mxu0 0
  %262 = vmatpush1.bf16.msra.mxu0 %v240
  %263 = vmatprep.subr.bf16.mxu0 0
  %264 = vmatpush2.bf16.msra.mxu0 0
  %265 = vmatprep.subr.bf16.mxu0 0
  %266 = vmatpush2.bf16.msra.mxu0 0
  %267 = vmatprep.subr.bf16.mxu0 0
  %268 = vmatpush2.bf16.msra.mxu0 0
  %269 = vmatprep.subr.bf16.mxu0 0
  %270 = vmatpush2.bf16.msra.mxu0 0
  %271 = vmatprep.subr.bf16.mxu0 0
  %272 = vmatpush2.bf16.msra.mxu0 0
  %273 = vmatprep.subr.bf16.mxu0 0
  %274 = vmatpush2.bf16.msra.mxu0 0
  %275 = vmatprep.subr.bf16.mxu0 0
  %276 = vmatpush2.bf16.msra.mxu0 0
  %277 = vmatprep.subr.bf16.mxu0 0
  %278 = vmatpush2.bf16.msra.mxu0 0
  %279 = vmatprep.mubr.bf16.mxu0 0
  %280 = vmatmul.mubr.bf16.gmra.mxu0 %v245
  %v281 = vpop.f32.mrf.mxu0
  %v282 = vadd.f32 %v230, %v281
  %v283 = vpop.f32.mrf.mxu0
  %v284 = vpop.f32.mrf.mxu0
  %v285 = vadd.f32 %v230, %v284
  %v286 = vpop.f32.mrf.mxu0
  %287 = vdwg.mxu0
  %v288 = vmul.f32 %v282, 0.35355338
  %v289 = vmul.f32 %v285, 0.35355338
  %v290 = vpack.c.bf16 %v289, %v288
  %v291 = vpack.c.bf16 %v285, %v282
  %293 = vrot.lane.b32.xlu0 %v291, 96
  %v294 = vpop.permute.xlu0 %293
  %vm295 = vcmask 64512
  %v297 = vsel %vm295, %v290, 0
  %v300 = vsel %vm295, %v294, 0
  %302 = vmatprep.subr.bf16.mxu0 0
  %303 = vmatpush1.bf16.xpose.msra.mxu0 0
  %304 = vmatprep.subr.bf16.mxu0 0
  %305 = vmatpush1.bf16.xpose.msra.mxu0 0
  %306 = vmatprep.subr.bf16.mxu0 0
  %307 = vmatpush1.bf16.xpose.msra.mxu0 0
  %308 = vmatprep.subr.bf16.mxu0 0
  %309 = vmatpush1.bf16.xpose.msra.mxu0 0
  %310 = vmatprep.subr.bf16.mxu0 0
  %311 = vmatpush1.bf16.xpose.msra.mxu0 0
  %312 = vmatprep.subr.bf16.mxu0 0
  %313 = vmatpush1.bf16.xpose.msra.mxu0 0
  %314 = vmatprep.subr.bf16.mxu0 0
  %315 = vmatpush1.bf16.xpose.msra.mxu0 0
  %316 = vmatprep.subr.bf16.mxu0 0
  %317 = vmatpush1.bf16.xpose.msra.mxu0 %v300
  %318 = vmatprep.subr.bf16.mxu0 0
  %319 = vmatpush2.bf16.xpose.msra.mxu0 0
  %320 = vmatprep.subr.bf16.mxu0 0
  %321 = vmatpush2.bf16.xpose.msra.mxu0 0
  %322 = vmatprep.subr.bf16.mxu0 0
  %323 = vmatpush2.bf16.xpose.msra.mxu0 0
  %324 = vmatprep.subr.bf16.mxu0 0
  %325 = vmatpush2.bf16.xpose.msra.mxu0 0
  %326 = vmatprep.subr.bf16.mxu0 0
  %327 = vmatpush2.bf16.xpose.msra.mxu0 0
  %328 = vmatprep.subr.bf16.mxu0 0
  %329 = vmatpush2.bf16.xpose.msra.mxu0 0
  %330 = vmatprep.subr.bf16.mxu0 0
  %331 = vmatpush2.bf16.xpose.msra.mxu0 0
  %332 = vmatprep.subr.bf16.mxu0 0
  %333 = vmatpush2.bf16.xpose.msra.mxu0 0
  %334 = vmatprep.mubr.bf16.mxu0 0
  %335 = vmatmul.mubr.bf16.gmra.mxu0 %v297
  %v336 = vpop.f32.mrf.mxu0
  %v337 = vadd.f32 0.0, %v336
  %v338 = vpop.f32.mrf.mxu0
  %v339 = vpop.f32.mrf.mxu0
  %v340 = vadd.f32 0.0, %v339
  %v341 = vpop.f32.mrf.mxu0
  %342 = vdwg.mxu0
  %vm343 = vcmask 97280
  %v344 = vsel %vm343, %v337, -inf
  %345 = vmax.xlane.f32.xlu0 %v344
  %v346 = vpop.xlane.xlu0 %345
  %vm347 = vcmask 93184
  %v348 = vsel %vm347, %v340, -inf
  %349 = vmax.xlane.f32.xlu0 %v348
  %v350 = vpop.xlane.xlu0 %349
  %v351 = vsub.f32 %v337, %v346
  %v352 = vsub.f32 %v340, %v350
  %v353 = vmul.f32 %v351, 1.442695
  %v354 = vpow.pop %v353
  %v355 = vmul.f32 %v352, 1.442695
  %v356 = vpow.pop %v355
  %v357 = vsel %vm343, %v354, 0.0
  %358 = vadd.xlane.f32.xlu0 %v357
  %v359 = vpop.xlane.xlu0 %358
  %v360 = vsel %vm347, %v356, 0.0
  %361 = vadd.xlane.f32.xlu0 %v360
  %v362 = vpop.xlane.xlu0 %361
  %v363 = vrcp.pop %v359
  %v364 = vrcp.pop %v362
  %v365 = vmul.f32 %v354, %v363
  %v366 = vmul.f32 %v356, %v364
  %v367 = vpack.c.bf16 %v366, %v365
  %368 = vrot.lane.b32.xlu0 %v291, 64
  %v369 = vpop.permute.xlu0 %368
  %v371 = vsel %vm343, %v367, 0
  %vm373 = vcmask 1045504
  %v375 = vsel %vm373, %v369, 0
  %377 = vmatprep.subr.bf16.mxu0 0
  %378 = vmatpush1.bf16.msra.mxu0 0
  %379 = vmatprep.subr.bf16.mxu0 0
  %380 = vmatpush1.bf16.msra.mxu0 0
  %381 = vmatprep.subr.bf16.mxu0 0
  %382 = vmatpush1.bf16.msra.mxu0 0
  %383 = vmatprep.subr.bf16.mxu0 0
  %384 = vmatpush1.bf16.msra.mxu0 0
  %385 = vmatprep.subr.bf16.mxu0 0
  %386 = vmatpush1.bf16.msra.mxu0 0
  %387 = vmatprep.subr.bf16.mxu0 0
  %388 = vmatpush1.bf16.msra.mxu0 0
  %389 = vmatprep.subr.bf16.mxu0 0
  %390 = vmatpush1.bf16.msra.mxu0 0
  %391 = vmatprep.subr.bf16.mxu0 0
  %392 = vmatpush1.bf16.msra.mxu0 %v375
  %393 = vmatprep.subr.bf16.mxu0 0
  %394 = vmatpush2.bf16.msra.mxu0 0
  %395 = vmatprep.subr.bf16.mxu0 0
  %396 = vmatpush2.bf16.msra.mxu0 0
  %397 = vmatprep.subr.bf16.mxu0 0
  %398 = vmatpush2.bf16.msra.mxu0 0
  %399 = vmatprep.subr.bf16.mxu0 0
  %400 = vmatpush2.bf16.msra.mxu0 0
  %401 = vmatprep.subr.bf16.mxu0 0
  %402 = vmatpush2.bf16.msra.mxu0 0
  %403 = vmatprep.subr.bf16.mxu0 0
  %404 = vmatpush2.bf16.msra.mxu0 0
  %405 = vmatprep.subr.bf16.mxu0 0
  %406 = vmatpush2.bf16.msra.mxu0 0
  %407 = vmatprep.subr.bf16.mxu0 0
  %408 = vmatpush2.bf16.msra.mxu0 0
  %409 = vmatprep.mubr.bf16.mxu0 0
  %410 = vmatmul.mubr.bf16.gmra.mxu0 %v371
  %v411 = vpop.f32.mrf.mxu0
  %v412 = vadd.f32 0.0, %v411
  %v413 = vpop.f32.mrf.mxu0
  %v414 = vpop.f32.mrf.mxu0
  %v415 = vadd.f32 0.0, %v414
  %v416 = vpop.f32.mrf.mxu0
  %417 = vdwg.mxu0
  %419 = vrot.lane.b32.xlu0 %v290, 120
  %v420 = vpop.permute.xlu0 %419
  %421 = vrot.lane.b32.xlu0 %v291, 88
  %v422 = vpop.permute.xlu0 %421
  %v424 = vsel %vm295, %v420, 0
  %v427 = vsel %vm295, %v422, 0
  %429 = vmatprep.subr.bf16.mxu0 0
  %430 = vmatpush1.bf16.xpose.msra.mxu0 0
  %431 = vmatprep.subr.bf16.mxu0 0
  %432 = vmatpush1.bf16.xpose.msra.mxu0 0
  %433 = vmatprep.subr.bf16.mxu0 0
  %434 = vmatpush1.bf16.xpose.msra.mxu0 0
  %435 = vmatprep.subr.bf16.mxu0 0
  %436 = vmatpush1.bf16.xpose.msra.mxu0 0
  %437 = vmatprep.subr.bf16.mxu0 0
  %438 = vmatpush1.bf16.xpose.msra.mxu0 0
  %439 = vmatprep.subr.bf16.mxu0 0
  %440 = vmatpush1.bf16.xpose.msra.mxu0 0
  %441 = vmatprep.subr.bf16.mxu0 0
  %442 = vmatpush1.bf16.xpose.msra.mxu0 0
  %443 = vmatprep.subr.bf16.mxu0 0
  %444 = vmatpush1.bf16.xpose.msra.mxu0 %v427
  %445 = vmatprep.subr.bf16.mxu0 0
  %446 = vmatpush2.bf16.xpose.msra.mxu0 0
  %447 = vmatprep.subr.bf16.mxu0 0
  %448 = vmatpush2.bf16.xpose.msra.mxu0 0
  %449 = vmatprep.subr.bf16.mxu0 0
  %450 = vmatpush2.bf16.xpose.msra.mxu0 0
  %451 = vmatprep.subr.bf16.mxu0 0
  %452 = vmatpush2.bf16.xpose.msra.mxu0 0
  %453 = vmatprep.subr.bf16.mxu0 0
  %454 = vmatpush2.bf16.xpose.msra.mxu0 0
  %455 = vmatprep.subr.bf16.mxu0 0
  %456 = vmatpush2.bf16.xpose.msra.mxu0 0
  %457 = vmatprep.subr.bf16.mxu0 0
  %458 = vmatpush2.bf16.xpose.msra.mxu0 0
  %459 = vmatprep.subr.bf16.mxu0 0
  %460 = vmatpush2.bf16.xpose.msra.mxu0 0
  %461 = vmatprep.mubr.bf16.mxu0 0
  %462 = vmatmul.mubr.bf16.gmra.mxu0 %v424
  %v463 = vpop.f32.mrf.mxu0
  %v464 = vadd.f32 0.0, %v463
  %v465 = vpop.f32.mrf.mxu0
  %v466 = vpop.f32.mrf.mxu0
  %v467 = vadd.f32 0.0, %v466
  %v468 = vpop.f32.mrf.mxu0
  %469 = vdwg.mxu0
  %v470 = vsel %vm343, %v464, -inf
  %471 = vmax.xlane.f32.xlu0 %v470
  %v472 = vpop.xlane.xlu0 %471
  %v473 = vsel %vm347, %v467, -inf
  %474 = vmax.xlane.f32.xlu0 %v473
  %v475 = vpop.xlane.xlu0 %474
  %v476 = vsub.f32 %v464, %v472
  %v477 = vsub.f32 %v467, %v475
  %v478 = vmul.f32 %v476, 1.442695
  %v479 = vpow.pop %v478
  %v480 = vmul.f32 %v477, 1.442695
  %v481 = vpow.pop %v480
  %v482 = vsel %vm343, %v479, 0.0
  %483 = vadd.xlane.f32.xlu0 %v482
  %v484 = vpop.xlane.xlu0 %483
  %v485 = vsel %vm347, %v481, 0.0
  %486 = vadd.xlane.f32.xlu0 %v485
  %v487 = vpop.xlane.xlu0 %486
  %v488 = vrcp.pop %v484
  %v489 = vrcp.pop %v487
  %v490 = vmul.f32 %v479, %v488
  %v491 = vmul.f32 %v481, %v489
  %v492 = vpack.c.bf16 %v491, %v490
  %493 = vrot.lane.b32.xlu0 %v291, 56
  %v494 = vpop.permute.xlu0 %493
  %v496 = vsel %vm343, %v492, 0
  %v499 = vsel %vm373, %v494, 0
  %501 = vmatprep.subr.bf16.mxu0 0
  %502 = vmatpush1.bf16.msra.mxu0 0
  %503 = vmatprep.subr.bf16.mxu0 0
  %504 = vmatpush1.bf16.msra.mxu0 0
  %505 = vmatprep.subr.bf16.mxu0 0
  %506 = vmatpush1.bf16.msra.mxu0 0
  %507 = vmatprep.subr.bf16.mxu0 0
  %508 = vmatpush1.bf16.msra.mxu0 0
  %509 = vmatprep.subr.bf16.mxu0 0
  %510 = vmatpush1.bf16.msra.mxu0 0
  %511 = vmatprep.subr.bf16.mxu0 0
  %512 = vmatpush1.bf16.msra.mxu0 0
  %513 = vmatprep.subr.bf16.mxu0 0
  %514 = vmatpush1.bf16.msra.mxu0 0
  %515 = vmatprep.subr.bf16.mxu0 0
  %516 = vmatpush1.bf16.msra.mxu0 %v499
  %517 = vmatprep.subr.bf16.mxu0 0
  %518 = vmatpush2.bf16.msra.mxu0 0
  %519 = vmatprep.subr.bf16.mxu0 0
  %520 = vmatpush2.bf16.msra.mxu0 0
  %521 = vmatprep.subr.bf16.mxu0 0
  %522 = vmatpush2.bf16.msra.mxu0 0
  %523 = vmatprep.subr.bf16.mxu0 0
  %524 = vmatpush2.bf16.msra.mxu0 0
  %525 = vmatprep.subr.bf16.mxu0 0
  %526 = vmatpush2.bf16.msra.mxu0 0
  %527 = vmatprep.subr.bf16.mxu0 0
  %528 = vmatpush2.bf16.msra.mxu0 0
  %529 = vmatprep.subr.bf16.mxu0 0
  %530 = vmatpush2.bf16.msra.mxu0 0
  %531 = vmatprep.subr.bf16.mxu0 0
  %532 = vmatpush2.bf16.msra.mxu0 0
  %533 = vmatprep.mubr.bf16.mxu0 0
  %534 = vmatmul.mubr.bf16.gmra.mxu0 %v496
  %v535 = vpop.f32.mrf.mxu0
  %v536 = vadd.f32 0.0, %v535
  %v537 = vpop.f32.mrf.mxu0
  %v538 = vpop.f32.mrf.mxu0
  %v539 = vadd.f32 0.0, %v538
  %v540 = vpop.f32.mrf.mxu0
  %541 = vdwg.mxu0
  %542 = vrot.lane.b32.xlu0 %v290, 112
  %v543 = vpop.permute.xlu0 %542
  %544 = vrot.lane.b32.xlu0 %v291, 80
  %v545 = vpop.permute.xlu0 %544
  %v547 = vsel %vm295, %v543, 0
  %v550 = vsel %vm295, %v545, 0
  %552 = vmatprep.subr.bf16.mxu0 0
  %553 = vmatpush1.bf16.xpose.msra.mxu0 0
  %554 = vmatprep.subr.bf16.mxu0 0
  %555 = vmatpush1.bf16.xpose.msra.mxu0 0
  %556 = vmatprep.subr.bf16.mxu0 0
  %557 = vmatpush1.bf16.xpose.msra.mxu0 0
  %558 = vmatprep.subr.bf16.mxu0 0
  %559 = vmatpush1.bf16.xpose.msra.mxu0 0
  %560 = vmatprep.subr.bf16.mxu0 0
  %561 = vmatpush1.bf16.xpose.msra.mxu0 0
  %562 = vmatprep.subr.bf16.mxu0 0
  %563 = vmatpush1.bf16.xpose.msra.mxu0 0
  %564 = vmatprep.subr.bf16.mxu0 0
  %565 = vmatpush1.bf16.xpose.msra.mxu0 0
  %566 = vmatprep.subr.bf16.mxu0 0
  %567 = vmatpush1.bf16.xpose.msra.mxu0 %v550
  %568 = vmatprep.subr.bf16.mxu0 0
  %569 = vmatpush2.bf16.xpose.msra.mxu0 0
  %570 = vmatprep.subr.bf16.mxu0 0
  %571 = vmatpush2.bf16.xpose.msra.mxu0 0
  %572 = vmatprep.subr.bf16.mxu0 0
  %573 = vmatpush2.bf16.xpose.msra.mxu0 0
  %574 = vmatprep.subr.bf16.mxu0 0
  %575 = vmatpush2.bf16.xpose.msra.mxu0 0
  %576 = vmatprep.subr.bf16.mxu0 0
  %577 = vmatpush2.bf16.xpose.msra.mxu0 0
  %578 = vmatprep.subr.bf16.mxu0 0
  %579 = vmatpush2.bf16.xpose.msra.mxu0 0
  %580 = vmatprep.subr.bf16.mxu0 0
  %581 = vmatpush2.bf16.xpose.msra.mxu0 0
  %582 = vmatprep.subr.bf16.mxu0 0
  %583 = vmatpush2.bf16.xpose.msra.mxu0 0
  %584 = vmatprep.mubr.bf16.mxu0 0
  %585 = vmatmul.mubr.bf16.gmra.mxu0 %v547
  %v586 = vpop.f32.mrf.mxu0
  %v587 = vadd.f32 0.0, %v586
  %v588 = vpop.f32.mrf.mxu0
  %v589 = vpop.f32.mrf.mxu0
  %v590 = vadd.f32 0.0, %v589
  %v591 = vpop.f32.mrf.mxu0
  %592 = vdwg.mxu0
  %v593 = vsel %vm343, %v587, -inf
  %594 = vmax.xlane.f32.xlu0 %v593
  %v595 = vpop.xlane.xlu0 %594
  %v596 = vsel %vm347, %v590, -inf
  %597 = vmax.xlane.f32.xlu0 %v596
  %v598 = vpop.xlane.xlu0 %597
  %v599 = vsub.f32 %v587, %v595
  %v600 = vsub.f32 %v590, %v598
  %v601 = vmul.f32 %v599, 1.442695
  %v602 = vpow.pop %v601
  %v603 = vmul.f32 %v600, 1.442695
  %v604 = vpow.pop %v603
  %v605 = vsel %vm343, %v602, 0.0
  %606 = vadd.xlane.f32.xlu0 %v605
  %v607 = vpop.xlane.xlu0 %606
  %v608 = vsel %vm347, %v604, 0.0
  %609 = vadd.xlane.f32.xlu0 %v608
  %v610 = vpop.xlane.xlu0 %609
  %v611 = vrcp.pop %v607
  %v612 = vrcp.pop %v610
  %v613 = vmul.f32 %v602, %v611
  %v614 = vmul.f32 %v604, %v612
  %v615 = vpack.c.bf16 %v614, %v613
  %616 = vrot.lane.b32.xlu0 %v291, 48
  %v617 = vpop.permute.xlu0 %616
  %v619 = vsel %vm343, %v615, 0
  %v622 = vsel %vm373, %v617, 0
  %624 = vmatprep.subr.bf16.mxu0 0
  %625 = vmatpush1.bf16.msra.mxu0 0
  %626 = vmatprep.subr.bf16.mxu0 0
  %627 = vmatpush1.bf16.msra.mxu0 0
  %628 = vmatprep.subr.bf16.mxu0 0
  %629 = vmatpush1.bf16.msra.mxu0 0
  %630 = vmatprep.subr.bf16.mxu0 0
  %631 = vmatpush1.bf16.msra.mxu0 0
  %632 = vmatprep.subr.bf16.mxu0 0
  %633 = vmatpush1.bf16.msra.mxu0 0
  %634 = vmatprep.subr.bf16.mxu0 0
  %635 = vmatpush1.bf16.msra.mxu0 0
  %636 = vmatprep.subr.bf16.mxu0 0
  %637 = vmatpush1.bf16.msra.mxu0 0
  %638 = vmatprep.subr.bf16.mxu0 0
  %639 = vmatpush1.bf16.msra.mxu0 %v622
  %640 = vmatprep.subr.bf16.mxu0 0
  %641 = vmatpush2.bf16.msra.mxu0 0
  %642 = vmatprep.subr.bf16.mxu0 0
  %643 = vmatpush2.bf16.msra.mxu0 0
  %644 = vmatprep.subr.bf16.mxu0 0
  %645 = vmatpush2.bf16.msra.mxu0 0
  %646 = vmatprep.subr.bf16.mxu0 0
  %647 = vmatpush2.bf16.msra.mxu0 0
  %648 = vmatprep.subr.bf16.mxu0 0
  %649 = vmatpush2.bf16.msra.mxu0 0
  %650 = vmatprep.subr.bf16.mxu0 0
  %651 = vmatpush2.bf16.msra.mxu0 0
  %652 = vmatprep.subr.bf16.mxu0 0
  %653 = vmatpush2.bf16.msra.mxu0 0
  %654 = vmatprep.subr.bf16.mxu0 0
  %655 = vmatpush2.bf16.msra.mxu0 0
  %656 = vmatprep.mubr.bf16.mxu0 0
  %657 = vmatmul.mubr.bf16.gmra.mxu0 %v619
  %v658 = vpop.f32.mrf.mxu0
  %v659 = vadd.f32 0.0, %v658
  %v660 = vpop.f32.mrf.mxu0
  %v661 = vpop.f32.mrf.mxu0
  %v662 = vadd.f32 0.0, %v661
  %v663 = vpop.f32.mrf.mxu0
  %664 = vdwg.mxu0
  %665 = vrot.lane.b32.xlu0 %v290, 104
  %v666 = vpop.permute.xlu0 %665
  %667 = vrot.lane.b32.xlu0 %v291, 72
  %v668 = vpop.permute.xlu0 %667
  %v670 = vsel %vm295, %v666, 0
  %v673 = vsel %vm295, %v668, 0
  %675 = vmatprep.subr.bf16.mxu0 0
  %676 = vmatpush1.bf16.xpose.msra.mxu0 0
  %677 = vmatprep.subr.bf16.mxu0 0
  %678 = vmatpush1.bf16.xpose.msra.mxu0 0
  %679 = vmatprep.subr.bf16.mxu0 0
  %680 = vmatpush1.bf16.xpose.msra.mxu0 0
  %681 = vmatprep.subr.bf16.mxu0 0
  %682 = vmatpush1.bf16.xpose.msra.mxu0 0
  %683 = vmatprep.subr.bf16.mxu0 0
  %684 = vmatpush1.bf16.xpose.msra.mxu0 0
  %685 = vmatprep.subr.bf16.mxu0 0
  %686 = vmatpush1.bf16.xpose.msra.mxu0 0
  %687 = vmatprep.subr.bf16.mxu0 0
  %688 = vmatpush1.bf16.xpose.msra.mxu0 0
  %689 = vmatprep.subr.bf16.mxu0 0
  %690 = vmatpush1.bf16.xpose.msra.mxu0 %v673
  %691 = vmatprep.subr.bf16.mxu0 0
  %692 = vmatpush2.bf16.xpose.msra.mxu0 0
  %693 = vmatprep.subr.bf16.mxu0 0
  %694 = vmatpush2.bf16.xpose.msra.mxu0 0
  %695 = vmatprep.subr.bf16.mxu0 0
  %696 = vmatpush2.bf16.xpose.msra.mxu0 0
  %697 = vmatprep.subr.bf16.mxu0 0
  %698 = vmatpush2.bf16.xpose.msra.mxu0 0
  %699 = vmatprep.subr.bf16.mxu0 0
  %700 = vmatpush2.bf16.xpose.msra.mxu0 0
  %701 = vmatprep.subr.bf16.mxu0 0
  %702 = vmatpush2.bf16.xpose.msra.mxu0 0
  %703 = vmatprep.subr.bf16.mxu0 0
  %704 = vmatpush2.bf16.xpose.msra.mxu0 0
  %705 = vmatprep.subr.bf16.mxu0 0
  %706 = vmatpush2.bf16.xpose.msra.mxu0 0
  %707 = vmatprep.mubr.bf16.mxu0 0
  %708 = vmatmul.mubr.bf16.gmra.mxu0 %v670
  %v709 = vpop.f32.mrf.mxu0
  %v710 = vadd.f32 0.0, %v709
  %v711 = vpop.f32.mrf.mxu0
  %v712 = vpop.f32.mrf.mxu0
  %v713 = vadd.f32 0.0, %v712
  %v714 = vpop.f32.mrf.mxu0
  %715 = vdwg.mxu0
  %v716 = vsel %vm343, %v710, -inf
  %717 = vmax.xlane.f32.xlu0 %v716
  %v718 = vpop.xlane.xlu0 %717
  %v719 = vsel %vm347, %v713, -inf
  %720 = vmax.xlane.f32.xlu0 %v719
  %v721 = vpop.xlane.xlu0 %720
  %v722 = vsub.f32 %v710, %v718
  %v723 = vsub.f32 %v713, %v721
  %v724 = vmul.f32 %v722, 1.442695
  %v725 = vpow.pop %v724
  %v726 = vmul.f32 %v723, 1.442695
  %v727 = vpow.pop %v726
  %v728 = vsel %vm343, %v725, 0.0
  %729 = vadd.xlane.f32.xlu0 %v728
  %v730 = vpop.xlane.xlu0 %729
  %v731 = vsel %vm347, %v727, 0.0
  %732 = vadd.xlane.f32.xlu0 %v731
  %v733 = vpop.xlane.xlu0 %732
  %v734 = vrcp.pop %v730
  %v735 = vrcp.pop %v733
  %v736 = vmul.f32 %v725, %v734
  %v737 = vmul.f32 %v727, %v735
  %v738 = vpack.c.bf16 %v737, %v736
  %739 = vrot.lane.b32.xlu0 %v291, 40
  %v740 = vpop.permute.xlu0 %739
  %v742 = vsel %vm343, %v738, 0
  %v745 = vsel %vm373, %v740, 0
  %747 = vmatprep.subr.bf16.mxu0 0
  %748 = vmatpush1.bf16.msra.mxu0 0
  %749 = vmatprep.subr.bf16.mxu0 0
  %750 = vmatpush1.bf16.msra.mxu0 0
  %751 = vmatprep.subr.bf16.mxu0 0
  %752 = vmatpush1.bf16.msra.mxu0 0
  %753 = vmatprep.subr.bf16.mxu0 0
  %754 = vmatpush1.bf16.msra.mxu0 0
  %755 = vmatprep.subr.bf16.mxu0 0
  %756 = vmatpush1.bf16.msra.mxu0 0
  %757 = vmatprep.subr.bf16.mxu0 0
  %758 = vmatpush1.bf16.msra.mxu0 0
  %759 = vmatprep.subr.bf16.mxu0 0
  %760 = vmatpush1.bf16.msra.mxu0 0
  %761 = vmatprep.subr.bf16.mxu0 0
  %762 = vmatpush1.bf16.msra.mxu0 %v745
  %763 = vmatprep.subr.bf16.mxu0 0
  %764 = vmatpush2.bf16.msra.mxu0 0
  %765 = vmatprep.subr.bf16.mxu0 0
  %766 = vmatpush2.bf16.msra.mxu0 0
  %767 = vmatprep.subr.bf16.mxu0 0
  %768 = vmatpush2.bf16.msra.mxu0 0
  %769 = vmatprep.subr.bf16.mxu0 0
  %770 = vmatpush2.bf16.msra.mxu0 0
  %771 = vmatprep.subr.bf16.mxu0 0
  %772 = vmatpush2.bf16.msra.mxu0 0
  %773 = vmatprep.subr.bf16.mxu0 0
  %774 = vmatpush2.bf16.msra.mxu0 0
  %775 = vmatprep.subr.bf16.mxu0 0
  %776 = vmatpush2.bf16.msra.mxu0 0
  %777 = vmatprep.subr.bf16.mxu0 0
  %778 = vmatpush2.bf16.msra.mxu0 0
  %779 = vmatprep.mubr.bf16.mxu0 0
  %780 = vmatmul.mubr.bf16.gmra.mxu0 %v742
  %v781 = vpop.f32.mrf.mxu0
  %v782 = vadd.f32 0.0, %v781
  %v783 = vpop.f32.mrf.mxu0
  %v784 = vpop.f32.mrf.mxu0
  %v785 = vadd.f32 0.0, %v784
  %v786 = vpop.f32.mrf.mxu0
  %787 = vdwg.mxu0
  %790 = vrot.lane.b32.xlu0 %v536, 8
  %v791 = vpop.permute.xlu0 %790
  %792 = vrot.lane.b32.xlu0 %v539, 8
  %v793 = vpop.permute.xlu0 %792
  %798 = vrot.lane.b32.xlu0 %v659, 16
  %v799 = vpop.permute.xlu0 %798
  %800 = vrot.lane.b32.xlu0 %v662, 16
  %v801 = vpop.permute.xlu0 %800
  %806 = vrot.lane.b32.xlu0 %v782, 24
  %v807 = vpop.permute.xlu0 %806
  %808 = vrot.lane.b32.xlu0 %v785, 24
  %v809 = vpop.permute.xlu0 %808
  %v812 = vsel %vm295, %v412, %v791
  %v813 = vsel %vm295, %v415, %v793
  %vm814 = vcmask 130048
  %v815 = vsel %vm814, %v812, %v799
  %v816 = vsel %vm814, %v813, %v801
  %vm817 = vcmask 195584
  %v818 = vsel %vm817, %v815, %v807
  %v819 = vsel %vm817, %v816, %v809
  %v820 = vpack.c.bf16 %v819, %v818
  %v821 = vld [vmem:[%s9] sm:$0xf]
  %v822 = vld [vmem:[%s9 + $0x4] sm:$0xf]
  %v823 = vld [vmem:[%s9 + $0x8] sm:$0xf]
  %v824 = vld [vmem:[%s9 + $0xc] sm:$0xf]
  %v825 = vld [vmem:[%s10] sm:$0x1]
  %v827 = vlaneseq
  %v828 = vshrl.u32 %v827, 7
  %v829 = vsub.s32 0, %v828
  %v830 = vrot.slane %v825, %v829
  %v836 = vunpack.c.l.b16 %v821
  %v837 = vunpack.c.l.b16 %v822
  %v838 = vunpack.c.l.b16 %v823
  %v839 = vunpack.c.l.b16 %v824
  %v840 = vpack.c.b16 %v837, %v836
  %v841 = vpack.c.b16 %v839, %v838
  %v845 = vsel %vm96, %v820, 0
  %847 = vmatprep.subr.bf16.mxu0 0
  %848 = vmatpush1.bf16.msra.mxu0 0
  %849 = vmatprep.subr.bf16.mxu0 0
  %850 = vmatpush1.bf16.msra.mxu0 0
  %851 = vmatprep.subr.bf16.mxu0 0
  %852 = vmatpush1.bf16.msra.mxu0 0
  %853 = vmatprep.subr.bf16.mxu0 0
  %854 = vmatpush1.bf16.msra.mxu0 0
  %855 = vmatprep.subr.bf16.mxu0 0
  %856 = vmatpush1.bf16.msra.mxu0 0
  %857 = vmatprep.subr.bf16.mxu0 0
  %858 = vmatpush1.bf16.msra.mxu0 0
  %859 = vmatprep.subr.bf16.mxu0 0
  %860 = vmatpush1.bf16.msra.mxu0 %v841
  %861 = vmatprep.subr.bf16.mxu0 0
  %862 = vmatpush1.bf16.msra.mxu0 %v840
  %863 = vmatprep.subr.bf16.mxu0 0
  %864 = vmatpush2.bf16.msra.mxu0 0
  %865 = vmatprep.subr.bf16.mxu0 0
  %866 = vmatpush2.bf16.msra.mxu0 0
  %867 = vmatprep.subr.bf16.mxu0 0
  %868 = vmatpush2.bf16.msra.mxu0 0
  %869 = vmatprep.subr.bf16.mxu0 0
  %870 = vmatpush2.bf16.msra.mxu0 0
  %871 = vmatprep.subr.bf16.mxu0 0
  %872 = vmatpush2.bf16.msra.mxu0 0
  %873 = vmatprep.subr.bf16.mxu0 0
  %874 = vmatpush2.bf16.msra.mxu0 0
  %875 = vmatprep.subr.bf16.mxu0 0
  %876 = vmatpush2.bf16.msra.mxu0 0
  %877 = vmatprep.subr.bf16.mxu0 0
  %878 = vmatpush2.bf16.msra.mxu0 0
  %879 = vmatprep.mubr.bf16.mxu0 0
  %880 = vmatmul.mubr.bf16.gmra.mxu0 %v845
  %v881 = vpop.f32.mrf.mxu0
  %v882 = vadd.f32 %v830, %v881
  %v883 = vpop.f32.mrf.mxu0
  %v884 = vpop.f32.mrf.mxu0
  %v885 = vadd.f32 %v830, %v884
  %v886 = vpop.f32.mrf.mxu0
  %887 = vdwg.mxu0
  %v888 = vadd.f32 %v210, %v882
  %v889 = vadd.f32 %v219, %v885
  %v890 = vld [vmem:[%s11] sm:$0x1]
  %v891 = vld [vmem:[%s12] sm:$0x1]
  %v892 = vsel %vm96, %v888, 0.0
  %893 = vadd.xlane.f32.xlu0 %v892
  %v894 = vpop.xlane.xlu0 %893
  %vm895 = vcmask 257024
  %v896 = vsel %vm895, %v889, 0.0
  %897 = vadd.xlane.f32.xlu0 %v896
  %v898 = vpop.xlane.xlu0 %897
  %v899 = vrcp.pop 32.0
  %v900 = vmul.f32 %v894, %v899
  %v901 = vmul.f32 %v898, %v899
  %v902 = vsub.f32 %v888, %v900
  %v903 = vsub.f32 %v889, %v901
  %v904 = vmul.f32 %v902, %v902
  %v905 = vmul.f32 %v903, %v903
  %v906 = vsel %vm96, %v904, 0.0
  %907 = vadd.xlane.f32.xlu0 %v906
  %v908 = vpop.xlane.xlu0 %907
  %v909 = vsel %vm895, %v905, 0.0
  %910 = vadd.xlane.f32.xlu0 %v909
  %v911 = vpop.xlane.xlu0 %910
  %v912 = vmul.f32 %v908, %v899
  %v913 = vmul.f32 %v911, %v899
  %v914 = vadd.f32 %v912, 1e-05
  %v915 = vadd.f32 %v913, 1e-05
  %v916 = vrsqrt.pop %v914
  %v917 = vrsqrt.pop %v915
  %v918 = vmul.f32 %v902, %v916
  %v919 = vmul.f32 %v903, %v917
  %v921 = vlaneseq
  %v922 = vshrl.u32 %v921, 7
  %v923 = vsub.s32 0, %v922
  %v924 = vrot.slane %v890, %v923
  %v926 = vmul.f32 %v918, %v924
  %v927 = vmul.f32 %v919, %v924
  %v929 = vlaneseq
  %v930 = vshrl.u32 %v929, 7
  %v931 = vsub.s32 0, %v930
  %v932 = vrot.slane %v891, %v931
  %v934 = vadd.f32 %v926, %v932
  %v935 = vadd.f32 %v927, %v932
  %v936 = vpack.c.bf16 %v935, %v934
  %v937 = vld [vmem:[%s13] sm:$0xf]
  %v938 = vld [vmem:[%s13 + $0x4] sm:$0xf]
  %v939 = vld [vmem:[%s13 + $0x8] sm:$0xf]
  %v940 = vld [vmem:[%s13 + $0xc] sm:$0xf]
  %v941 = vld [vmem:[%s14] sm:$0x1]
  %v943 = vlaneseq
  %v944 = vshrl.u32 %v943, 7
  %v945 = vsub.s32 0, %v944
  %v946 = vrot.slane %v941, %v945
  %v952 = vunpack.c.l.b16 %v937
  %v953 = vunpack.c.l.b16 %v938
  %v954 = vunpack.c.l.b16 %v939
  %v955 = vunpack.c.l.b16 %v940
  %v956 = vpack.c.b16 %v953, %v952
  %v957 = vpack.c.b16 %v955, %v954
  %v961 = vsel %vm96, %v936, 0
  %963 = vmatprep.subr.bf16.mxu0 0
  %964 = vmatpush1.bf16.msra.mxu0 0
  %965 = vmatprep.subr.bf16.mxu0 0
  %966 = vmatpush1.bf16.msra.mxu0 0
  %967 = vmatprep.subr.bf16.mxu0 0
  %968 = vmatpush1.bf16.msra.mxu0 0
  %969 = vmatprep.subr.bf16.mxu0 0
  %970 = vmatpush1.bf16.msra.mxu0 0
  %971 = vmatprep.subr.bf16.mxu0 0
  %972 = vmatpush1.bf16.msra.mxu0 0
  %973 = vmatprep.subr.bf16.mxu0 0
  %974 = vmatpush1.bf16.msra.mxu0 0
  %975 = vmatprep.subr.bf16.mxu0 0
  %976 = vmatpush1.bf16.msra.mxu0 %v957
  %977 = vmatprep.subr.bf16.mxu0 0
  %978 = vmatpush1.bf16.msra.mxu0 %v956
  %979 = vmatprep.subr.bf16.mxu0 0
  %980 = vmatpush2.bf16.msra.mxu0 0
  %981 = vmatprep.subr.bf16.mxu0 0
  %982 = vmatpush2.bf16.msra.mxu0 0
  %983 = vmatprep.subr.bf16.mxu0 0
  %984 = vmatpush2.bf16.msra.mxu0 0
  %985 = vmatprep.subr.bf16.mxu0 0
  %986 = vmatpush2.bf16.msra.mxu0 0
  %987 = vmatprep.subr.bf16.mxu0 0
  %988 = vmatpush2.bf16.msra.mxu0 0
  %989 = vmatprep.subr.bf16.mxu0 0
  %990 = vmatpush2.bf16.msra.mxu0 0
  %991 = vmatprep.subr.bf16.mxu0 0
  %992 = vmatpush2.bf16.msra.mxu0 0
  %993 = vmatprep.subr.bf16.mxu0 0
  %994 = vmatpush2.bf16.msra.mxu0 0
  %995 = vmatprep.mubr.bf16.mxu0 0
  %996 = vmatmul.mubr.bf16.gmra.mxu0 %v961
  %v997 = vpop.f32.mrf.mxu0
  %v998 = vadd.f32 %v946, %v997
  %v999 = vpop.f32.mrf.mxu0
  %v1000 = vpop.f32.mrf.mxu0
  %v1001 = vadd.f32 %v946, %v1000
  %v1002 = vpop.f32.mrf.mxu0
  %1003 = vdwg.mxu0
  %v1004 = vmul.f32 %v998, 0.5
  %v1005 = vmul.f32 %v1001, 0.5
  %v1006 = vmul.f32 %v998, 0.044715
  %v1007 = vmul.f32 %v1001, 0.044715
  %v1008 = vmul.f32 %v1006, %v998
  %v1009 = vmul.f32 %v1007, %v1001
  %v1010 = vmul.f32 %v1008, %v998
  %v1011 = vmul.f32 %v1009, %v1001
  %v1012 = vadd.f32 %v998, %v1010
  %v1013 = vadd.f32 %v1001, %v1011
  %v1014 = vmul.f32 %v1012, 0.7978846
  %v1015 = vmul.f32 %v1013, 0.7978846
  %v1016 = vtanh.pop %v1014
  %v1017 = vtanh.pop %v1015
  %v1018 = vadd.f32 %v1016, 1.0
  %v1019 = vadd.f32 %v1017, 1.0
  %v1020 = vmul.f32 %v1004, %v1018
  %v1021 = vmul.f32 %v1005, %v1019
  %v1022 = vpack.c.bf16 %v1021, %v1020
  %v1023 = vld [vmem:[%s15] sm:$0xf]
  %v1024 = vld [vmem:[%s15 + $0x4] sm:$0xf]
  %v1025 = vld [vmem:[%s15 + $0x8] sm:$0xf]
  %v1026 = vld [vmem:[%s15 + $0xc] sm:$0xf]
  %v1027 = vld [vmem:[%s15 + $0x10] sm:$0xf]
  %v1028 = vld [vmem:[%s15 + $0x14] sm:$0xf]
  %v1029 = vld [vmem:[%s15 + $0x18] sm:$0xf]
  %v1030 = vld [vmem:[%s15 + $0x1c] sm:$0xf]
  %v1031 = vld [vmem:[%s16] sm:$0x1]
  %v1033 = vlaneseq
  %v1034 = vshrl.u32 %v1033, 7
  %v1035 = vsub.s32 0, %v1034
  %v1036 = vrot.slane %v1031, %v1035
  %v1046 = vunpack.c.l.b16 %v1023
  %v1047 = vunpack.c.l.b16 %v1024
  %v1048 = vunpack.c.l.b16 %v1025
  %v1049 = vunpack.c.l.b16 %v1026
  %v1050 = vunpack.c.l.b16 %v1027
  %v1051 = vunpack.c.l.b16 %v1028
  %v1052 = vunpack.c.l.b16 %v1029
  %v1053 = vunpack.c.l.b16 %v1030
  %v1054 = vpack.c.b16 %v1047, %v1046
  %v1055 = vpack.c.b16 %v1049, %v1048
  %v1056 = vpack.c.b16 %v1051, %v1050
  %v1057 = vpack.c.b16 %v1053, %v1052
  %vm1062 = vcmask 523264
  %v1064 = vsel %vm1062, %v1022, 0
  %1066 = vmatprep.subr.bf16.mxu0 0
  %1067 = vmatpush1.bf16.msra.mxu0 0
  %1068 = vmatprep.subr.bf16.mxu0 0
  %1069 = vmatpush1.bf16.msra.mxu0 0
  %1070 = vmatprep.subr.bf16.mxu0 0
  %1071 = vmatpush1.bf16.msra.mxu0 0
  %1072 = vmatprep.subr.bf16.mxu0 0
  %1073 = vmatpush1.bf16.msra.mxu0 0
  %1074 = vmatprep.subr.bf16.mxu0 0
  %1075 = vmatpush1.bf16.msra.mxu0 %v1057
  %1076 = vmatprep.subr.bf16.mxu0 0
  %1077 = vmatpush1.bf16.msra.mxu0 %v1056
  %1078 = vmatprep.subr.bf16.mxu0 0
  %1079 = vmatpush1.bf16.msra.mxu0 %v1055
  %1080 = vmatprep.subr.bf16.mxu0 0
  %1081 = vmatpush1.bf16.msra.mxu0 %v1054
  %1082 = vmatprep.subr.bf16.mxu0 0
  %1083 = vmatpush2.bf16.msra.mxu0 0
  %1084 = vmatprep.subr.bf16.mxu0 0
  %1085 = vmatpush2.bf16.msra.mxu0 0
  %1086 = vmatprep.subr.bf16.mxu0 0
  %1087 = vmatpush2.bf16.msra.mxu0 0
  %1088 = vmatprep.subr.bf16.mxu0 0
  %1089 = vmatpush2.bf16.msra.mxu0 0
  %1090 = vmatprep.subr.bf16.mxu0 0
  %1091 = vmatpush2.bf16.msra.mxu0 0
  %1092 = vmatprep.subr.bf16.mxu0 0
  %1093 = vmatpush2.bf16.msra.mxu0 0
  %1094 = vmatprep.subr.bf16.mxu0 0
  %1095 = vmatpush2.bf16.msra.mxu0 0
  %1096 = vmatprep.subr.bf16.mxu0 0
  %1097 = vmatpush2.bf16.msra.mxu0 0
  %1098 = vmatprep.mubr.bf16.mxu0 0
  %1099 = vmatmul.mubr.bf16.gmra.mxu0 %v1064
  %v1100 = vpop.f32.mrf.mxu0
  %v1101 = vpop.f32.mrf.mxu0
  %v1102 = vpop.f32.mrf.mxu0
  %v1103 = vadd.f32 %v1036, %v1102
  %v1104 = vpop.f32.mrf.mxu0
  %1105 = vdwg.mxu0
  %v1106 = vadd.f32 %v935, %v1103
  %v1107 = vld [vmem:[%s17] sm:$0x1]
  %v1108 = vld [vmem:[%s18] sm:$0x1]
  %v1109 = vsel %vm895, %v1106, 0.0
  %1110 = vadd.xlane.f32.xlu0 %v1109
  %v1111 = vpop.xlane.xlu0 %1110
  %v1112 = vmul.f32 %v1111, %v899
  %v1113 = vsub.f32 %v1106, %v1112
  %v1114 = vmul.f32 %v1113, %v1113
  %v1115 = vsel %vm895, %v1114, 0.0
  %1116 = vadd.xlane.f32.xlu0 %v1115
  %v1117 = vpop.xlane.xlu0 %1116
  %v1118 = vmul.f32 %v1117, %v899
  %v1119 = vadd.f32 %v1118, 1e-05
  %v1120 = vrsqrt.pop %v1119
  %v1121 = vmul.f32 %v1113, %v1120
  %v1123 = vlaneseq
  %v1124 = vshrl.u32 %v1123, 7
  %v1125 = vsub.s32 0, %v1124
  %v1126 = vrot.slane %v1107, %v1125
  %v1128 = vmul.f32 %v1121, %v1126
  %v1130 = vlaneseq
  %v1131 = vshrl.u32 %v1130, 7
  %v1132 = vsub.s32 0, %v1131
  %v1133 = vrot.slane %v1108, %v1132
  %v1135 = vadd.f32 %v1128, %v1133
  %v1136 = vadd.f32 %v1135, %v209
  %vm1137 = vcmask 256000
  %1138 = vst.msk [vmem:[%s21] sm:$0x7] %vm1137, %v1136
  %v1139 = vpack.c.bf16 %v1135, %v1135
  %v1140 = vld [vmem:[%s19] sm:$0xf]
  %v1141 = vld [vmem:[%s19 + $0x4] sm:$0xf]
  %v1142 = vld [vmem:[%s19 + $0x8] sm:$0xf]
  %v1143 = vld [vmem:[%s19 + $0xc] sm:$0xf]
  %v1144 = vld [vmem:[%s20] sm:$0x1]
  %v1146 = vshrl.u32 %v1139, 16
  %v1148 = vrot.slane %v1146, 1
  %v1153 = vunpack.c.l.b16 %v1140
  %v1154 = vunpack.c.l.b16 %v1141
  %v1155 = vunpack.c.l.b16 %v1142
  %v1156 = vunpack.c.l.b16 %v1143
  %v1157 = vpack.c.b16 %v1154, %v1153
  %v1158 = vpack.c.b16 %v1156, %v1155
  %v1162 = vsel %vm96, %v1148, 0
  %1164 = vmatprep.subr.bf16.mxu0 0
  %1165 = vmatpush1.bf16.msra.mxu0 0
  %1166 = vmatprep.subr.bf16.mxu0 0
  %1167 = vmatpush1.bf16.msra.mxu0 0
  %1168 = vmatprep.subr.bf16.mxu0 0
  %1169 = vmatpush1.bf16.msra.mxu0 0
  %1170 = vmatprep.subr.bf16.mxu0 0
  %1171 = vmatpush1.bf16.msra.mxu0 0
  %1172 = vmatprep.subr.bf16.mxu0 0
  %1173 = vmatpush1.bf16.msra.mxu0 0
  %1174 = vmatprep.subr.bf16.mxu0 0
  %1175 = vmatpush1.bf16.msra.mxu0 0
  %1176 = vmatprep.subr.bf16.mxu0 0
  %1177 = vmatpush1.bf16.msra.mxu0 %v1158
  %1178 = vmatprep.subr.bf16.mxu0 0
  %1179 = vmatpush1.bf16.msra.mxu0 %v1157
  %1180 = vmatprep.subr.bf16.mxu0 0
  %1181 = vmatpush2.bf16.msra.mxu0 0
  %1182 = vmatprep.subr.bf16.mxu0 0
  %1183 = vmatpush2.bf16.msra.mxu0 0
  %1184 = vmatprep.subr.bf16.mxu0 0
  %1185 = vmatpush2.bf16.msra.mxu0 0
  %1186 = vmatprep.subr.bf16.mxu0 0
  %1187 = vmatpush2.bf16.msra.mxu0 0
  %1188 = vmatprep.subr.bf16.mxu0 0
  %1189 = vmatpush2.bf16.msra.mxu0 0
  %1190 = vmatprep.subr.bf16.mxu0 0
  %1191 = vmatpush2.bf16.msra.mxu0 0
  %1192 = vmatprep.subr.bf16.mxu0 0
  %1193 = vmatpush2.bf16.msra.mxu0 0
  %1194 = vmatprep.subr.bf16.mxu0 0
  %1195 = vmatpush2.bf16.msra.mxu0 0
  %1196 = vmatprep.mubr.bf16.mxu0 0
  %1197 = vmatmul.mubr.bf16.gmra.mxu0 %v1162
  %v1198 = vpop.f32.mrf.mxu0
  %v1199 = vadd.f32 %v1144, %v1198
  %v1200 = vpop.f32.mrf.mxu0
  %v1201 = vpop.f32.mrf.mxu0
  %v1202 = vpop.f32.mrf.mxu0
  %1203 = vdwg.mxu0
  %v1204 = vmul.f32 %v1199, 0.01
  %vm1205 = vcmask 253952
  %1206 = vst.msk [vmem:[%s22] sm:$0x1] %vm1205, %v1204
  // Predicated region
  $region86: #{_lambda_.5} parent=0 // pred_check
    _
  $region87: #{_lambda_.5} parent=0 // pred_check_branch
    %1208 = sbr.rel (0) target = $region89
  $region88: #{_lambda_.5} parent=0 // pred_region
    _
  $region89: #{_lambda_.5} parent=0 // pred_fallthru
    _
  // Predicated region
  $region90: #{_lambda_.5} parent=0 // pred_check
    _
  $region91: #{_lambda_.5} parent=0 // pred_check_branch
    %1210 = sbr.rel (0) target = $region93
  $region92: #{_lambda_.5} parent=0 // pred_region
    _
  $region93: #{_lambda_.5} parent=0 // pred_fallthru
    _
  // Predicated region
  $region94: #{_lambda_.5} parent=0 // pred_check
    _
  $region95: #{_lambda_.5} parent=0 // pred_check_branch
    %1212 = sbr.rel (0) target = $region97
  $region96: #{_lambda_.5} parent=0 // pred_region
    _
  $region97: #{_lambda_.5} parent=0 // pred_fallthru
    _
  // Predicated region
  $region98: #{_lambda_.5} parent=0 // pred_check
    _
  $region99: #{_lambda_.5} parent=0 // pred_check_branch
    %1214 = sbr.rel (0) target = $region101
  $region100: #{_lambda_.5} parent=0 // pred_region
    _
  $region101: #{_lambda_.5} parent=0 // pred_fallthru
    _

// kernel: _lambda_.7
$region0: #{_lambda_.7}
  #allocation0 [shape = 'u32[]', space=smem, size = 0x4, offset = 0x4, fixed_abs, tag = 'smem constant byte address 0x4 - core index']
  #allocation1 [shape = 'u32[144,128]{1,0:T(1,128)}', space=vmem, size = 0x12000, scoped, tag = 'internal scratch']
  %s0 = inlined_call_operand.vmem [shape: bf16[2,16,192], index: 0, kind: input, shape index: {}]
  %s1 = inlined_call_operand.vmem [shape: bf16[192,32], index: 1, kind: input, shape index: {}]
  %s2 = inlined_call_operand.vmem [shape: f32[1,32], index: 2, kind: input, shape index: {}]
  %s3 = inlined_call_operand.vmem [shape: f32[1,17,32], index: 3, kind: input, shape index: {}]
  %s4 = inlined_call_operand.vmem [shape: f32[1,1,32], index: 4, kind: input, shape index: {}]
  %s5 = inlined_call_operand.vmem [shape: f32[2,17,32], index: 5, kind: output, shape index: {}]
  %s6 = sld [smem:[#allocation0]]
  $region53: #{_lambda_.7} parent=0
    _
  %s8 = ssub.s32 1, %s6
  %s9 = scalar_select 0, %s8, %s6
  loop: start=0, step=1, limit=4
  $region2: #{_lambda_.7} parent=0 // loop_pre_header
    _
  $region3: #{_lambda_.7} parent=0 // loop_header
    %s11 = sphi 0, %s15
    %p12 = scmp.ge.s32.totalorder %s11, 4
    %s21 = sphi 0, %s23
    %s24 = sphi 0, %s21
    %s25 = sphi 0, %s24
    %s41 = sphi 0, %s25
    %s45 = sphi 0, %s45
    %s47 = sphi 0, %s45
    %s48 = sphi 0, %s47
    %s62 = sphi 0, %s48
    %s66 = sphi 0, %s66
    %s68 = sphi 0, %s66
    %s69 = sphi 0, %s68
    %s83 = sphi 0, %s69
    %s87 = sphi 0, %s87
    %s89 = sphi 0, %s87
    %s90 = sphi 0, %s89
    %s104 = sphi 0, %s90
    %s108 = sphi 0, %s108
    %s110 = sphi 0, %s108
    %s111 = sphi 0, %s110
    %s125 = sphi 0, %s111
    %s131 = sphi 0, %s133
    %s134 = sphi 0, %s131
    %s135 = sphi 0, %s134
    %s151 = sphi 0, %s135
  $region4: #{_lambda_.7} parent=0 // loop_header_branch
    %14 = sbr.rel (%p12) target = $region8
  $region5: #{_lambda_.7} parent=0 // loop_body
    %s16 = ssub.s32 %s11, 1
    %s17 = ssub.s32 %s11, 2
    %s18 = sadd.s32 %s11, 1
    %s19 = ssub.s32 %s11, %s18
    %p20 = scmp.eq.s32.totalorder %s19, 0
    %s22 = sadd.s32 %s21, 1
    %s23 = scalar_select %p20, %s21, %s22
    %p26 = pneg %p20
    %p27 = scmp.eq.s32.totalorder %s11, 1
    %p28 = por %p26, %p27
    %p29 = scmp.ne.s32.totalorder %s21, %s24
    %p30 = scmp.eq.s32.totalorder %s11, 0
    %p31 = por %p29, %p30
    %p32 = scmp.ne.s32.totalorder %s21, %s24
    %p33 = scmp.eq.s32.totalorder %s16, 1
    %p34 = por %p32, %p33
    %p35 = scmp.ne.s32.totalorder %s24, %s25
    %p36 = scmp.eq.s32.totalorder %s16, 0
    %p37 = por %p35, %p36
    %p38 = scmp.ne.s32.totalorder %s24, %s25
    %p39 = scmp.eq.s32.totalorder %s17, 1
    %p40 = por %p38, %p39
    %p42 = scmp.ne.s32.totalorder %s25, %s41
    %p43 = scmp.eq.s32.totalorder %s17, 0
    %p44 = por %p42, %p43
    %s46 = sadd.s32 %s45, 1
    %p49 = scmp.eq.s32.totalorder %s11, 1
    %p50 = scmp.ne.s32.totalorder %s45, %s47
    %p51 = scmp.eq.s32.totalorder %s11, 0
    %p52 = por %p50, %p51
    %p53 = scmp.ne.s32.totalorder %s45, %s47
    %p54 = scmp.eq.s32.totalorder %s16, 1
    %p55 = por %p53, %p54
    %p56 = scmp.ne.s32.totalorder %s47, %s48
    %p57 = scmp.eq.s32.totalorder %s16, 0
    %p58 = por %p56, %p57
    %p59 = scmp.ne.s32.totalorder %s47, %s48
    %p60 = scmp.eq.s32.totalorder %s17, 1
    %p61 = por %p59, %p60
    %p63 = scmp.ne.s32.totalorder %s48, %s62
    %p64 = scmp.eq.s32.totalorder %s17, 0
    %p65 = por %p63, %p64
    %s67 = sadd.s32 %s66, 1
    %p70 = scmp.eq.s32.totalorder %s11, 1
    %p71 = scmp.ne.s32.totalorder %s66, %s68
    %p72 = scmp.eq.s32.totalorder %s11, 0
    %p73 = por %p71, %p72
    %p74 = scmp.ne.s32.totalorder %s66, %s68
    %p75 = scmp.eq.s32.totalorder %s16, 1
    %p76 = por %p74, %p75
    %p77 = scmp.ne.s32.totalorder %s68, %s69
    %p78 = scmp.eq.s32.totalorder %s16, 0
    %p79 = por %p77, %p78
    %p80 = scmp.ne.s32.totalorder %s68, %s69
    %p81 = scmp.eq.s32.totalorder %s17, 1
    %p82 = por %p80, %p81
    %p84 = scmp.ne.s32.totalorder %s69, %s83
    %p85 = scmp.eq.s32.totalorder %s17, 0
    %p86 = por %p84, %p85
    %s88 = sadd.s32 %s87, 1
    %p91 = scmp.eq.s32.totalorder %s11, 1
    %p92 = scmp.ne.s32.totalorder %s87, %s89
    %p93 = scmp.eq.s32.totalorder %s11, 0
    %p94 = por %p92, %p93
    %p95 = scmp.ne.s32.totalorder %s87, %s89
    %p96 = scmp.eq.s32.totalorder %s16, 1
    %p97 = por %p95, %p96
    %p98 = scmp.ne.s32.totalorder %s89, %s90
    %p99 = scmp.eq.s32.totalorder %s16, 0
    %p100 = por %p98, %p99
    %p101 = scmp.ne.s32.totalorder %s89, %s90
    %p102 = scmp.eq.s32.totalorder %s17, 1
    %p103 = por %p101, %p102
    %p105 = scmp.ne.s32.totalorder %s90, %s104
    %p106 = scmp.eq.s32.totalorder %s17, 0
    %p107 = por %p105, %p106
    %s109 = sadd.s32 %s108, 1
    %p112 = scmp.eq.s32.totalorder %s11, 1
    %p113 = scmp.ne.s32.totalorder %s108, %s110
    %p114 = scmp.eq.s32.totalorder %s11, 0
    %p115 = por %p113, %p114
    %p116 = scmp.ne.s32.totalorder %s108, %s110
    %p117 = scmp.eq.s32.totalorder %s16, 1
    %p118 = por %p116, %p117
    %p119 = scmp.ne.s32.totalorder %s110, %s111
    %p120 = scmp.eq.s32.totalorder %s16, 0
    %p121 = por %p119, %p120
    %p122 = scmp.ne.s32.totalorder %s110, %s111
    %p123 = scmp.eq.s32.totalorder %s17, 1
    %p124 = por %p122, %p123
    %p126 = scmp.ne.s32.totalorder %s111, %s125
    %p127 = scmp.eq.s32.totalorder %s17, 0
    %p128 = por %p126, %p127
    %s129 = ssub.s32 %s11, %s18
    %p130 = scmp.eq.s32.totalorder %s129, 0
    %s132 = sadd.s32 %s131, 1
    %s133 = scalar_select %p130, %s131, %s132
    %p136 = pneg %p130
    %p137 = scmp.eq.s32.totalorder %s11, 1
    %p138 = por %p136, %p137
    %p139 = scmp.ne.s32.totalorder %s131, %s134
    %p140 = scmp.eq.s32.totalorder %s11, 0
    %p141 = por %p139, %p140
    %p142 = scmp.ne.s32.totalorder %s131, %s134
    %p143 = scmp.eq.s32.totalorder %s16, 1
    %p144 = por %p142, %p143
    %p145 = scmp.ne.s32.totalorder %s134, %s135
    %p146 = scmp.eq.s32.totalorder %s16, 0
    %p147 = por %p145, %p146
    %p148 = scmp.ne.s32.totalorder %s134, %s135
    %p149 = scmp.eq.s32.totalorder %s17, 1
    %p150 = por %p148, %p149
    %p152 = scmp.ne.s32.totalorder %s135, %s151
    %p153 = scmp.eq.s32.totalorder %s17, 0
    %p154 = por %p152, %p153
    %p155 = scmp.le.s32.totalorder 1, %s11
    %p156 = scmp.lt.s32.totalorder %s11, 3
    %p157 = pnand %p155, %p156
    %p158 = pneg %p157
    // Predicated region
    $region9: #{_lambda_.7} parent=5 // pred_check
      _
    $region10: #{_lambda_.7} parent=5 // pred_check_branch
      %160 = sbr.rel (%p157) target = $region12
    $region11: #{_lambda_.7} parent=5 // pred_region
      %s161 = ssub.s32 %s11, 1
      // Predicated region
      $region13: #{_lambda_.7} parent=11 // pred_check
        %p162 = pneg %p58
      $region14: #{_lambda_.7} parent=11 // pred_check_branch
        %164 = sbr.rel (%p162) target = $region16
      $region15: #{_lambda_.7} parent=11 // pred_region
        _
      $region16: #{_lambda_.7} parent=11 // pred_fallthru
        _
      // Predicated region
      $region17: #{_lambda_.7} parent=11 // pred_check
        %p165 = pneg %p79
      $region18: #{_lambda_.7} parent=11 // pred_check_branch
        %167 = sbr.rel (%p165) target = $region20
      $region19: #{_lambda_.7} parent=11 // pred_region
        _
      $region20: #{_lambda_.7} parent=11 // pred_fallthru
        _
      // Predicated region
      $region21: #{_lambda_.7} parent=11 // pred_check
        %p168 = pneg %p100
      $region22: #{_lambda_.7} parent=11 // pred_check_branch
        %170 = sbr.rel (%p168) target = $region24
      $region23: #{_lambda_.7} parent=11 // pred_region
        _
      $region24: #{_lambda_.7} parent=11 // pred_fallthru
        _
      // Predicated region
      $region25: #{_lambda_.7} parent=11 // pred_check
        %p171 = pneg %p121
      $region26: #{_lambda_.7} parent=11 // pred_check_branch
        %173 = sbr.rel (%p171) target = $region28
      $region27: #{_lambda_.7} parent=11 // pred_region
        _
      $region28: #{_lambda_.7} parent=11 // pred_fallthru
        _
    $region12: #{_lambda_.7} parent=5 // pred_fallthru
      _
    %p174 = scmp.lt.s32.totalorder %s11, 2
    // Predicated region
    $region29: #{_lambda_.7} parent=5 // pred_check
      %p175 = pneg %p174
    $region30: #{_lambda_.7} parent=5 // pred_check_branch
      %177 = sbr.rel (%p175) target = $region32
    $region31: #{_lambda_.7} parent=5 // pred_region
      // Predicated region
      $region33: #{_lambda_.7} parent=31 // pred_check
        %p178 = pneg %p31
      $region34: #{_lambda_.7} parent=31 // pred_check_branch
        %180 = sbr.rel (%p178) target = $region36
      $region35: #{_lambda_.7} parent=31 // pred_region
        %p181 = scmp.lt.s32.totalorder %s11, 1
        %s182 = scalar_select %p181, %s11, 1
        %s183 = smul.addr %s182, 4
        %s184 = smul.addr %s183, 4
        %s185 = scalar_lea.vmem %s0, %s184
      $region36: #{_lambda_.7} parent=31 // pred_fallthru
        _
    $region32: #{_lambda_.7} parent=5 // pred_fallthru
      _
    %p186 = scmp.le.s32.totalorder 1, %s11
    %p187 = scmp.lt.s32.totalorder %s11, 3
    %p188 = pnand %p186, %p187
    %p189 = pneg %p188
    // Predicated region
    $region37: #{_lambda_.7} parent=5 // pred_check
      _
    $region38: #{_lambda_.7} parent=5 // pred_check_branch
      %191 = sbr.rel (%p188) target = $region40
    $region39: #{_lambda_.7} parent=5 // pred_region
      %s192 = ssub.s32 %s11, 1
      %p193 = scmp.lt.s32.totalorder %s16, 1
      %s194 = scalar_select %p193, %s16, 1
      %s195 = smul.addr %s194, 4
      %s196 = smul.addr %s195, 4
      %s197 = scalar_lea.vmem %s0, %s196
      %p198 = pneg %p37
      %p199 = pneg %p34
      %p200 = pneg %p58
      %p201 = pneg %p55
      %p202 = pneg %p79
      %p203 = pneg %p76
      %p204 = pneg %p100
      %p205 = pneg %p97
      %p206 = pneg %p121
      %p207 = pneg %p118
      %p208 = pneg %p147
      %p209 = pneg %p144
      %p210 = scmp.lt.s32.totalorder %s16, 1
      %s211 = scalar_select %p210, %s16, 1
      %s212 = smul.addr %s211, 3
      %s213 = smul.addr %s212, 8
      %s214 = scalar_lea.vmem %s5, %s213
      %p215 = scmp.lt.s32.totalorder %s16, 1
      %s216 = scalar_select %p215, %s16, 1
      %s217 = smul.addr %s216, 4
      %s218 = smul.addr %s217, 4
      %s219 = scalar_lea.vmem %s0, %s218
      %p220 = scmp.lt.s32.totalorder %s16, 1
      %s221 = scalar_select %p220, %s16, 1
      %s222 = smul.addr %s221, 3
      %s223 = smul.addr %s222, 8
      %s224 = scalar_lea.vmem %s5, %s223
      %v226 = vld [vmem:[%s219] sm:$0xff]
      %v227 = vld [vmem:[%s219 + $0x8] sm:$0xff]
      %v228 = vld [vmem:[%s1] sm:$0xf]
      %v229 = vld [vmem:[%s1 + $0x4] sm:$0xf]
      %v230 = vld [vmem:[%s1 + $0x8] sm:$0xf]
      %v231 = vld [vmem:[%s1 + $0xc] sm:$0xf]
      %v232 = vld [vmem:[%s1 + $0x10] sm:$0xf]
      %v233 = vld [vmem:[%s1 + $0x14] sm:$0xf]
      %v234 = vld [vmem:[%s1 + $0x18] sm:$0xf]
      %v235 = vld [vmem:[%s1 + $0x1c] sm:$0xf]
      %v236 = vld [vmem:[%s1 + $0x20] sm:$0xf]
      %v237 = vld [vmem:[%s1 + $0x24] sm:$0xf]
      %v238 = vld [vmem:[%s1 + $0x28] sm:$0xf]
      %v239 = vld [vmem:[%s1 + $0x2c] sm:$0xf]
      %v240 = vld [vmem:[%s1 + $0x30] sm:$0xf]
      %v241 = vld [vmem:[%s1 + $0x34] sm:$0xf]
      %v242 = vld [vmem:[%s1 + $0x38] sm:$0xf]
      %v243 = vld [vmem:[%s1 + $0x3c] sm:$0xf]
      %v244 = vld [vmem:[%s1 + $0x40] sm:$0xf]
      %v245 = vld [vmem:[%s1 + $0x44] sm:$0xf]
      %v246 = vld [vmem:[%s1 + $0x48] sm:$0xf]
      %v247 = vld [vmem:[%s1 + $0x4c] sm:$0xf]
      %v248 = vld [vmem:[%s1 + $0x50] sm:$0xf]
      %v249 = vld [vmem:[%s1 + $0x54] sm:$0xf]
      %v250 = vld [vmem:[%s1 + $0x58] sm:$0xf]
      %v251 = vld [vmem:[%s1 + $0x5c] sm:$0xf]
      %v252 = vld [vmem:[%s2] sm:$0x1]
      %v254 = vlaneseq
      %v255 = vshrl.u32 %v254, 7
      %v256 = vsub.s32 0, %v255
      %v257 = vrot.slane %v252, %v256
      %v261 = vunpack.c.l.b16 %v226
      %v262 = vunpack.c.h.b16 %v226
      %v263 = vunpack.c.l.b16 %v227
      %v264 = vunpack.c.h.b16 %v227
      %v265 = vpack.c.b16 %v263, %v261
      %v266 = vpack.c.b16 %v264, %v262
      %v292 = vunpack.c.l.b16 %v228
      %v293 = vunpack.c.l.b16 %v229
      %v294 = vunpack.c.l.b16 %v230
      %v295 = vunpack.c.l.b16 %v231
      %v296 = vunpack.c.l.b16 %v232
      %v297 = vunpack.c.l.b16 %v233
      %v298 = vunpack.c.l.b16 %v234
      %v299 = vunpack.c.l.b16 %v235
      %v300 = vunpack.c.l.b16 %v236
      %v301 = vunpack.c.l.b16 %v237
      %v302 = vunpack.c.l.b16 %v238
      %v303 = vunpack.c.l.b16 %v239
      %v304 = vunpack.c.l.b16 %v240
      %v305 = vunpack.c.l.b16 %v241
      %v306 = vunpack.c.l.b16 %v242
      %v307 = vunpack.c.l.b16 %v243
      %v308 = vunpack.c.l.b16 %v244
      %v309 = vunpack.c.l.b16 %v245
      %v310 = vunpack.c.l.b16 %v246
      %v311 = vunpack.c.l.b16 %v247
      %v312 = vunpack.c.l.b16 %v248
      %v313 = vunpack.c.l.b16 %v249
      %v314 = vunpack.c.l.b16 %v250
      %v315 = vunpack.c.l.b16 %v251
      %v316 = vpack.c.b16 %v293, %v292
      %v317 = vpack.c.b16 %v295, %v294
      %v318 = vpack.c.b16 %v297, %v296
      %v319 = vpack.c.b16 %v299, %v298
      %v320 = vpack.c.b16 %v301, %v300
      %v321 = vpack.c.b16 %v303, %v302
      %v322 = vpack.c.b16 %v305, %v304
      %v323 = vpack.c.b16 %v307, %v306
      %v324 = vpack.c.b16 %v309, %v308
      %v325 = vpack.c.b16 %v311, %v310
      %v326 = vpack.c.b16 %v313, %v312
      %v327 = vpack.c.b16 %v315, %v314
      %vm340 = vcmask 523264
      %v342 = vsel %vm340, %v266, 0
      %344 = vmatprep.subr.bf16.mxu0 0
      %345 = vmatpush1.bf16.msra.mxu0 %v323
      %346 = vmatprep.subr.bf16.mxu0 0
      %347 = vmatpush1.bf16.msra.mxu0 %v322
      %348 = vmatprep.subr.bf16.mxu0 0
      %349 = vmatpush1.bf16.msra.mxu0 %v321
      %350 = vmatprep.subr.bf16.mxu0 0
      %351 = vmatpush1.bf16.msra.mxu0 %v320
      %352 = vmatprep.subr.bf16.mxu0 0
      %353 = vmatpush1.bf16.msra.mxu0 %v319
      %354 = vmatprep.subr.bf16.mxu0 0
      %355 = vmatpush1.bf16.msra.mxu0 %v318
      %356 = vmatprep.subr.bf16.mxu0 0
      %357 = vmatpush1.bf16.msra.mxu0 %v317
      %358 = vmatprep.subr.bf16.mxu0 0
      %359 = vmatpush1.bf16.msra.mxu0 %v316
      %360 = vmatprep.subr.bf16.mxu0 0
      %361 = vmatpush2.bf16.msra.mxu0 0
      %362 = vmatprep.subr.bf16.mxu0 0
      %363 = vmatpush2.bf16.msra.mxu0 0
      %364 = vmatprep.subr.bf16.mxu0 0
      %365 = vmatpush2.bf16.msra.mxu0 0
      %366 = vmatprep.subr.bf16.mxu0 0
      %367 = vmatpush2.bf16.msra.mxu0 0
      %368 = vmatprep.subr.bf16.mxu0 0
      %369 = vmatpush2.bf16.msra.mxu0 %v327
      %370 = vmatprep.subr.bf16.mxu0 0
      %371 = vmatpush2.bf16.msra.mxu0 %v326
      %372 = vmatprep.subr.bf16.mxu0 0
      %373 = vmatpush2.bf16.msra.mxu0 %v325
      %374 = vmatprep.subr.bf16.mxu0 0
      %375 = vmatpush2.bf16.msra.mxu0 %v324
      %376 = vmatprep.mubr.bf16.mxu0 %v342
      %377 = vmatmul.mubr.bf16.gmra.mxu0 %v265
      %v378 = vpop.f32.mrf.mxu0
      %v379 = vadd.f32 %v257, %v378
      %v380 = vpop.f32.mrf.mxu0
      %v381 = vpop.f32.mrf.mxu0
      %v382 = vadd.f32 %v257, %v381
      %v383 = vpop.f32.mrf.mxu0
      %384 = vdwg.mxu0
      %v385 = vld [vmem:[%s3] sm:$0xff]
      %v386 = vld [vmem:[%s3 + $0x8] sm:$0xff]
      %v387 = vld [vmem:[%s3 + $0x10] sm:$0x1]
      %v388 = vld [vmem:[%s4] sm:$0x1]
      %v389 = vadd.f32 %v388, %v385
      %vm390 = vcmask 253952
      %391 = vst.msk [vmem:[%s224] sm:$0x1] %vm390, %v389
      %vm395 = vcmask 1046528
      %v396 = vrot.slane %v385, 1
      %v397 = vrot.slane %v386, 1
      %v398 = vsel %vm395, %v396, %v397
      %v399 = vrot.slane %v387, 1
      %v400 = vsel %vm395, %v397, %v399
      %v403 = vadd.f32 %v379, %v398
      %v404 = vadd.f32 %v382, %v400
      %vm405 = vcmask 261120
      %406 = vst.msk [vmem:[%s224 + $0x1] sm:$0xff] %vm405, %v403
      %407 = vst.msk [vmem:[%s224 + $0x9] sm:$0xff] %vm405, %v404
      %p408 = scmp.lt.s32.totalorder %s16, 1
      %s409 = scalar_select %p408, %s16, 1
      %s410 = smul.addr %s409, 3
      %s411 = smul.addr %s410, 8
      %s412 = scalar_lea.vmem %s5, %s411
      // Predicated region
      $region41: #{_lambda_.7} parent=39 // pred_check
        %p413 = pneg %p144
      $region42: #{_lambda_.7} parent=39 // pred_check_branch
        %415 = sbr.rel (%p413) target = $region44
      $region43: #{_lambda_.7} parent=39 // pred_region
        _
      $region44: #{_lambda_.7} parent=39 // pred_fallthru
        _
    $region40: #{_lambda_.7} parent=5 // pred_fallthru
      _
    %p416 = scmp.le.s32.totalorder 2, %s11
    // Predicated region
    $region45: #{_lambda_.7} parent=5 // pred_check
      %p417 = pneg %p416
    $region46: #{_lambda_.7} parent=5 // pred_check_branch
      %419 = sbr.rel (%p417) target = $region48
    $region47: #{_lambda_.7} parent=5 // pred_region
      %s420 = ssub.s32 %s11, 2
      // Predicated region
      $region49: #{_lambda_.7} parent=47 // pred_check
        %p421 = pneg %p150
      $region50: #{_lambda_.7} parent=47 // pred_check_branch
        %423 = sbr.rel (%p421) target = $region52
      $region51: #{_lambda_.7} parent=47 // pred_region
        %p424 = scmp.lt.s32.totalorder %s17, 1
        %s425 = scalar_select %p424, %s17, 1
        %s426 = smul.addr %s425, 3
        %s427 = smul.addr %s426, 8
        %s428 = scalar_lea.vmem %s5, %s427
      $region52: #{_lambda_.7} parent=47 // pred_fallthru
        _
    $region48: #{_lambda_.7} parent=5 // pred_fallthru
      _
  $region6: #{_lambda_.7} parent=0 // loop_footer
    %s15 = sadd.s32 1, %s11
  $region7: #{_lambda_.7} parent=0 // loop_footer_branch
    %10 = sbr.rel target = $region3
  $region8: #{_lambda_.7} parent=0 // loop_exit
    _

// kernel: _lambda_.9
$region0: #{_lambda_.9}
  #allocation0 [shape = 'u32[]', space=smem, size = 0x4, offset = 0x4, fixed_abs, tag = 'smem constant byte address 0x4 - core index']
  #allocation1 [shape = 'u32[144,128]{1,0:T(1,128)}', space=vmem, size = 0x12000, scoped, tag = 'internal scratch']
  %s0 = inlined_call_operand.vmem [shape: f32[2,17,32], index: 0, kind: input, shape index: {}]
  %s1 = inlined_call_operand.vmem [shape: f32[1,32], index: 1, kind: input, shape index: {}]
  %s2 = inlined_call_operand.vmem [shape: f32[1,32], index: 2, kind: input, shape index: {}]
  %s3 = inlined_call_operand.vmem [shape: bf16[32,10], index: 3, kind: input, shape index: {}]
  %s4 = inlined_call_operand.vmem [shape: f32[1,10], index: 4, kind: input, shape index: {}]
  %s5 = inlined_call_operand.hbm [shape: f32[2,1,10], index: 5, kind: output, shape index: {}]
  %s6 = sld [smem:[#allocation0]]
  $region53: #{_lambda_.9} parent=0
    _
  %s8 = ssub.s32 1, %s6
  %s9 = scalar_select 0, %s8, %s6
  $region1: #{_lambda_.9} parent=0
    #allocation2 [shape = 'u8[1024]{0}', space=vmem, size = 0x400, scoped, tag = 'output window, operand 0']
    #allocation3 [shape = 's32[2]{0}', space=sflag, size = 0x8, scoped, tag = 'scoped memory for _lambda_.9']
    %10 = vsyncpa [#allocation3], 0
    %s11 = scalar_lea.sflag [#allocation3], 1
    %12 = vsyncpa %s11, 0
    loop: start=0, step=1, limit=4
    $region2: #{_lambda_.9} parent=1 // loop_pre_header
      _
    $region3: #{_lambda_.9} parent=1 // loop_header
      %s14 = sphi 0, %s18
      %p15 = scmp.ge.s32.totalorder %s14, 4
      %s24 = sphi 0, %s26
      %s27 = sphi 0, %s24
      %s28 = sphi 0, %s27
      %s44 = sphi 0, %s28
      %s48 = sphi 0, %s48
      %s50 = sphi 0, %s48
      %s51 = sphi 0, %s50
      %s65 = sphi 0, %s51
      %s69 = sphi 0, %s69
      %s71 = sphi 0, %s69
      %s72 = sphi 0, %s71
      %s86 = sphi 0, %s72
      %s90 = sphi 0, %s90
      %s92 = sphi 0, %s90
      %s93 = sphi 0, %s92
      %s107 = sphi 0, %s93
      %s111 = sphi 0, %s111
      %s113 = sphi 0, %s111
      %s114 = sphi 0, %s113
      %s128 = sphi 0, %s114
      %s134 = sphi 0, %s136
      %s137 = sphi 0, %s134
      %s138 = sphi 0, %s137
      %s154 = sphi 0, %s138
    $region4: #{_lambda_.9} parent=1 // loop_header_branch
      %17 = sbr.rel (%p15) target = $region8
    $region5: #{_lambda_.9} parent=1 // loop_body
      %s19 = ssub.s32 %s14, 1
      %s20 = ssub.s32 %s14, 2
      %s21 = sadd.s32 %s14, 1
      %s22 = ssub.s32 %s14, %s21
      %p23 = scmp.eq.s32.totalorder %s22, 0
      %s25 = sadd.s32 %s24, 1
      %s26 = scalar_select %p23, %s24, %s25
      %p29 = pneg %p23
      %p30 = scmp.eq.s32.totalorder %s14, 1
      %p31 = por %p29, %p30
      %p32 = scmp.ne.s32.totalorder %s24, %s27
      %p33 = scmp.eq.s32.totalorder %s14, 0
      %p34 = por %p32, %p33
      %p35 = scmp.ne.s32.totalorder %s24, %s27
      %p36 = scmp.eq.s32.totalorder %s19, 1
      %p37 = por %p35, %p36
      %p38 = scmp.ne.s32.totalorder %s27, %s28
      %p39 = scmp.eq.s32.totalorder %s19, 0
      %p40 = por %p38, %p39
      %p41 = scmp.ne.s32.totalorder %s27, %s28
      %p42 = scmp.eq.s32.totalorder %s20, 1
      %p43 = por %p41, %p42
      %p45 = scmp.ne.s32.totalorder %s28, %s44
      %p46 = scmp.eq.s32.totalorder %s20, 0
      %p47 = por %p45, %p46
      %s49 = sadd.s32 %s48, 1
      %p52 = scmp.eq.s32.totalorder %s14, 1
      %p53 = scmp.ne.s32.totalorder %s48, %s50
      %p54 = scmp.eq.s32.totalorder %s14, 0
      %p55 = por %p53, %p54
      %p56 = scmp.ne.s32.totalorder %s48, %s50
      %p57 = scmp.eq.s32.totalorder %s19, 1
      %p58 = por %p56, %p57
      %p59 = scmp.ne.s32.totalorder %s50, %s51
      %p60 = scmp.eq.s32.totalorder %s19, 0
      %p61 = por %p59, %p60
      %p62 = scmp.ne.s32.totalorder %s50, %s51
      %p63 = scmp.eq.s32.totalorder %s20, 1
      %p64 = por %p62, %p63
      %p66 = scmp.ne.s32.totalorder %s51, %s65
      %p67 = scmp.eq.s32.totalorder %s20, 0
      %p68 = por %p66, %p67
      %s70 = sadd.s32 %s69, 1
      %p73 = scmp.eq.s32.totalorder %s14, 1
      %p74 = scmp.ne.s32.totalorder %s69, %s71
      %p75 = scmp.eq.s32.totalorder %s14, 0
      %p76 = por %p74, %p75
      %p77 = scmp.ne.s32.totalorder %s69, %s71
      %p78 = scmp.eq.s32.totalorder %s19, 1
      %p79 = por %p77, %p78
      %p80 = scmp.ne.s32.totalorder %s71, %s72
      %p81 = scmp.eq.s32.totalorder %s19, 0
      %p82 = por %p80, %p81
      %p83 = scmp.ne.s32.totalorder %s71, %s72
      %p84 = scmp.eq.s32.totalorder %s20, 1
      %p85 = por %p83, %p84
      %p87 = scmp.ne.s32.totalorder %s72, %s86
      %p88 = scmp.eq.s32.totalorder %s20, 0
      %p89 = por %p87, %p88
      %s91 = sadd.s32 %s90, 1
      %p94 = scmp.eq.s32.totalorder %s14, 1
      %p95 = scmp.ne.s32.totalorder %s90, %s92
      %p96 = scmp.eq.s32.totalorder %s14, 0
      %p97 = por %p95, %p96
      %p98 = scmp.ne.s32.totalorder %s90, %s92
      %p99 = scmp.eq.s32.totalorder %s19, 1
      %p100 = por %p98, %p99
      %p101 = scmp.ne.s32.totalorder %s92, %s93
      %p102 = scmp.eq.s32.totalorder %s19, 0
      %p103 = por %p101, %p102
      %p104 = scmp.ne.s32.totalorder %s92, %s93
      %p105 = scmp.eq.s32.totalorder %s20, 1
      %p106 = por %p104, %p105
      %p108 = scmp.ne.s32.totalorder %s93, %s107
      %p109 = scmp.eq.s32.totalorder %s20, 0
      %p110 = por %p108, %p109
      %s112 = sadd.s32 %s111, 1
      %p115 = scmp.eq.s32.totalorder %s14, 1
      %p116 = scmp.ne.s32.totalorder %s111, %s113
      %p117 = scmp.eq.s32.totalorder %s14, 0
      %p118 = por %p116, %p117
      %p119 = scmp.ne.s32.totalorder %s111, %s113
      %p120 = scmp.eq.s32.totalorder %s19, 1
      %p121 = por %p119, %p120
      %p122 = scmp.ne.s32.totalorder %s113, %s114
      %p123 = scmp.eq.s32.totalorder %s19, 0
      %p124 = por %p122, %p123
      %p125 = scmp.ne.s32.totalorder %s113, %s114
      %p126 = scmp.eq.s32.totalorder %s20, 1
      %p127 = por %p125, %p126
      %p129 = scmp.ne.s32.totalorder %s114, %s128
      %p130 = scmp.eq.s32.totalorder %s20, 0
      %p131 = por %p129, %p130
      %s132 = ssub.s32 %s14, %s21
      %p133 = scmp.eq.s32.totalorder %s132, 0
      %s135 = sadd.s32 %s134, 1
      %s136 = scalar_select %p133, %s134, %s135
      %p139 = pneg %p133
      %p140 = scmp.eq.s32.totalorder %s14, 1
      %p141 = por %p139, %p140
      %p142 = scmp.ne.s32.totalorder %s134, %s137
      %p143 = scmp.eq.s32.totalorder %s14, 0
      %p144 = por %p142, %p143
      %p145 = scmp.ne.s32.totalorder %s134, %s137
      %p146 = scmp.eq.s32.totalorder %s19, 1
      %p147 = por %p145, %p146
      %p148 = scmp.ne.s32.totalorder %s137, %s138
      %p149 = scmp.eq.s32.totalorder %s19, 0
      %p150 = por %p148, %p149
      %p151 = scmp.ne.s32.totalorder %s137, %s138
      %p152 = scmp.eq.s32.totalorder %s20, 1
      %p153 = por %p151, %p152
      %p155 = scmp.ne.s32.totalorder %s138, %s154
      %p156 = scmp.eq.s32.totalorder %s20, 0
      %p157 = por %p155, %p156
      %p158 = scmp.le.s32.totalorder 1, %s14
      %p159 = scmp.lt.s32.totalorder %s14, 3
      %p160 = pnand %p158, %p159
      %p161 = pneg %p160
      // Predicated region
      $region9: #{_lambda_.9} parent=5 // pred_check
        _
      $region10: #{_lambda_.9} parent=5 // pred_check_branch
        %163 = sbr.rel (%p160) target = $region12
      $region11: #{_lambda_.9} parent=5 // pred_region
        %s164 = ssub.s32 %s14, 1
        // Predicated region
        $region13: #{_lambda_.9} parent=11 // pred_check
          %p165 = pneg %p61
        $region14: #{_lambda_.9} parent=11 // pred_check_branch
          %167 = sbr.rel (%p165) target = $region16
        $region15: #{_lambda_.9} parent=11 // pred_region
          _
        $region16: #{_lambda_.9} parent=11 // pred_fallthru
          _
        // Predicated region
        $region17: #{_lambda_.9} parent=11 // pred_check
          %p168 = pneg %p82
        $region18: #{_lambda_.9} parent=11 // pred_check_branch
          %170 = sbr.rel (%p168) target = $region20
        $region19: #{_lambda_.9} parent=11 // pred_region
          _
        $region20: #{_lambda_.9} parent=11 // pred_fallthru
          _
        // Predicated region
        $region21: #{_lambda_.9} parent=11 // pred_check
          %p171 = pneg %p103
        $region22: #{_lambda_.9} parent=11 // pred_check_branch
          %173 = sbr.rel (%p171) target = $region24
        $region23: #{_lambda_.9} parent=11 // pred_region
          _
        $region24: #{_lambda_.9} parent=11 // pred_fallthru
          _
        // Predicated region
        $region25: #{_lambda_.9} parent=11 // pred_check
          %p174 = pneg %p124
        $region26: #{_lambda_.9} parent=11 // pred_check_branch
          %176 = sbr.rel (%p174) target = $region28
        $region27: #{_lambda_.9} parent=11 // pred_region
          _
        $region28: #{_lambda_.9} parent=11 // pred_fallthru
          _
      $region12: #{_lambda_.9} parent=5 // pred_fallthru
        _
      %p177 = scmp.lt.s32.totalorder %s14, 2
      // Predicated region
      $region29: #{_lambda_.9} parent=5 // pred_check
        %p178 = pneg %p177
      $region30: #{_lambda_.9} parent=5 // pred_check_branch
        %180 = sbr.rel (%p178) target = $region32
      $region31: #{_lambda_.9} parent=5 // pred_region
        // Predicated region
        $region33: #{_lambda_.9} parent=31 // pred_check
          %p181 = pneg %p34
        $region34: #{_lambda_.9} parent=31 // pred_check_branch
          %183 = sbr.rel (%p181) target = $region36
        $region35: #{_lambda_.9} parent=31 // pred_region
          %p184 = scmp.lt.s32.totalorder %s14, 1
          %s185 = scalar_select %p184, %s14, 1
          %s186 = smul.addr %s185, 3
          %s187 = smul.addr %s186, 8
          %s188 = scalar_lea.vmem %s0, %s187
        $region36: #{_lambda_.9} parent=31 // pred_fallthru
          _
      $region32: #{_lambda_.9} parent=5 // pred_fallthru
        _
      %p189 = scmp.le.s32.totalorder 1, %s14
      %p190 = scmp.lt.s32.totalorder %s14, 3
      %p191 = pnand %p189, %p190
      %p192 = pneg %p191
      // Predicated region
      $region37: #{_lambda_.9} parent=5 // pred_check
        _
      $region38: #{_lambda_.9} parent=5 // pred_check_branch
        %194 = sbr.rel (%p191) target = $region40
      $region39: #{_lambda_.9} parent=5 // pred_region
        %s195 = ssub.s32 %s14, 1
        %p196 = scmp.lt.s32.totalorder %s19, 1
        %s197 = scalar_select %p196, %s19, 1
        %s198 = smul.addr %s197, 3
        %s199 = smul.addr %s198, 8
        %s200 = scalar_lea.vmem %s0, %s199
        %p201 = pneg %p40
        %p202 = pneg %p37
        %p203 = pneg %p61
        %p204 = pneg %p58
        %p205 = pneg %p82
        %p206 = pneg %p79
        %p207 = pneg %p103
        %p208 = pneg %p100
        %p209 = pneg %p124
        %p210 = pneg %p121
        %p211 = pneg %p150
        %p212 = pneg %p147
        %s213 = sand.u32 %s137, 1
        %s214 = scalar_lea.sflag [#allocation3], %s213
        %s215 = sand.u32 %s137, 1
        %s216 = scalar_lea.vmem [#allocation2], %s215
        %p217 = scmp.lt.s32.totalorder %s19, 1
        %s218 = scalar_select %p217, %s19, 1
        %s219 = smul.addr %s218, 3
        %s220 = smul.addr %s219, 8
        %s221 = scalar_lea.vmem %s0, %s220
        %v223 = vld [vmem:[%s221] sm:$0xff]
        %v224 = vld [vmem:[%s221 + $0x8] sm:$0xff]
        %v225 = vld [vmem:[%s221 + $0x10] sm:$0x1]
        %vm226 = vcmask 261120
        %v227 = vsel %vm226, %v223, 0.0
        %v228 = vsel %vm226, %v224, 0.0
        %v229 = vadd.f32 %v227, %v228
        %vm230 = vcmask 253952
        %v231 = vsel %vm230, %v225, 0.0
        %v232 = vadd.f32 %v229, %v231
        %v233 = vrot.slane %v232, 4
        %v234 = vadd.f32 %v232, %v233
        %v235 = vrot.slane %v234, 2
        %v236 = vadd.f32 %v234, %v235
        %v237 = vrot.slane %v236, 1
        %v238 = vadd.f32 %v236, %v237
        %v239 = vsub.f32 %v238, %v223
        %v240 = vmul.f32 %v239, 0.0625
        %v241 = vld [vmem:[%s1] sm:$0x1]
        %v242 = vld [vmem:[%s2] sm:$0x1]
        %v243 = vsel %vm230, %v240, 0.0
        %244 = vadd.xlane.f32.xlu0 %v243
        %v245 = vpop.xlane.xlu0 %244
        %v246 = vrcp.pop 32.0
        %v247 = vmul.f32 %v245, %v246
        %v248 = vsub.f32 %v240, %v247
        %v249 = vmul.f32 %v248, %v248
        %v250 = vsel %vm230, %v249, 0.0
        %251 = vadd.xlane.f32.xlu0 %v250
        %v252 = vpop.xlane.xlu0 %251
        %v253 = vmul.f32 %v252, %v246
        %v254 = vadd.f32 %v253, 1e-05
        %v255 = vrsqrt.pop %v254
        %v256 = vmul.f32 %v248, %v255
        %v257 = vmul.f32 %v256, %v241
        %v258 = vadd.f32 %v257, %v242
        %v259 = vpack.c.bf16 %v258, %v258
        %v260 = vld [vmem:[%s3] sm:$0xf]
        %v261 = vld [vmem:[%s3 + $0x4] sm:$0xf]
        %v262 = vld [vmem:[%s3 + $0x8] sm:$0xf]
        %v263 = vld [vmem:[%s3 + $0xc] sm:$0xf]
        %v264 = vld [vmem:[%s4] sm:$0x1]
        %v269 = vunpack.c.l.b16 %v260
        %v270 = vunpack.c.l.b16 %v261
        %v271 = vunpack.c.l.b16 %v262
        %v272 = vunpack.c.l.b16 %v263
        %v273 = vpack.c.b16 %v270, %v269
        %v274 = vpack.c.b16 %v272, %v271
        %v278 = vsel %vm226, %v259, 0
        %280 = vmatprep.subr.bf16.mxu0 0
        %281 = vmatpush1.bf16.msra.mxu0 0
        %282 = vmatprep.subr.bf16.mxu0 0
        %283 = vmatpush1.bf16.msra.mxu0 0
        %284 = vmatprep.subr.bf16.mxu0 0
        %285 = vmatpush1.bf16.msra.mxu0 0
        %286 = vmatprep.subr.bf16.mxu0 0
        %287 = vmatpush1.bf16.msra.mxu0 0
        %288 = vmatprep.subr.bf16.mxu0 0
        %289 = vmatpush1.bf16.msra.mxu0 0
        %290 = vmatprep.subr.bf16.mxu0 0
        %291 = vmatpush1.bf16.msra.mxu0 0
        %292 = vmatprep.subr.bf16.mxu0 0
        %293 = vmatpush1.bf16.msra.mxu0 %v274
        %294 = vmatprep.subr.bf16.mxu0 0
        %295 = vmatpush1.bf16.msra.mxu0 %v273
        %296 = vmatprep.subr.bf16.mxu0 0
        %297 = vmatpush2.bf16.msra.mxu0 0
        %298 = vmatprep.subr.bf16.mxu0 0
        %299 = vmatpush2.bf16.msra.mxu0 0
        %300 = vmatprep.subr.bf16.mxu0 0
        %301 = vmatpush2.bf16.msra.mxu0 0
        %302 = vmatprep.subr.bf16.mxu0 0
        %303 = vmatpush2.bf16.msra.mxu0 0
        %304 = vmatprep.subr.bf16.mxu0 0
        %305 = vmatpush2.bf16.msra.mxu0 0
        %306 = vmatprep.subr.bf16.mxu0 0
        %307 = vmatpush2.bf16.msra.mxu0 0
        %308 = vmatprep.subr.bf16.mxu0 0
        %309 = vmatpush2.bf16.msra.mxu0 0
        %310 = vmatprep.subr.bf16.mxu0 0
        %311 = vmatpush2.bf16.msra.mxu0 0
        %312 = vmatprep.mubr.bf16.mxu0 0
        %313 = vmatmul.mubr.bf16.gmra.mxu0 %v278
        %v314 = vpop.f32.mrf.mxu0
        %v315 = vadd.f32 %v264, %v314
        %v316 = vpop.f32.mrf.mxu0
        %v317 = vpop.f32.mrf.mxu0
        %v318 = vpop.f32.mrf.mxu0
        %319 = vdwg.mxu0
        %vm320 = vcmask 73728
        %321 = vst.msk [vmem:[%s216] sm:$0x1] %vm320, %v315
        %s322 = sand.u32 %s137, 1
        %s323 = scalar_lea.sflag [#allocation3], %s322
        %s324 = sand.u32 %s137, 1
        %s325 = scalar_lea.vmem [#allocation2], %s324
        // Predicated region
        $region41: #{_lambda_.9} parent=39 // pred_check
          %p326 = pneg %p147
        $region42: #{_lambda_.9} parent=39 // pred_check_branch
          %328 = sbr.rel (%p326) target = $region44
        $region43: #{_lambda_.9} parent=39 // pred_region
          %s330 = ssub.s32 16, 16
          %331 = vsyncadd %s323, %s330
          %s332 = smul.addr %s19, 16
          %s333 = scalar_lea.hbm %s5, %s332
          %s335 = sshll.u32 %s325, 4
          %s336 = int_to_ptr.vmem [resolvable:$true] %s335
          %338 = dma.vmem_to_hbm [thread:$0]  %s336, 16, %s333, %s323
        $region44: #{_lambda_.9} parent=39 // pred_fallthru
          _
      $region40: #{_lambda_.9} parent=5 // pred_fallthru
        _
      %p339 = scmp.le.s32.totalorder 2, %s14
      // Predicated region
      $region45: #{_lambda_.9} parent=5 // pred_check
        %p340 = pneg %p339
      $region46: #{_lambda_.9} parent=5 // pred_check_branch
        %342 = sbr.rel (%p340) target = $region48
      $region47: #{_lambda_.9} parent=5 // pred_region
        %s343 = ssub.s32 %s14, 2
        // Predicated region
        $region49: #{_lambda_.9} parent=47 // pred_check
          %p344 = pneg %p153
        $region50: #{_lambda_.9} parent=47 // pred_check_branch
          %346 = sbr.rel (%p344) target = $region52
        $region51: #{_lambda_.9} parent=47 // pred_region
          %s347 = sand.u32 %s138, 1
          %s348 = scalar_lea.sflag [#allocation3], %s347
          %s349 = sand.u32 %s138, 1
          %s350 = scalar_lea.vmem [#allocation2], %s349
          %351 = dma.done %s348, 16
        $region52: #{_lambda_.9} parent=47 // pred_fallthru
          _
      $region48: #{_lambda_.9} parent=5 // pred_fallthru
        _
    $region6: #{_lambda_.9} parent=1 // loop_footer
      %s18 = sadd.s32 1, %s14
    $region7: #{_lambda_.9} parent=1 // loop_footer_branch
      %13 = sbr.rel target = $region3
    $region8: #{_lambda_.9} parent=1 // loop_exit
      _
    %352 = vsyncpa [#allocation3], 1
    %s353 = scalar_lea.sflag [#allocation3], 1
    %354 = vsyncpa %s353, 1

// kernel: _lambda_.8
$region0: #{_lambda_.8}
  #allocation0 [shape = 'u32[]', space=smem, size = 0x4, offset = 0x4, fixed_abs, tag = 'smem constant byte address 0x4 - core index']
  #allocation1 [shape = 'u32[144,128]{1,0:T(1,128)}', space=vmem, size = 0x12000, scoped, tag = 'internal scratch']
  #allocation2 [shape = 'f32[17,32]{1,0:T(8,128)}', space=vmem, size = 0x3000, scoped, tag = 'scratch operand']
  %s0 = inlined_call_operand.vmem [shape: f32[2,17,32], index: 0, kind: input, shape index: {}]
  %s1 = inlined_call_operand.vmem [shape: f32[2,1,32], index: 1, kind: input, shape index: {}]
  %s2 = inlined_call_operand.vmem [shape: f32[2,1,32], index: 2, kind: input, shape index: {}]
  %s3 = inlined_call_operand.vmem [shape: bf16[2,32,96], index: 3, kind: input, shape index: {}]
  %s4 = inlined_call_operand.vmem [shape: f32[2,1,96], index: 4, kind: input, shape index: {}]
  %s5 = inlined_call_operand.vmem [shape: bf16[2,32,32], index: 5, kind: input, shape index: {}]
  %s6 = inlined_call_operand.vmem [shape: f32[2,1,32], index: 6, kind: input, shape index: {}]
  %s7 = inlined_call_operand.vmem [shape: f32[2,1,32], index: 7, kind: input, shape index: {}]
  %s8 = inlined_call_operand.vmem [shape: f32[2,1,32], index: 8, kind: input, shape index: {}]
  %s9 = inlined_call_operand.vmem [shape: bf16[2,32,128], index: 9, kind: input, shape index: {}]
  %s10 = inlined_call_operand.vmem [shape: f32[2,1,128], index: 10, kind: input, shape index: {}]
  %s11 = inlined_call_operand.vmem [shape: bf16[2,128,32], index: 11, kind: input, shape index: {}]
  %s12 = inlined_call_operand.vmem [shape: f32[2,1,32], index: 12, kind: input, shape index: {}]
  %s13 = inlined_call_operand.vmem [shape: f32[2,17,32], index: 13, kind: output, shape index: {}]
  %s14 = sld [smem:[#allocation0]]
  $region93: #{_lambda_.8} parent=0
    _
  %s16 = ssub.s32 1, %s14
  %s17 = scalar_select 0, %s16, %s14
  loop: start=0, step=1, limit=6
  $region2: #{_lambda_.8} parent=0 // loop_pre_header
    _
  $region3: #{_lambda_.8} parent=0 // loop_header
    %s19 = sphi 0, %s23
    %p20 = scmp.ge.s32.totalorder %s19, 6
    %s26 = sphi 0, %s38
    %s27 = sphi 0, %s34
    %s28 = sphi 0, %s26
    %s29 = sphi 0, %s27
    %s30 = sphi 0, %s28
    %s31 = sphi 0, %s29
    %s41 = sphi 0, %s43
    %s44 = sphi 0, %s41
    %s45 = sphi 0, %s44
    %s61 = sphi 0, %s45
    %s67 = sphi 0, %s69
    %s70 = sphi 0, %s67
    %s71 = sphi 0, %s70
    %s87 = sphi 0, %s71
    %s93 = sphi 0, %s95
    %s96 = sphi 0, %s93
    %s97 = sphi 0, %s96
    %s113 = sphi 0, %s97
    %s119 = sphi 0, %s121
    %s122 = sphi 0, %s119
    %s123 = sphi 0, %s122
    %s139 = sphi 0, %s123
    %s145 = sphi 0, %s147
    %s148 = sphi 0, %s145
    %s149 = sphi 0, %s148
    %s165 = sphi 0, %s149
    %s171 = sphi 0, %s173
    %s174 = sphi 0, %s171
    %s175 = sphi 0, %s174
    %s191 = sphi 0, %s175
    %s197 = sphi 0, %s199
    %s200 = sphi 0, %s197
    %s201 = sphi 0, %s200
    %s217 = sphi 0, %s201
    %s223 = sphi 0, %s225
    %s226 = sphi 0, %s223
    %s227 = sphi 0, %s226
    %s243 = sphi 0, %s227
    %s249 = sphi 0, %s251
    %s252 = sphi 0, %s249
    %s253 = sphi 0, %s252
    %s269 = sphi 0, %s253
    %s275 = sphi 0, %s277
    %s278 = sphi 0, %s275
    %s279 = sphi 0, %s278
    %s295 = sphi 0, %s279
    %s301 = sphi 0, %s303
    %s304 = sphi 0, %s301
    %s305 = sphi 0, %s304
    %s321 = sphi 0, %s305
    %s327 = sphi 0, %s329
    %s330 = sphi 0, %s327
    %s331 = sphi 0, %s330
    %s347 = sphi 0, %s331
    %s353 = sphi 0, %s355
    %s356 = sphi 0, %s353
    %s357 = sphi 0, %s356
    %s373 = sphi 0, %s357
    %s379 = sphi 0, %s381
    %s382 = sphi 0, %s379
    %s383 = sphi 0, %s382
    %s399 = sphi 0, %s383
  $region4: #{_lambda_.8} parent=0 // loop_header_branch
    %22 = sbr.rel (%p20) target = $region8
  $region5: #{_lambda_.8} parent=0 // loop_body
    %s24 = ssub.s32 %s19, 1
    %s25 = ssub.s32 %s19, 2
    %s32 = sadd.s32 1, %s27
    %p33 = scmp.ge.s32.totalorder %s32, 2
    %s34 = scalar_select %p33, 0, %s32
    %s35 = sadd.s32 1, %s26
    %s36 = scalar_select %p33, %s35, %s26
    %p37 = scmp.ge.s32.totalorder %s36, 2
    %s38 = scalar_select %p37, 0, %s36
    %s39 = ssub.s32 %s26, %s38
    %p40 = scmp.eq.s32.totalorder %s39, 0
    %s42 = sadd.s32 %s41, 1
    %s43 = scalar_select %p40, %s41, %s42
    %p46 = pneg %p40
    %p47 = scmp.eq.s32.totalorder %s19, 3
    %p48 = por %p46, %p47
    %p49 = scmp.ne.s32.totalorder %s41, %s44
    %p50 = scmp.eq.s32.totalorder %s19, 0
    %p51 = por %p49, %p50
    %p52 = scmp.ne.s32.totalorder %s41, %s44
    %p53 = scmp.eq.s32.totalorder %s24, 3
    %p54 = por %p52, %p53
    %p55 = scmp.ne.s32.totalorder %s44, %s45
    %p56 = scmp.eq.s32.totalorder %s24, 0
    %p57 = por %p55, %p56
    %p58 = scmp.ne.s32.totalorder %s44, %s45
    %p59 = scmp.eq.s32.totalorder %s25, 3
    %p60 = por %p58, %p59
    %p62 = scmp.ne.s32.totalorder %s45, %s61
    %p63 = scmp.eq.s32.totalorder %s25, 0
    %p64 = por %p62, %p63
    %s65 = ssub.s32 %s27, %s34
    %p66 = scmp.eq.s32.totalorder %s65, 0
    %s68 = sadd.s32 %s67, 1
    %s69 = scalar_select %p66, %s67, %s68
    %p72 = pneg %p66
    %p73 = scmp.eq.s32.totalorder %s19, 3
    %p74 = por %p72, %p73
    %p75 = scmp.ne.s32.totalorder %s67, %s70
    %p76 = scmp.eq.s32.totalorder %s19, 0
    %p77 = por %p75, %p76
    %p78 = scmp.ne.s32.totalorder %s67, %s70
    %p79 = scmp.eq.s32.totalorder %s24, 3
    %p80 = por %p78, %p79
    %p81 = scmp.ne.s32.totalorder %s70, %s71
    %p82 = scmp.eq.s32.totalorder %s24, 0
    %p83 = por %p81, %p82
    %p84 = scmp.ne.s32.totalorder %s70, %s71
    %p85 = scmp.eq.s32.totalorder %s25, 3
    %p86 = por %p84, %p85
    %p88 = scmp.ne.s32.totalorder %s71, %s87
    %p89 = scmp.eq.s32.totalorder %s25, 0
    %p90 = por %p88, %p89
    %s91 = ssub.s32 %s27, %s34
    %p92 = scmp.eq.s32.totalorder %s91, 0
    %s94 = sadd.s32 %s93, 1
    %s95 = scalar_select %p92, %s93, %s94
    %p98 = pneg %p92
    %p99 = scmp.eq.s32.totalorder %s19, 3
    %p100 = por %p98, %p99
    %p101 = scmp.ne.s32.totalorder %s93, %s96
    %p102 = scmp.eq.s32.totalorder %s19, 0
    %p103 = por %p101, %p102
    %p104 = scmp.ne.s32.totalorder %s93, %s96
    %p105 = scmp.eq.s32.totalorder %s24, 3
    %p106 = por %p104, %p105
    %p107 = scmp.ne.s32.totalorder %s96, %s97
    %p108 = scmp.eq.s32.totalorder %s24, 0
    %p109 = por %p107, %p108
    %p110 = scmp.ne.s32.totalorder %s96, %s97
    %p111 = scmp.eq.s32.totalorder %s25, 3
    %p112 = por %p110, %p111
    %p114 = scmp.ne.s32.totalorder %s97, %s113
    %p115 = scmp.eq.s32.totalorder %s25, 0
    %p116 = por %p114, %p115
    %s117 = ssub.s32 %s27, %s34
    %p118 = scmp.eq.s32.totalorder %s117, 0
    %s120 = sadd.s32 %s119, 1
    %s121 = scalar_select %p118, %s119, %s120
    %p124 = pneg %p118
    %p125 = scmp.eq.s32.totalorder %s19, 3
    %p126 = por %p124, %p125
    %p127 = scmp.ne.s32.totalorder %s119, %s122
    %p128 = scmp.eq.s32.totalorder %s19, 0
    %p129 = por %p127, %p128
    %p130 = scmp.ne.s32.totalorder %s119, %s122
    %p131 = scmp.eq.s32.totalorder %s24, 3
    %p132 = por %p130, %p131
    %p133 = scmp.ne.s32.totalorder %s122, %s123
    %p134 = scmp.eq.s32.totalorder %s24, 0
    %p135 = por %p133, %p134
    %p136 = scmp.ne.s32.totalorder %s122, %s123
    %p137 = scmp.eq.s32.totalorder %s25, 3
    %p138 = por %p136, %p137
    %p140 = scmp.ne.s32.totalorder %s123, %s139
    %p141 = scmp.eq.s32.totalorder %s25, 0
    %p142 = por %p140, %p141
    %s143 = ssub.s32 %s27, %s34
    %p144 = scmp.eq.s32.totalorder %s143, 0
    %s146 = sadd.s32 %s145, 1
    %s147 = scalar_select %p144, %s145, %s146
    %p150 = pneg %p144
    %p151 = scmp.eq.s32.totalorder %s19, 3
    %p152 = por %p150, %p151
    %p153 = scmp.ne.s32.totalorder %s145, %s148
    %p154 = scmp.eq.s32.totalorder %s19, 0
    %p155 = por %p153, %p154
    %p156 = scmp.ne.s32.totalorder %s145, %s148
    %p157 = scmp.eq.s32.totalorder %s24, 3
    %p158 = por %p156, %p157
    %p159 = scmp.ne.s32.totalorder %s148, %s149
    %p160 = scmp.eq.s32.totalorder %s24, 0
    %p161 = por %p159, %p160
    %p162 = scmp.ne.s32.totalorder %s148, %s149
    %p163 = scmp.eq.s32.totalorder %s25, 3
    %p164 = por %p162, %p163
    %p166 = scmp.ne.s32.totalorder %s149, %s165
    %p167 = scmp.eq.s32.totalorder %s25, 0
    %p168 = por %p166, %p167
    %s169 = ssub.s32 %s27, %s34
    %p170 = scmp.eq.s32.totalorder %s169, 0
    %s172 = sadd.s32 %s171, 1
    %s173 = scalar_select %p170, %s171, %s172
    %p176 = pneg %p170
    %p177 = scmp.eq.s32.totalorder %s19, 3
    %p178 = por %p176, %p177
    %p179 = scmp.ne.s32.totalorder %s171, %s174
    %p180 = scmp.eq.s32.totalorder %s19, 0
    %p181 = por %p179, %p180
    %p182 = scmp.ne.s32.totalorder %s171, %s174
    %p183 = scmp.eq.s32.totalorder %s24, 3
    %p184 = por %p182, %p183
    %p185 = scmp.ne.s32.totalorder %s174, %s175
    %p186 = scmp.eq.s32.totalorder %s24, 0
    %p187 = por %p185, %p186
    %p188 = scmp.ne.s32.totalorder %s174, %s175
    %p189 = scmp.eq.s32.totalorder %s25, 3
    %p190 = por %p188, %p189
    %p192 = scmp.ne.s32.totalorder %s175, %s191
    %p193 = scmp.eq.s32.totalorder %s25, 0
    %p194 = por %p192, %p193
    %s195 = ssub.s32 %s27, %s34
    %p196 = scmp.eq.s32.totalorder %s195, 0
    %s198 = sadd.s32 %s197, 1
    %s199 = scalar_select %p196, %s197, %s198
    %p202 = pneg %p196
    %p203 = scmp.eq.s32.totalorder %s19, 3
    %p204 = por %p202, %p203
    %p205 = scmp.ne.s32.totalorder %s197, %s200
    %p206 = scmp.eq.s32.totalorder %s19, 0
    %p207 = por %p205, %p206
    %p208 = scmp.ne.s32.totalorder %s197, %s200
    %p209 = scmp.eq.s32.totalorder %s24, 3
    %p210 = por %p208, %p209
    %p211 = scmp.ne.s32.totalorder %s200, %s201
    %p212 = scmp.eq.s32.totalorder %s24, 0
    %p213 = por %p211, %p212
    %p214 = scmp.ne.s32.totalorder %s200, %s201
    %p215 = scmp.eq.s32.totalorder %s25, 3
    %p216 = por %p214, %p215
    %p218 = scmp.ne.s32.totalorder %s201, %s217
    %p219 = scmp.eq.s32.totalorder %s25, 0
    %p220 = por %p218, %p219
    %s221 = ssub.s32 %s27, %s34
    %p222 = scmp.eq.s32.totalorder %s221, 0
    %s224 = sadd.s32 %s223, 1
    %s225 = scalar_select %p222, %s223, %s224
    %p228 = pneg %p222
    %p229 = scmp.eq.s32.totalorder %s19, 3
    %p230 = por %p228, %p229
    %p231 = scmp.ne.s32.totalorder %s223, %s226
    %p232 = scmp.eq.s32.totalorder %s19, 0
    %p233 = por %p231, %p232
    %p234 = scmp.ne.s32.totalorder %s223, %s226
    %p235 = scmp.eq.s32.totalorder %s24, 3
    %p236 = por %p234, %p235
    %p237 = scmp.ne.s32.totalorder %s226, %s227
    %p238 = scmp.eq.s32.totalorder %s24, 0
    %p239 = por %p237, %p238
    %p240 = scmp.ne.s32.totalorder %s226, %s227
    %p241 = scmp.eq.s32.totalorder %s25, 3
    %p242 = por %p240, %p241
    %p244 = scmp.ne.s32.totalorder %s227, %s243
    %p245 = scmp.eq.s32.totalorder %s25, 0
    %p246 = por %p244, %p245
    %s247 = ssub.s32 %s27, %s34
    %p248 = scmp.eq.s32.totalorder %s247, 0
    %s250 = sadd.s32 %s249, 1
    %s251 = scalar_select %p248, %s249, %s250
    %p254 = pneg %p248
    %p255 = scmp.eq.s32.totalorder %s19, 3
    %p256 = por %p254, %p255
    %p257 = scmp.ne.s32.totalorder %s249, %s252
    %p258 = scmp.eq.s32.totalorder %s19, 0
    %p259 = por %p257, %p258
    %p260 = scmp.ne.s32.totalorder %s249, %s252
    %p261 = scmp.eq.s32.totalorder %s24, 3
    %p262 = por %p260, %p261
    %p263 = scmp.ne.s32.totalorder %s252, %s253
    %p264 = scmp.eq.s32.totalorder %s24, 0
    %p265 = por %p263, %p264
    %p266 = scmp.ne.s32.totalorder %s252, %s253
    %p267 = scmp.eq.s32.totalorder %s25, 3
    %p268 = por %p266, %p267
    %p270 = scmp.ne.s32.totalorder %s253, %s269
    %p271 = scmp.eq.s32.totalorder %s25, 0
    %p272 = por %p270, %p271
    %s273 = ssub.s32 %s27, %s34
    %p274 = scmp.eq.s32.totalorder %s273, 0
    %s276 = sadd.s32 %s275, 1
    %s277 = scalar_select %p274, %s275, %s276
    %p280 = pneg %p274
    %p281 = scmp.eq.s32.totalorder %s19, 3
    %p282 = por %p280, %p281
    %p283 = scmp.ne.s32.totalorder %s275, %s278
    %p284 = scmp.eq.s32.totalorder %s19, 0
    %p285 = por %p283, %p284
    %p286 = scmp.ne.s32.totalorder %s275, %s278
    %p287 = scmp.eq.s32.totalorder %s24, 3
    %p288 = por %p286, %p287
    %p289 = scmp.ne.s32.totalorder %s278, %s279
    %p290 = scmp.eq.s32.totalorder %s24, 0
    %p291 = por %p289, %p290
    %p292 = scmp.ne.s32.totalorder %s278, %s279
    %p293 = scmp.eq.s32.totalorder %s25, 3
    %p294 = por %p292, %p293
    %p296 = scmp.ne.s32.totalorder %s279, %s295
    %p297 = scmp.eq.s32.totalorder %s25, 0
    %p298 = por %p296, %p297
    %s299 = ssub.s32 %s27, %s34
    %p300 = scmp.eq.s32.totalorder %s299, 0
    %s302 = sadd.s32 %s301, 1
    %s303 = scalar_select %p300, %s301, %s302
    %p306 = pneg %p300
    %p307 = scmp.eq.s32.totalorder %s19, 3
    %p308 = por %p306, %p307
    %p309 = scmp.ne.s32.totalorder %s301, %s304
    %p310 = scmp.eq.s32.totalorder %s19, 0
    %p311 = por %p309, %p310
    %p312 = scmp.ne.s32.totalorder %s301, %s304
    %p313 = scmp.eq.s32.totalorder %s24, 3
    %p314 = por %p312, %p313
    %p315 = scmp.ne.s32.totalorder %s304, %s305
    %p316 = scmp.eq.s32.totalorder %s24, 0
    %p317 = por %p315, %p316
    %p318 = scmp.ne.s32.totalorder %s304, %s305
    %p319 = scmp.eq.s32.totalorder %s25, 3
    %p320 = por %p318, %p319
    %p322 = scmp.ne.s32.totalorder %s305, %s321
    %p323 = scmp.eq.s32.totalorder %s25, 0
    %p324 = por %p322, %p323
    %s325 = ssub.s32 %s27, %s34
    %p326 = scmp.eq.s32.totalorder %s325, 0
    %s328 = sadd.s32 %s327, 1
    %s329 = scalar_select %p326, %s327, %s328
    %p332 = pneg %p326
    %p333 = scmp.eq.s32.totalorder %s19, 3
    %p334 = por %p332, %p333
    %p335 = scmp.ne.s32.totalorder %s327, %s330
    %p336 = scmp.eq.s32.totalorder %s19, 0
    %p337 = por %p335, %p336
    %p338 = scmp.ne.s32.totalorder %s327, %s330
    %p339 = scmp.eq.s32.totalorder %s24, 3
    %p340 = por %p338, %p339
    %p341 = scmp.ne.s32.totalorder %s330, %s331
    %p342 = scmp.eq.s32.totalorder %s24, 0
    %p343 = por %p341, %p342
    %p344 = scmp.ne.s32.totalorder %s330, %s331
    %p345 = scmp.eq.s32.totalorder %s25, 3
    %p346 = por %p344, %p345
    %p348 = scmp.ne.s32.totalorder %s331, %s347
    %p349 = scmp.eq.s32.totalorder %s25, 0
    %p350 = por %p348, %p349
    %s351 = ssub.s32 %s27, %s34
    %p352 = scmp.eq.s32.totalorder %s351, 0
    %s354 = sadd.s32 %s353, 1
    %s355 = scalar_select %p352, %s353, %s354
    %p358 = pneg %p352
    %p359 = scmp.eq.s32.totalorder %s19, 3
    %p360 = por %p358, %p359
    %p361 = scmp.ne.s32.totalorder %s353, %s356
    %p362 = scmp.eq.s32.totalorder %s19, 0
    %p363 = por %p361, %p362
    %p364 = scmp.ne.s32.totalorder %s353, %s356
    %p365 = scmp.eq.s32.totalorder %s24, 3
    %p366 = por %p364, %p365
    %p367 = scmp.ne.s32.totalorder %s356, %s357
    %p368 = scmp.eq.s32.totalorder %s24, 0
    %p369 = por %p367, %p368
    %p370 = scmp.ne.s32.totalorder %s356, %s357
    %p371 = scmp.eq.s32.totalorder %s25, 3
    %p372 = por %p370, %p371
    %p374 = scmp.ne.s32.totalorder %s357, %s373
    %p375 = scmp.eq.s32.totalorder %s25, 0
    %p376 = por %p374, %p375
    %s377 = ssub.s32 %s26, %s38
    %p378 = scmp.eq.s32.totalorder %s377, 0
    %s380 = sadd.s32 %s379, 1
    %s381 = scalar_select %p378, %s379, %s380
    %p384 = pneg %p378
    %p385 = scmp.eq.s32.totalorder %s19, 3
    %p386 = por %p384, %p385
    %p387 = scmp.ne.s32.totalorder %s379, %s382
    %p388 = scmp.eq.s32.totalorder %s19, 0
    %p389 = por %p387, %p388
    %p390 = scmp.ne.s32.totalorder %s379, %s382
    %p391 = scmp.eq.s32.totalorder %s24, 3
    %p392 = por %p390, %p391
    %p393 = scmp.ne.s32.totalorder %s382, %s383
    %p394 = scmp.eq.s32.totalorder %s24, 0
    %p395 = por %p393, %p394
    %p396 = scmp.ne.s32.totalorder %s382, %s383
    %p397 = scmp.eq.s32.totalorder %s25, 3
    %p398 = por %p396, %p397
    %p400 = scmp.ne.s32.totalorder %s383, %s399
    %p401 = scmp.eq.s32.totalorder %s25, 0
    %p402 = por %p400, %p401
    %p403 = scmp.le.s32.totalorder 1, %s19
    %p404 = scmp.lt.s32.totalorder %s19, 5
    %p405 = pnand %p403, %p404
    %p406 = pneg %p405
    // Predicated region
    $region9: #{_lambda_.8} parent=5 // pred_check
      _
    $region10: #{_lambda_.8} parent=5 // pred_check_branch
      %408 = sbr.rel (%p405) target = $region12
    $region11: #{_lambda_.8} parent=5 // pred_region
      %s409 = ssub.s32 %s19, 1
    $region12: #{_lambda_.8} parent=5 // pred_fallthru
      _
    %p410 = scmp.lt.s32.totalorder %s19, 4
    // Predicated region
    $region13: #{_lambda_.8} parent=5 // pred_check
      %p411 = pneg %p410
    $region14: #{_lambda_.8} parent=5 // pred_check_branch
      %413 = sbr.rel (%p411) target = $region16
    $region15: #{_lambda_.8} parent=5 // pred_region
      // Predicated region
      $region17: #{_lambda_.8} parent=15 // pred_check
        %p414 = pneg %p51
      $region18: #{_lambda_.8} parent=15 // pred_check_branch
        %416 = sbr.rel (%p414) target = $region20
      $region19: #{_lambda_.8} parent=15 // pred_region
        %p417 = scmp.lt.s32.totalorder %s26, 1
        %s418 = scalar_select %p417, %s26, 1
        %s419 = smul.addr %s418, 3
        %s420 = smul.addr %s419, 8
        %s421 = scalar_lea.vmem %s0, %s420
      $region20: #{_lambda_.8} parent=15 // pred_fallthru
        _
      // Predicated region
      $region21: #{_lambda_.8} parent=15 // pred_check
        %p422 = pneg %p77
      $region22: #{_lambda_.8} parent=15 // pred_check_branch
        %424 = sbr.rel (%p422) target = $region24
      $region23: #{_lambda_.8} parent=15 // pred_region
        %p425 = scmp.lt.s32.totalorder %s27, 1
        %s426 = scalar_select %p425, %s27, 1
        %s427 = scalar_lea.vmem %s1, %s426
      $region24: #{_lambda_.8} parent=15 // pred_fallthru
        _
      // Predicated region
      $region25: #{_lambda_.8} parent=15 // pred_check
        %p428 = pneg %p103
      $region26: #{_lambda_.8} parent=15 // pred_check_branch
        %430 = sbr.rel (%p428) target = $region28
      $region27: #{_lambda_.8} parent=15 // pred_region
        %p431 = scmp.lt.s32.totalorder %s27, 1
        %s432 = scalar_select %p431, %s27, 1
        %s433 = scalar_lea.vmem %s2, %s432
      $region28: #{_lambda_.8} parent=15 // pred_fallthru
        _
      // Predicated region
      $region29: #{_lambda_.8} parent=15 // pred_check
        %p434 = pneg %p129
      $region30: #{_lambda_.8} parent=15 // pred_check_branch
        %436 = sbr.rel (%p434) target = $region32
      $region31: #{_lambda_.8} parent=15 // pred_region
        %p437 = scmp.lt.s32.totalorder %s27, 1
        %s438 = scalar_select %p437, %s27, 1
        %s439 = smul.addr %s438, 4
        %s440 = smul.addr %s439, 4
        %s441 = scalar_lea.vmem %s3, %s440
      $region32: #{_lambda_.8} parent=15 // pred_fallthru
        _
      // Predicated region
      $region33: #{_lambda_.8} parent=15 // pred_check
        %p442 = pneg %p155
      $region34: #{_lambda_.8} parent=15 // pred_check_branch
        %444 = sbr.rel (%p442) target = $region36
      $region35: #{_lambda_.8} parent=15 // pred_region
        %p445 = scmp.lt.s32.totalorder %s27, 1
        %s446 = scalar_select %p445, %s27, 1
        %s447 = scalar_lea.vmem %s4, %s446
      $region36: #{_lambda_.8} parent=15 // pred_fallthru
        _
      // Predicated region
      $region37: #{_lambda_.8} parent=15 // pred_check
        %p448 = pneg %p181
      $region38: #{_lambda_.8} parent=15 // pred_check_branch
        %450 = sbr.rel (%p448) target = $region40
      $region39: #{_lambda_.8} parent=15 // pred_region
        %p451 = scmp.lt.s32.totalorder %s27, 1
        %s452 = scalar_select %p451, %s27, 1
        %s453 = smul.addr %s452, 4
        %s454 = smul.addr %s453, 4
        %s455 = scalar_lea.vmem %s5, %s454
      $region40: #{_lambda_.8} parent=15 // pred_fallthru
        _
      // Predicated region
      $region41: #{_lambda_.8} parent=15 // pred_check
        %p456 = pneg %p207
      $region42: #{_lambda_.8} parent=15 // pred_check_branch
        %458 = sbr.rel (%p456) target = $region44
      $region43: #{_lambda_.8} parent=15 // pred_region
        %p459 = scmp.lt.s32.totalorder %s27, 1
        %s460 = scalar_select %p459, %s27, 1
        %s461 = scalar_lea.vmem %s6, %s460
      $region44: #{_lambda_.8} parent=15 // pred_fallthru
        _
      // Predicated region
      $region45: #{_lambda_.8} parent=15 // pred_check
        %p462 = pneg %p233
      $region46: #{_lambda_.8} parent=15 // pred_check_branch
        %464 = sbr.rel (%p462) target = $region48
      $region47: #{_lambda_.8} parent=15 // pred_region
        %p465 = scmp.lt.s32.totalorder %s27, 1
        %s466 = scalar_select %p465, %s27, 1
        %s467 = scalar_lea.vmem %s7, %s466
      $region48: #{_lambda_.8} parent=15 // pred_fallthru
        _
      // Predicated region
      $region49: #{_lambda_.8} parent=15 // pred_check
        %p468 = pneg %p259
      $region50: #{_lambda_.8} parent=15 // pred_check_branch
        %470 = sbr.rel (%p468) target = $region52
      $region51: #{_lambda_.8} parent=15 // pred_region
        %p471 = scmp.lt.s32.totalorder %s27, 1
        %s472 = scalar_select %p471, %s27, 1
        %s473 = scalar_lea.vmem %s8, %s472
      $region52: #{_lambda_.8} parent=15 // pred_fallthru
        _
      // Predicated region
      $region53: #{_lambda_.8} parent=15 // pred_check
        %p474 = pneg %p285
      $region54: #{_lambda_.8} parent=15 // pred_check_branch
        %476 = sbr.rel (%p474) target = $region56
      $region55: #{_lambda_.8} parent=15 // pred_region
        %p477 = scmp.lt.s32.totalorder %s27, 1
        %s478 = scalar_select %p477, %s27, 1
        %s479 = smul.addr %s478, 4
        %s480 = smul.addr %s479, 4
        %s481 = scalar_lea.vmem %s9, %s480
      $region56: #{_lambda_.8} parent=15 // pred_fallthru
        _
      // Predicated region
      $region57: #{_lambda_.8} parent=15 // pred_check
        %p482 = pneg %p311
      $region58: #{_lambda_.8} parent=15 // pred_check_branch
        %484 = sbr.rel (%p482) target = $region60
      $region59: #{_lambda_.8} parent=15 // pred_region
        %p485 = scmp.lt.s32.totalorder %s27, 1
        %s486 = scalar_select %p485, %s27, 1
        %s487 = scalar_lea.vmem %s10, %s486
      $region60: #{_lambda_.8} parent=15 // pred_fallthru
        _
      // Predicated region
      $region61: #{_lambda_.8} parent=15 // pred_check
        %p488 = pneg %p337
      $region62: #{_lambda_.8} parent=15 // pred_check_branch
        %490 = sbr.rel (%p488) target = $region64
      $region63: #{_lambda_.8} parent=15 // pred_region
        %p491 = scmp.lt.s32.totalorder %s27, 1
        %s492 = scalar_select %p491, %s27, 1
        %s493 = smul.addr %s492, 16
        %s494 = smul.addr %s493, 4
        %s495 = scalar_lea.vmem %s11, %s494
      $region64: #{_lambda_.8} parent=15 // pred_fallthru
        _
      // Predicated region
      $region65: #{_lambda_.8} parent=15 // pred_check
        %p496 = pneg %p363
      $region66: #{_lambda_.8} parent=15 // pred_check_branch
        %498 = sbr.rel (%p496) target = $region68
      $region67: #{_lambda_.8} parent=15 // pred_region
        %p499 = scmp.lt.s32.totalorder %s27, 1
        %s500 = scalar_select %p499, %s27, 1
        %s501 = scalar_lea.vmem %s12, %s500
      $region68: #{_lambda_.8} parent=15 // pred_fallthru
        _
    $region16: #{_lambda_.8} parent=5 // pred_fallthru
      _
    %p502 = scmp.le.s32.totalorder 1, %s19
    %p503 = scmp.lt.s32.totalorder %s19, 5
    %p504 = pnand %p502, %p503
    %p505 = pneg %p504
    // Predicated region
    $region69: #{_lambda_.8} parent=5 // pred_check
      _
    $region70: #{_lambda_.8} parent=5 // pred_check_branch
      %507 = sbr.rel (%p504) target = $region72
    $region71: #{_lambda_.8} parent=5 // pred_region
      %s508 = ssub.s32 %s19, 1
      %p509 = scmp.lt.s32.totalorder %s28, 1
      %s510 = scalar_select %p509, %s28, 1
      %s511 = smul.addr %s510, 3
      %s512 = smul.addr %s511, 8
      %s513 = scalar_lea.vmem %s0, %s512
      %p514 = pneg %p57
      %p515 = pneg %p54
      %p516 = scmp.lt.s32.totalorder %s29, 1
      %s517 = scalar_select %p516, %s29, 1
      %s518 = scalar_lea.vmem %s1, %s517
      %p519 = pneg %p83
      %p520 = pneg %p80
      %p521 = scmp.lt.s32.totalorder %s29, 1
      %s522 = scalar_select %p521, %s29, 1
      %s523 = scalar_lea.vmem %s2, %s522
      %p524 = pneg %p109
      %p525 = pneg %p106
      %p526 = scmp.lt.s32.totalorder %s29, 1
      %s527 = scalar_select %p526, %s29, 1
      %s528 = smul.addr %s527, 4
      %s529 = smul.addr %s528, 4
      %s530 = scalar_lea.vmem %s3, %s529
      %p531 = pneg %p135
      %p532 = pneg %p132
      %p533 = scmp.lt.s32.totalorder %s29, 1
      %s534 = scalar_select %p533, %s29, 1
      %s535 = scalar_lea.vmem %s4, %s534
      %p536 = pneg %p161
      %p537 = pneg %p158
      %p538 = scmp.lt.s32.totalorder %s29, 1
      %s539 = scalar_select %p538, %s29, 1
      %s540 = smul.addr %s539, 4
      %s541 = smul.addr %s540, 4
      %s542 = scalar_lea.vmem %s5, %s541
      %p543 = pneg %p187
      %p544 = pneg %p184
      %p545 = scmp.lt.s32.totalorder %s29, 1
      %s546 = scalar_select %p545, %s29, 1
      %s547 = scalar_lea.vmem %s6, %s546
      %p548 = pneg %p213
      %p549 = pneg %p210
      %p550 = scmp.lt.s32.totalorder %s29, 1
      %s551 = scalar_select %p550, %s29, 1
      %s552 = scalar_lea.vmem %s7, %s551
      %p553 = pneg %p239
      %p554 = pneg %p236
      %p555 = scmp.lt.s32.totalorder %s29, 1
      %s556 = scalar_select %p555, %s29, 1
      %s557 = scalar_lea.vmem %s8, %s556
      %p558 = pneg %p265
      %p559 = pneg %p262
      %p560 = scmp.lt.s32.totalorder %s29, 1
      %s561 = scalar_select %p560, %s29, 1
      %s562 = smul.addr %s561, 4
      %s563 = smul.addr %s562, 4
      %s564 = scalar_lea.vmem %s9, %s563
      %p565 = pneg %p291
      %p566 = pneg %p288
      %p567 = scmp.lt.s32.totalorder %s29, 1
      %s568 = scalar_select %p567, %s29, 1
      %s569 = scalar_lea.vmem %s10, %s568
      %p570 = pneg %p317
      %p571 = pneg %p314
      %p572 = scmp.lt.s32.totalorder %s29, 1
      %s573 = scalar_select %p572, %s29, 1
      %s574 = smul.addr %s573, 16
      %s575 = smul.addr %s574, 4
      %s576 = scalar_lea.vmem %s11, %s575
      %p577 = pneg %p343
      %p578 = pneg %p340
      %p579 = scmp.lt.s32.totalorder %s29, 1
      %s580 = scalar_select %p579, %s29, 1
      %s581 = scalar_lea.vmem %s12, %s580
      %p582 = pneg %p369
      %p583 = pneg %p366
      %p584 = pneg %p395
      %p585 = pneg %p392
      %p586 = scmp.lt.s32.totalorder %s28, 1
      %s587 = scalar_select %p586, %s28, 1
      %s588 = smul.addr %s587, 3
      %s589 = smul.addr %s588, 8
      %s590 = scalar_lea.vmem %s13, %s589
      %p591 = scmp.lt.s32.totalorder %s28, 1
      %s592 = scalar_select %p591, %s28, 1
      %s593 = smul.addr %s592, 3
      %s594 = smul.addr %s593, 8
      %s595 = scalar_lea.vmem %s0, %s594
      %p596 = scmp.lt.s32.totalorder %s29, 1
      %s597 = scalar_select %p596, %s29, 1
      %s598 = scalar_lea.vmem %s1, %s597
      %p599 = scmp.lt.s32.totalorder %s29, 1
      %s600 = scalar_select %p599, %s29, 1
      %s601 = scalar_lea.vmem %s2, %s600
      %p602 = scmp.lt.s32.totalorder %s29, 1
      %s603 = scalar_select %p602, %s29, 1
      %s604 = smul.addr %s603, 4
      %s605 = smul.addr %s604, 4
      %s606 = scalar_lea.vmem %s3, %s605
      %p607 = scmp.lt.s32.totalorder %s29, 1
      %s608 = scalar_select %p607, %s29, 1
      %s609 = scalar_lea.vmem %s4, %s608
      %p610 = scmp.lt.s32.totalorder %s29, 1
      %s611 = scalar_select %p610, %s29, 1
      %s612 = smul.addr %s611, 4
      %s613 = smul.addr %s612, 4
      %s614 = scalar_lea.vmem %s5, %s613
      %p615 = scmp.lt.s32.totalorder %s29, 1
      %s616 = scalar_select %p615, %s29, 1
      %s617 = scalar_lea.vmem %s6, %s616
      %p618 = scmp.lt.s32.totalorder %s29, 1
      %s619 = scalar_select %p618, %s29, 1
      %s620 = scalar_lea.vmem %s7, %s619
      %p621 = scmp.lt.s32.totalorder %s29, 1
      %s622 = scalar_select %p621, %s29, 1
      %s623 = scalar_lea.vmem %s8, %s622
      %p624 = scmp.lt.s32.totalorder %s29, 1
      %s625 = scalar_select %p624, %s29, 1
      %s626 = smul.addr %s625, 4
      %s627 = smul.addr %s626, 4
      %s628 = scalar_lea.vmem %s9, %s627
      %p629 = scmp.lt.s32.totalorder %s29, 1
      %s630 = scalar_select %p629, %s29, 1
      %s631 = scalar_lea.vmem %s10, %s630
      %p632 = scmp.lt.s32.totalorder %s29, 1
      %s633 = scalar_select %p632, %s29, 1
      %s634 = smul.addr %s633, 16
      %s635 = smul.addr %s634, 4
      %s636 = scalar_lea.vmem %s11, %s635
      %p637 = scmp.lt.s32.totalorder %s29, 1
      %s638 = scalar_select %p637, %s29, 1
      %s639 = scalar_lea.vmem %s12, %s638
      %p640 = scmp.lt.s32.totalorder %s28, 1
      %s641 = scalar_select %p640, %s28, 1
      %s642 = smul.addr %s641, 3
      %s643 = smul.addr %s642, 8
      %s644 = scalar_lea.vmem %s13, %s643
      %p646 = scmp.eq.s32.totalorder %s29, 0
      // Predicated region
      $region73: #{_lambda_.8} parent=71 // pred_check
        %p647 = pneg %p646
      $region74: #{_lambda_.8} parent=71 // pred_check_branch
        %649 = sbr.rel (%p647) target = $region76
      $region75: #{_lambda_.8} parent=71 // pred_region
        %v650 = vld [vmem:[%s595] sm:$0xff]
        %v651 = vld [vmem:[%s595 + $0x8] sm:$0xff]
        %v652 = vld [vmem:[%s595 + $0x10] sm:$0x1]
        %vm653 = vcmask 261120
        %654 = vst.msk [vmem:[#allocation2] sm:$0xff] %vm653, %v650
        %655 = vst.msk [vmem:[#allocation2 + $0x8] sm:$0xff] %vm653, %v651
        %vm656 = vcmask 253952
        %657 = vst.msk [vmem:[#allocation2 + $0x10] sm:$0x1] %vm656, %v652
      $region76: #{_lambda_.8} parent=71 // pred_fallthru
        _
      %v658 = vld [vmem:[#allocation2] sm:$0xff]
      %v659 = vld [vmem:[#allocation2 + $0x8] sm:$0xff]
      %v660 = vld [vmem:[#allocation2 + $0x10] sm:$0x1]
      %v661 = vld [vmem:[%s598] sm:$0x1]
      %v662 = vld [vmem:[%s601] sm:$0x1]
      %vm663 = vcmask 261120
      %v664 = vsel %vm663, %v658, 0.0
      %665 = vadd.xlane.f32.xlu0 %v664
      %v666 = vpop.xlane.xlu0 %665
      %v667 = vsel %vm663, %v659, 0.0
      %668 = vadd.xlane.f32.xlu0 %v667
      %v669 = vpop.xlane.xlu0 %668
      %vm670 = vcmask 253952
      %v671 = vsel %vm670, %v660, 0.0
      %672 = vadd.xlane.f32.xlu0 %v671
      %v673 = vpop.xlane.xlu0 %672
      %v674 = vrcp.pop 32.0
      %v675 = vmul.f32 %v666, %v674
      %v676 = vmul.f32 %v669, %v674
      %v677 = vmul.f32 %v673, %v674
      %v678 = vsub.f32 %v658, %v675
      %v679 = vsub.f32 %v659, %v676
      %v680 = vsub.f32 %v660, %v677
      %v681 = vmul.f32 %v678, %v678
      %v682 = vmul.f32 %v679, %v679
      %v683 = vmul.f32 %v680, %v680
      %v684 = vsel %vm663, %v681, 0.0
      %685 = vadd.xlane.f32.xlu0 %v684
      %v686 = vpop.xlane.xlu0 %685
      %v687 = vsel %vm663, %v682, 0.0
      %688 = vadd.xlane.f32.xlu0 %v687
      %v689 = vpop.xlane.xlu0 %688
      %v690 = vsel %vm670, %v683, 0.0
      %691 = vadd.xlane.f32.xlu0 %v690
      %v692 = vpop.xlane.xlu0 %691
      %v693 = vmul.f32 %v686, %v674
      %v694 = vmul.f32 %v689, %v674
      %v695 = vmul.f32 %v692, %v674
      %v696 = vadd.f32 %v693, 1e-05
      %v697 = vadd.f32 %v694, 1e-05
      %v698 = vadd.f32 %v695, 1e-05
      %v699 = vrsqrt.pop %v696
      %v700 = vrsqrt.pop %v697
      %v701 = vrsqrt.pop %v698
      %v702 = vmul.f32 %v678, %v699
      %v703 = vmul.f32 %v679, %v700
      %v704 = vmul.f32 %v680, %v701
      %v706 = vlaneseq
      %v707 = vshrl.u32 %v706, 7
      %v708 = vsub.s32 0, %v707
      %v709 = vrot.slane %v661, %v708
      %v711 = vmul.f32 %v702, %v709
      %v712 = vmul.f32 %v703, %v709
      %v713 = vmul.f32 %v704, %v709
      %v715 = vlaneseq
      %v716 = vshrl.u32 %v715, 7
      %v717 = vsub.s32 0, %v716
      %v718 = vrot.slane %v662, %v717
      %v720 = vadd.f32 %v711, %v718
      %v721 = vadd.f32 %v712, %v718
      %v722 = vadd.f32 %v713, %v718
      %v723 = vpack.c.bf16 %v721, %v720
      %v724 = vpack.c.bf16 %v722, %v722
      %v725 = vld [vmem:[%s606] sm:$0xf]
      %v726 = vld [vmem:[%s606 + $0x4] sm:$0xf]
      %v727 = vld [vmem:[%s606 + $0x8] sm:$0xf]
      %v728 = vld [vmem:[%s606 + $0xc] sm:$0xf]
      %v729 = vld [vmem:[%s609] sm:$0x1]
      %v731 = vlaneseq
      %v732 = vshrl.u32 %v731, 7
      %v733 = vsub.s32 0, %v732
      %v734 = vrot.slane %v729, %v733
      %v740 = vunpack.c.l.b16 %v725
      %v741 = vunpack.c.l.b16 %v726
      %v742 = vunpack.c.l.b16 %v727
      %v743 = vunpack.c.l.b16 %v728
      %v744 = vpack.c.b16 %v741, %v740
      %v745 = vpack.c.b16 %v743, %v742
      %v749 = vsel %vm663, %v723, 0
      %v752 = vsel %vm663, %v724, 0
      %754 = vmatprep.subr.bf16.mxu0 0
      %755 = vmatpush1.bf16.msra.mxu0 0
      %756 = vmatprep.subr.bf16.mxu0 0
      %757 = vmatpush1.bf16.msra.mxu0 0
      %758 = vmatprep.subr.bf16.mxu0 0
      %759 = vmatpush1.bf16.msra.mxu0 0
      %760 = vmatprep.subr.bf16.mxu0 0
      %761 = vmatpush1.bf16.msra.mxu0 0
      %762 = vmatprep.subr.bf16.mxu0 0
      %763 = vmatpush1.bf16.msra.mxu0 0
      %764 = vmatprep.subr.bf16.mxu0 0
      %765 = vmatpush1.bf16.msra.mxu0 0
      %766 = vmatprep.subr.bf16.mxu0 0
      %767 = vmatpush1.bf16.msra.mxu0 %v745
      %768 = vmatprep.subr.bf16.mxu0 0
      %769 = vmatpush1.bf16.msra.mxu0 %v744
      %770 = vmatprep.subr.bf16.mxu0 0
      %771 = vmatpush2.bf16.msra.mxu0 0
      %772 = vmatprep.subr.bf16.mxu0 0
      %773 = vmatpush2.bf16.msra.mxu0 0
      %774 = vmatprep.subr.bf16.mxu0 0
      %775 = vmatpush2.bf16.msra.mxu0 0
      %776 = vmatprep.subr.bf16.mxu0 0
      %777 = vmatpush2.bf16.msra.mxu0 0
      %778 = vmatprep.subr.bf16.mxu0 0
      %779 = vmatpush2.bf16.msra.mxu0 0
      %780 = vmatprep.subr.bf16.mxu0 0
      %781 = vmatpush2.bf16.msra.mxu0 0
      %782 = vmatprep.subr.bf16.mxu0 0
      %783 = vmatpush2.bf16.msra.mxu0 0
      %784 = vmatprep.subr.bf16.mxu0 0
      %785 = vmatpush2.bf16.msra.mxu0 0
      %786 = vmatprep.mubr.bf16.mxu0 0
      %787 = vmatmul.mubr.bf16.gmra.mxu0 %v749
      %v788 = vpop.f32.mrf.mxu0
      %v789 = vadd.f32 %v734, %v788
      %v790 = vpop.f32.mrf.mxu0
      %v791 = vpop.f32.mrf.mxu0
      %v792 = vadd.f32 %v734, %v791
      %v793 = vpop.f32.mrf.mxu0
      %794 = vmatprep.mubr.bf16.mxu0 0
      %795 = vmatmul.mubr.bf16.gmra.mxu0 %v752
      %v796 = vpop.f32.mrf.mxu0
      %v797 = vadd.f32 %v734, %v796
      %v798 = vpop.f32.mrf.mxu0
      %v799 = vpop.f32.mrf.mxu0
      %v800 = vpop.f32.mrf.mxu0
      %801 = vdwg.mxu0
      %v802 = vmul.f32 %v789, 0.35355338
      %v803 = vmul.f32 %v792, 0.35355338
      %v804 = vmul.f32 %v797, 0.35355338
      %v805 = vpack.c.bf16 %v803, %v802
      %v806 = vpack.c.bf16 %v804, %v804
      %v807 = vpack.c.bf16 %v792, %v789
      %v808 = vpack.c.bf16 %v797, %v797
      %811 = vrot.lane.b32.xlu0 %v807, 96
      %v812 = vpop.permute.xlu0 %811
      %813 = vrot.lane.b32.xlu0 %v808, 96
      %v814 = vpop.permute.xlu0 %813
      %vm815 = vcmask 64512
      %v817 = vsel %vm815, %v805, 0
      %v820 = vsel %vm815, %v806, 0
      %v823 = vsel %vm815, %v812, 0
      %v826 = vsel %vm815, %v814, 0
      %828 = vmatprep.subr.bf16.mxu0 0
      %829 = vmatpush1.bf16.xpose.msra.mxu0 0
      %830 = vmatprep.subr.bf16.mxu0 0
      %831 = vmatpush1.bf16.xpose.msra.mxu0 0
      %832 = vmatprep.subr.bf16.mxu0 0
      %833 = vmatpush1.bf16.xpose.msra.mxu0 0
      %834 = vmatprep.subr.bf16.mxu0 0
      %835 = vmatpush1.bf16.xpose.msra.mxu0 0
      %836 = vmatprep.subr.bf16.mxu0 0
      %837 = vmatpush1.bf16.xpose.msra.mxu0 0
      %838 = vmatprep.subr.bf16.mxu0 0
      %839 = vmatpush1.bf16.xpose.msra.mxu0 0
      %840 = vmatprep.subr.bf16.mxu0 0
      %841 = vmatpush1.bf16.xpose.msra.mxu0 %v826
      %842 = vmatprep.subr.bf16.mxu0 0
      %843 = vmatpush1.bf16.xpose.msra.mxu0 %v823
      %844 = vmatprep.subr.bf16.mxu0 0
      %845 = vmatpush2.bf16.xpose.msra.mxu0 0
      %846 = vmatprep.subr.bf16.mxu0 0
      %847 = vmatpush2.bf16.xpose.msra.mxu0 0
      %848 = vmatprep.subr.bf16.mxu0 0
      %849 = vmatpush2.bf16.xpose.msra.mxu0 0
      %850 = vmatprep.subr.bf16.mxu0 0
      %851 = vmatpush2.bf16.xpose.msra.mxu0 0
      %852 = vmatprep.subr.bf16.mxu0 0
      %853 = vmatpush2.bf16.xpose.msra.mxu0 0
      %854 = vmatprep.subr.bf16.mxu0 0
      %855 = vmatpush2.bf16.xpose.msra.mxu0 0
      %856 = vmatprep.subr.bf16.mxu0 0
      %857 = vmatpush2.bf16.xpose.msra.mxu0 0
      %858 = vmatprep.subr.bf16.mxu0 0
      %859 = vmatpush2.bf16.xpose.msra.mxu0 0
      %860 = vmatprep.mubr.bf16.mxu0 0
      %861 = vmatmul.mubr.bf16.gmra.mxu0 %v817
      %v862 = vpop.f32.mrf.mxu0
      %v863 = vadd.f32 0.0, %v862
      %v864 = vpop.f32.mrf.mxu0
      %v865 = vpop.f32.mrf.mxu0
      %v866 = vadd.f32 0.0, %v865
      %v867 = vpop.f32.mrf.mxu0
      %868 = vmatprep.mubr.bf16.mxu0 0
      %869 = vmatmul.mubr.bf16.gmra.mxu0 %v820
      %v870 = vpop.f32.mrf.mxu0
      %v871 = vadd.f32 0.0, %v870
      %v872 = vpop.f32.mrf.mxu0
      %v873 = vpop.f32.mrf.mxu0
      %v874 = vpop.f32.mrf.mxu0
      %875 = vdwg.mxu0
      %vm876 = vcmask 138240
      %v877 = vsel %vm876, %v863, -inf
      %878 = vmax.xlane.f32.xlu0 %v877
      %v879 = vpop.xlane.xlu0 %878
      %v880 = vsel %vm876, %v866, -inf
      %881 = vmax.xlane.f32.xlu0 %v880
      %v882 = vpop.xlane.xlu0 %881
      %vm883 = vcmask 131072
      %v884 = vsel %vm883, %v871, -inf
      %885 = vmax.xlane.f32.xlu0 %v884
      %v886 = vpop.xlane.xlu0 %885
      %v887 = vsub.f32 %v863, %v879
      %v888 = vsub.f32 %v866, %v882
      %v889 = vsub.f32 %v871, %v886
      %v890 = vmul.f32 %v887, 1.442695
      %v891 = vpow.pop %v890
      %v892 = vmul.f32 %v888, 1.442695
      %v893 = vpow.pop %v892
      %v894 = vmul.f32 %v889, 1.442695
      %v895 = vpow.pop %v894
      %v896 = vsel %vm876, %v891, 0.0
      %897 = vadd.xlane.f32.xlu0 %v896
      %v898 = vpop.xlane.xlu0 %897
      %v899 = vsel %vm876, %v893, 0.0
      %900 = vadd.xlane.f32.xlu0 %v899
      %v901 = vpop.xlane.xlu0 %900
      %v902 = vsel %vm883, %v895, 0.0
      %903 = vadd.xlane.f32.xlu0 %v902
      %v904 = vpop.xlane.xlu0 %903
      %v905 = vrcp.pop %v898
      %v906 = vrcp.pop %v901
      %v907 = vrcp.pop %v904
      %v908 = vmul.f32 %v891, %v905
      %v909 = vmul.f32 %v893, %v906
      %v910 = vmul.f32 %v895, %v907
      %v911 = vpack.c.bf16 %v909, %v908
      %v912 = vpack.c.bf16 %v910, %v910
      %913 = vrot.lane.b32.xlu0 %v807, 64
      %v914 = vpop.permute.xlu0 %913
      %915 = vrot.lane.b32.xlu0 %v808, 64
      %v916 = vpop.permute.xlu0 %915
      %v919 = vsel %vm876, %v911, 0
      %v922 = vsel %vm876, %v912, 0
      %vm924 = vcmask 1040384
      %v925 = vsel 0, 4294967295, 65535
      %v926 = vsel %vm924, %v925, 0
      %v928 = vand.u32 %v916, %v926
      %930 = vmatprep.subr.bf16.mxu0 0
      %931 = vmatpush1.bf16.msra.mxu0 0
      %932 = vmatprep.subr.bf16.mxu0 0
      %933 = vmatpush1.bf16.msra.mxu0 0
      %934 = vmatprep.subr.bf16.mxu0 0
      %935 = vmatpush1.bf16.msra.mxu0 0
      %936 = vmatprep.subr.bf16.mxu0 0
      %937 = vmatpush1.bf16.msra.mxu0 0
      %938 = vmatprep.subr.bf16.mxu0 0
      %939 = vmatpush1.bf16.msra.mxu0 0
      %940 = vmatprep.subr.bf16.mxu0 0
      %941 = vmatpush1.bf16.msra.mxu0 0
      %942 = vmatprep.subr.bf16.mxu0 0
      %943 = vmatpush1.bf16.msra.mxu0 %v928
      %944 = vmatprep.subr.bf16.mxu0 0
      %945 = vmatpush1.bf16.msra.mxu0 %v914
      %946 = vmatprep.subr.bf16.mxu0 0
      %947 = vmatpush2.bf16.msra.mxu0 0
      %948 = vmatprep.subr.bf16.mxu0 0
      %949 = vmatpush2.bf16.msra.mxu0 0
      %950 = vmatprep.subr.bf16.mxu0 0
      %951 = vmatpush2.bf16.msra.mxu0 0
      %952 = vmatprep.subr.bf16.mxu0 0
      %953 = vmatpush2.bf16.msra.mxu0 0
      %954 = vmatprep.subr.bf16.mxu0 0
      %955 = vmatpush2.bf16.msra.mxu0 0
      %956 = vmatprep.subr.bf16.mxu0 0
      %957 = vmatpush2.bf16.msra.mxu0 0
      %958 = vmatprep.subr.bf16.mxu0 0
      %959 = vmatpush2.bf16.msra.mxu0 0
      %960 = vmatprep.subr.bf16.mxu0 0
      %961 = vmatpush2.bf16.msra.mxu0 0
      %962 = vmatprep.mubr.bf16.mxu0 0
      %963 = vmatmul.mubr.bf16.gmra.mxu0 %v919
      %v964 = vpop.f32.mrf.mxu0
      %v965 = vadd.f32 0.0, %v964
      %v966 = vpop.f32.mrf.mxu0
      %v967 = vpop.f32.mrf.mxu0
      %v968 = vadd.f32 0.0, %v967
      %v969 = vpop.f32.mrf.mxu0
      %970 = vmatprep.mubr.bf16.mxu0 0
      %971 = vmatmul.mubr.bf16.gmra.mxu0 %v922
      %v972 = vpop.f32.mrf.mxu0
      %v973 = vadd.f32 0.0, %v972
      %v974 = vpop.f32.mrf.mxu0
      %v975 = vpop.f32.mrf.mxu0
      %v976 = vpop.f32.mrf.mxu0
      %977 = vdwg.mxu0
      %980 = vrot.lane.b32.xlu0 %v805, 120
      %v981 = vpop.permute.xlu0 %980
      %982 = vrot.lane.b32.xlu0 %v806, 120
      %v983 = vpop.permute.xlu0 %982
      %984 = vrot.lane.b32.xlu0 %v807, 88
      %v985 = vpop.permute.xlu0 %984
      %986 = vrot.lane.b32.xlu0 %v808, 88
      %v987 = vpop.permute.xlu0 %986
      %v989 = vsel %vm815, %v981, 0
      %v992 = vsel %vm815, %v983, 0
      %v995 = vsel %vm815, %v985, 0
      %v998 = vsel %vm815, %v987, 0
      %1000 = vmatprep.subr.bf16.mxu0 0
      %1001 = vmatpush1.bf16.xpose.msra.mxu0 0
      %1002 = vmatprep.subr.bf16.mxu0 0
      %1003 = vmatpush1.bf16.xpose.msra.mxu0 0
      %1004 = vmatprep.subr.bf16.mxu0 0
      %1005 = vmatpush1.bf16.xpose.msra.mxu0 0
      %1006 = vmatprep.subr.bf16.mxu0 0
      %1007 = vmatpush1.bf16.xpose.msra.mxu0 0
      %1008 = vmatprep.subr.bf16.mxu0 0
      %1009 = vmatpush1.bf16.xpose.msra.mxu0 0
      %1010 = vmatprep.subr.bf16.mxu0 0
      %1011 = vmatpush1.bf16.xpose.msra.mxu0 0
      %1012 = vmatprep.subr.bf16.mxu0 0
      %1013 = vmatpush1.bf16.xpose.msra.mxu0 %v998
      %1014 = vmatprep.subr.bf16.mxu0 0
      %1015 = vmatpush1.bf16.xpose.msra.mxu0 %v995
      %1016 = vmatprep.subr.bf16.mxu0 0
      %1017 = vmatpush2.bf16.xpose.msra.mxu0 0
      %1018 = vmatprep.subr.bf16.mxu0 0
      %1019 = vmatpush2.bf16.xpose.msra.mxu0 0
      %1020 = vmatprep.subr.bf16.mxu0 0
      %1021 = vmatpush2.bf16.xpose.msra.mxu0 0
      %1022 = vmatprep.subr.bf16.mxu0 0
      %1023 = vmatpush2.bf16.xpose.msra.mxu0 0
      %1024 = vmatprep.subr.bf16.mxu0 0
      %1025 = vmatpush2.bf16.xpose.msra.mxu0 0
      %1026 = vmatprep.subr.bf16.mxu0 0
      %1027 = vmatpush2.bf16.xpose.msra.mxu0 0
      %1028 = vmatprep.subr.bf16.mxu0 0
      %1029 = vmatpush2.bf16.xpose.msra.mxu0 0
      %1030 = vmatprep.subr.bf16.mxu0 0
      %1031 = vmatpush2.bf16.xpose.msra.mxu0 0
      %1032 = vmatprep.mubr.bf16.mxu0 0
      %1033 = vmatmul.mubr.bf16.gmra.mxu0 %v989
      %v1034 = vpop.f32.mrf.mxu0
      %v1035 = vadd.f32 0.0, %v1034
      %v1036 = vpop.f32.mrf.mxu0
      %v1037 = vpop.f32.mrf.mxu0
      %v1038 = vadd.f32 0.0, %v1037
      %v1039 = vpop.f32.mrf.mxu0
      %1040 = vmatprep.mubr.bf16.mxu0 0
      %1041 = vmatmul.mubr.bf16.gmra.mxu0 %v992
      %v1042 = vpop.f32.mrf.mxu0
      %v1043 = vadd.f32 0.0, %v1042
      %v1044 = vpop.f32.mrf.mxu0
      %v1045 = vpop.f32.mrf.mxu0
      %v1046 = vpop.f32.mrf.mxu0
      %1047 = vdwg.mxu0
      %v1048 = vsel %vm876, %v1035, -inf
      %1049 = vmax.xlane.f32.xlu0 %v1048
      %v1050 = vpop.xlane.xlu0 %1049
      %v1051 = vsel %vm876, %v1038, -inf
      %1052 = vmax.xlane.f32.xlu0 %v1051
      %v1053 = vpop.xlane.xlu0 %1052
      %v1054 = vsel %vm883, %v1043, -inf
      %1055 = vmax.xlane.f32.xlu0 %v1054
      %v1056 = vpop.xlane.xlu0 %1055
      %v1057 = vsub.f32 %v1035, %v1050
      %v1058 = vsub.f32 %v1038, %v1053
      %v1059 = vsub.f32 %v1043, %v1056
      %v1060 = vmul.f32 %v1057, 1.442695
      %v1061 = vpow.pop %v1060
      %v1062 = vmul.f32 %v1058, 1.442695
      %v1063 = vpow.pop %v1062
      %v1064 = vmul.f32 %v1059, 1.442695
      %v1065 = vpow.pop %v1064
      %v1066 = vsel %vm876, %v1061, 0.0
      %1067 = vadd.xlane.f32.xlu0 %v1066
      %v1068 = vpop.xlane.xlu0 %1067
      %v1069 = vsel %vm876, %v1063, 0.0
      %1070 = vadd.xlane.f32.xlu0 %v1069
      %v1071 = vpop.xlane.xlu0 %1070
      %v1072 = vsel %vm883, %v1065, 0.0
      %1073 = vadd.xlane.f32.xlu0 %v1072
      %v1074 = vpop.xlane.xlu0 %1073
      %v1075 = vrcp.pop %v1068
      %v1076 = vrcp.pop %v1071
      %v1077 = vrcp.pop %v1074
      %v1078 = vmul.f32 %v1061, %v1075
      %v1079 = vmul.f32 %v1063, %v1076
      %v1080 = vmul.f32 %v1065, %v1077
      %v1081 = vpack.c.bf16 %v1079, %v1078
      %v1082 = vpack.c.bf16 %v1080, %v1080
      %1083 = vrot.lane.b32.xlu0 %v807, 56
      %v1084 = vpop.permute.xlu0 %1083
      %1085 = vrot.lane.b32.xlu0 %v808, 56
      %v1086 = vpop.permute.xlu0 %1085
      %v1089 = vsel %vm876, %v1081, 0
      %v1092 = vsel %vm876, %v1082, 0
      %v1095 = vand.u32 %v1086, %v926
      %1097 = vmatprep.subr.bf16.mxu0 0
      %1098 = vmatpush1.bf16.msra.mxu0 0
      %1099 = vmatprep.subr.bf16.mxu0 0
      %1100 = vmatpush1.bf16.msra.mxu0 0
      %1101 = vmatprep.subr.bf16.mxu0 0
      %1102 = vmatpush1.bf16.msra.mxu0 0
      %1103 = vmatprep.subr.bf16.mxu0 0
      %1104 = vmatpush1.bf16.msra.mxu0 0
      %1105 = vmatprep.subr.bf16.mxu0 0
      %1106 = vmatpush1.bf16.msra.mxu0 0
      %1107 = vmatprep.subr.bf16.mxu0 0
      %1108 = vmatpush1.bf16.msra.mxu0 0
      %1109 = vmatprep.subr.bf16.mxu0 0
      %1110 = vmatpush1.bf16.msra.mxu0 %v1095
      %1111 = vmatprep.subr.bf16.mxu0 0
      %1112 = vmatpush1.bf16.msra.mxu0 %v1084
      %1113 = vmatprep.subr.bf16.mxu0 0
      %1114 = vmatpush2.bf16.msra.mxu0 0
      %1115 = vmatprep.subr.bf16.mxu0 0
      %1116 = vmatpush2.bf16.msra.mxu0 0
      %1117 = vmatprep.subr.bf16.mxu0 0
      %1118 = vmatpush2.bf16.msra.mxu0 0
      %1119 = vmatprep.subr.bf16.mxu0 0
      %1120 = vmatpush2.bf16.msra.mxu0 0
      %1121 = vmatprep.subr.bf16.mxu0 0
      %1122 = vmatpush2.bf16.msra.mxu0 0
      %1123 = vmatprep.subr.bf16.mxu0 0
      %1124 = vmatpush2.bf16.msra.mxu0 0
      %1125 = vmatprep.subr.bf16.mxu0 0
      %1126 = vmatpush2.bf16.msra.mxu0 0
      %1127 = vmatprep.subr.bf16.mxu0 0
      %1128 = vmatpush2.bf16.msra.mxu0 0
      %1129 = vmatprep.mubr.bf16.mxu0 0
      %1130 = vmatmul.mubr.bf16.gmra.mxu0 %v1089
      %v1131 = vpop.f32.mrf.mxu0
      %v1132 = vadd.f32 0.0, %v1131
      %v1133 = vpop.f32.mrf.mxu0
      %v1134 = vpop.f32.mrf.mxu0
      %v1135 = vadd.f32 0.0, %v1134
      %v1136 = vpop.f32.mrf.mxu0
      %1137 = vmatprep.mubr.bf16.mxu0 0
      %1138 = vmatmul.mubr.bf16.gmra.mxu0 %v1092
      %v1139 = vpop.f32.mrf.mxu0
      %v1140 = vadd.f32 0.0, %v1139
      %v1141 = vpop.f32.mrf.mxu0
      %v1142 = vpop.f32.mrf.mxu0
      %v1143 = vpop.f32.mrf.mxu0
      %1144 = vdwg.mxu0
      %1145 = vrot.lane.b32.xlu0 %v805, 112
      %v1146 = vpop.permute.xlu0 %1145
      %1147 = vrot.lane.b32.xlu0 %v806, 112
      %v1148 = vpop.permute.xlu0 %1147
      %1149 = vrot.lane.b32.xlu0 %v807, 80
      %v1150 = vpop.permute.xlu0 %1149
      %1151 = vrot.lane.b32.xlu0 %v808, 80
      %v1152 = vpop.permute.xlu0 %1151
      %v1154 = vsel %vm815, %v1146, 0
      %v1157 = vsel %vm815, %v1148, 0
      %v1160 = vsel %vm815, %v1150, 0
      %v1163 = vsel %vm815, %v1152, 0
      %1165 = vmatprep.subr.bf16.mxu0 0
      %1166 = vmatpush1.bf16.xpose.msra.mxu0 0
      %1167 = vmatprep.subr.bf16.mxu0 0
      %1168 = vmatpush1.bf16.xpose.msra.mxu0 0
      %1169 = vmatprep.subr.bf16.mxu0 0
      %1170 = vmatpush1.bf16.xpose.msra.mxu0 0
      %1171 = vmatprep.subr.bf16.mxu0 0
      %1172 = vmatpush1.bf16.xpose.msra.mxu0 0
      %1173 = vmatprep.subr.bf16.mxu0 0
      %1174 = vmatpush1.bf16.xpose.msra.mxu0 0
      %1175 = vmatprep.subr.bf16.mxu0 0
      %1176 = vmatpush1.bf16.xpose.msra.mxu0 0
      %1177 = vmatprep.subr.bf16.mxu0 0
      %1178 = vmatpush1.bf16.xpose.msra.mxu0 %v1163
      %1179 = vmatprep.subr.bf16.mxu0 0
      %1180 = vmatpush1.bf16.xpose.msra.mxu0 %v1160
      %1181 = vmatprep.subr.bf16.mxu0 0
      %1182 = vmatpush2.bf16.xpose.msra.mxu0 0
      %1183 = vmatprep.subr.bf16.mxu0 0
      %1184 = vmatpush2.bf16.xpose.msra.mxu0 0
      %1185 = vmatprep.subr.bf16.mxu0 0
      %1186 = vmatpush2.bf16.xpose.msra.mxu0 0
      %1187 = vmatprep.subr.bf16.mxu0 0
      %1188 = vmatpush2.bf16.xpose.msra.mxu0 0
      %1189 = vmatprep.subr.bf16.mxu0 0
      %1190 = vmatpush2.bf16.xpose.msra.mxu0 0
      %1191 = vmatprep.subr.bf16.mxu0 0
      %1192 = vmatpush2.bf16.xpose.msra.mxu0 0
      %1193 = vmatprep.subr.bf16.mxu0 0
      %1194 = vmatpush2.bf16.xpose.msra.mxu0 0
      %1195 = vmatprep.subr.bf16.mxu0 0
      %1196 = vmatpush2.bf16.xpose.msra.mxu0 0
      %1197 = vmatprep.mubr.bf16.mxu0 0
      %1198 = vmatmul.mubr.bf16.gmra.mxu0 %v1154
      %v1199 = vpop.f32.mrf.mxu0
      %v1200 = vadd.f32 0.0, %v1199
      %v1201 = vpop.f32.mrf.mxu0
      %v1202 = vpop.f32.mrf.mxu0
      %v1203 = vadd.f32 0.0, %v1202
      %v1204 = vpop.f32.mrf.mxu0
      %1205 = vmatprep.mubr.bf16.mxu0 0
      %1206 = vmatmul.mubr.bf16.gmra.mxu0 %v1157
      %v1207 = vpop.f32.mrf.mxu0
      %v1208 = vadd.f32 0.0, %v1207
      %v1209 = vpop.f32.mrf.mxu0
      %v1210 = vpop.f32.mrf.mxu0
      %v1211 = vpop.f32.mrf.mxu0
      %1212 = vdwg.mxu0
      %v1213 = vsel %vm876, %v1200, -inf
      %1214 = vmax.xlane.f32.xlu0 %v1213
      %v1215 = vpop.xlane.xlu0 %1214
      %v1216 = vsel %vm876, %v1203, -inf
      %1217 = vmax.xlane.f32.xlu0 %v1216
      %v1218 = vpop.xlane.xlu0 %1217
      %v1219 = vsel %vm883, %v1208, -inf
      %1220 = vmax.xlane.f32.xlu0 %v1219
      %v1221 = vpop.xlane.xlu0 %1220
      %v1222 = vsub.f32 %v1200, %v1215
      %v1223 = vsub.f32 %v1203, %v1218
      %v1224 = vsub.f32 %v1208, %v1221
      %v1225 = vmul.f32 %v1222, 1.442695
      %v1226 = vpow.pop %v1225
      %v1227 = vmul.f32 %v1223, 1.442695
      %v1228 = vpow.pop %v1227
      %v1229 = vmul.f32 %v1224, 1.442695
      %v1230 = vpow.pop %v1229
      %v1231 = vsel %vm876, %v1226, 0.0
      %1232 = vadd.xlane.f32.xlu0 %v1231
      %v1233 = vpop.xlane.xlu0 %1232
      %v1234 = vsel %vm876, %v1228, 0.0
      %1235 = vadd.xlane.f32.xlu0 %v1234
      %v1236 = vpop.xlane.xlu0 %1235
      %v1237 = vsel %vm883, %v1230, 0.0
      %1238 = vadd.xlane.f32.xlu0 %v1237
      %v1239 = vpop.xlane.xlu0 %1238
      %v1240 = vrcp.pop %v1233
      %v1241 = vrcp.pop %v1236
      %v1242 = vrcp.pop %v1239
      %v1243 = vmul.f32 %v1226, %v1240
      %v1244 = vmul.f32 %v1228, %v1241
      %v1245 = vmul.f32 %v1230, %v1242
      %v1246 = vpack.c.bf16 %v1244, %v1243
      %v1247 = vpack.c.bf16 %v1245, %v1245
      %1248 = vrot.lane.b32.xlu0 %v807, 48
      %v1249 = vpop.permute.xlu0 %1248
      %1250 = vrot.lane.b32.xlu0 %v808, 48
      %v1251 = vpop.permute.xlu0 %1250
      %v1254 = vsel %vm876, %v1246, 0
      %v1257 = vsel %vm876, %v1247, 0
      %v1260 = vand.u32 %v1251, %v926
      %1262 = vmatprep.subr.bf16.mxu0 0
      %1263 = vmatpush1.bf16.msra.mxu0 0
      %1264 = vmatprep.subr.bf16.mxu0 0
      %1265 = vmatpush1.bf16.msra.mxu0 0
      %1266 = vmatprep.subr.bf16.mxu0 0
      %1267 = vmatpush1.bf16.msra.mxu0 0
      %1268 = vmatprep.subr.bf16.mxu0 0
      %1269 = vmatpush1.bf16.msra.mxu0 0
      %1270 = vmatprep.subr.bf16.mxu0 0
      %1271 = vmatpush1.bf16.msra.mxu0 0
      %1272 = vmatprep.subr.bf16.mxu0 0
      %1273 = vmatpush1.bf16.msra.mxu0 0
      %1274 = vmatprep.subr.bf16.mxu0 0
      %1275 = vmatpush1.bf16.msra.mxu0 %v1260
      %1276 = vmatprep.subr.bf16.mxu0 0
      %1277 = vmatpush1.bf16.msra.mxu0 %v1249
      %1278 = vmatprep.subr.bf16.mxu0 0
      %1279 = vmatpush2.bf16.msra.mxu0 0
      %1280 = vmatprep.subr.bf16.mxu0 0
      %1281 = vmatpush2.bf16.msra.mxu0 0
      %1282 = vmatprep.subr.bf16.mxu0 0
      %1283 = vmatpush2.bf16.msra.mxu0 0
      %1284 = vmatprep.subr.bf16.mxu0 0
      %1285 = vmatpush2.bf16.msra.mxu0 0
      %1286 = vmatprep.subr.bf16.mxu0 0
      %1287 = vmatpush2.bf16.msra.mxu0 0
      %1288 = vmatprep.subr.bf16.mxu0 0
      %1289 = vmatpush2.bf16.msra.mxu0 0
      %1290 = vmatprep.subr.bf16.mxu0 0
      %1291 = vmatpush2.bf16.msra.mxu0 0
      %1292 = vmatprep.subr.bf16.mxu0 0
      %1293 = vmatpush2.bf16.msra.mxu0 0
      %1294 = vmatprep.mubr.bf16.mxu0 0
      %1295 = vmatmul.mubr.bf16.gmra.mxu0 %v1254
      %v1296 = vpop.f32.mrf.mxu0
      %v1297 = vadd.f32 0.0, %v1296
      %v1298 = vpop.f32.mrf.mxu0
      %v1299 = vpop.f32.mrf.mxu0
      %v1300 = vadd.f32 0.0, %v1299
      %v1301 = vpop.f32.mrf.mxu0
      %1302 = vmatprep.mubr.bf16.mxu0 0
      %1303 = vmatmul.mubr.bf16.gmra.mxu0 %v1257
      %v1304 = vpop.f32.mrf.mxu0
      %v1305 = vadd.f32 0.0, %v1304
      %v1306 = vpop.f32.mrf.mxu0
      %v1307 = vpop.f32.mrf.mxu0
      %v1308 = vpop.f32.mrf.mxu0
      %1309 = vdwg.mxu0
      %1310 = vrot.lane.b32.xlu0 %v805, 104
      %v1311 = vpop.permute.xlu0 %1310
      %1312 = vrot.lane.b32.xlu0 %v806, 104
      %v1313 = vpop.permute.xlu0 %1312
      %1314 = vrot.lane.b32.xlu0 %v807, 72
      %v1315 = vpop.permute.xlu0 %1314
      %1316 = vrot.lane.b32.xlu0 %v808, 72
      %v1317 = vpop.permute.xlu0 %1316
      %v1319 = vsel %vm815, %v1311, 0
      %v1322 = vsel %vm815, %v1313, 0
      %v1325 = vsel %vm815, %v1315, 0
      %v1328 = vsel %vm815, %v1317, 0
      %1330 = vmatprep.subr.bf16.mxu0 0
      %1331 = vmatpush1.bf16.xpose.msra.mxu0 0
      %1332 = vmatprep.subr.bf16.mxu0 0
      %1333 = vmatpush1.bf16.xpose.msra.mxu0 0
      %1334 = vmatprep.subr.bf16.mxu0 0
      %1335 = vmatpush1.bf16.xpose.msra.mxu0 0
      %1336 = vmatprep.subr.bf16.mxu0 0
      %1337 = vmatpush1.bf16.xpose.msra.mxu0 0
      %1338 = vmatprep.subr.bf16.mxu0 0
      %1339 = vmatpush1.bf16.xpose.msra.mxu0 0
      %1340 = vmatprep.subr.bf16.mxu0 0
      %1341 = vmatpush1.bf16.xpose.msra.mxu0 0
      %1342 = vmatprep.subr.bf16.mxu0 0
      %1343 = vmatpush1.bf16.xpose.msra.mxu0 %v1328
      %1344 = vmatprep.subr.bf16.mxu0 0
      %1345 = vmatpush1.bf16.xpose.msra.mxu0 %v1325
      %1346 = vmatprep.subr.bf16.mxu0 0
      %1347 = vmatpush2.bf16.xpose.msra.mxu0 0
      %1348 = vmatprep.subr.bf16.mxu0 0
      %1349 = vmatpush2.bf16.xpose.msra.mxu0 0
      %1350 = vmatprep.subr.bf16.mxu0 0
      %1351 = vmatpush2.bf16.xpose.msra.mxu0 0
      %1352 = vmatprep.subr.bf16.mxu0 0
      %1353 = vmatpush2.bf16.xpose.msra.mxu0 0
      %1354 = vmatprep.subr.bf16.mxu0 0
      %1355 = vmatpush2.bf16.xpose.msra.mxu0 0
      %1356 = vmatprep.subr.bf16.mxu0 0
      %1357 = vmatpush2.bf16.xpose.msra.mxu0 0
      %1358 = vmatprep.subr.bf16.mxu0 0
      %1359 = vmatpush2.bf16.xpose.msra.mxu0 0
      %1360 = vmatprep.subr.bf16.mxu0 0
      %1361 = vmatpush2.bf16.xpose.msra.mxu0 0
      %1362 = vmatprep.mubr.bf16.mxu0 0
      %1363 = vmatmul.mubr.bf16.gmra.mxu0 %v1319
      %v1364 = vpop.f32.mrf.mxu0
      %v1365 = vadd.f32 0.0, %v1364
      %v1366 = vpop.f32.mrf.mxu0
      %v1367 = vpop.f32.mrf.mxu0
      %v1368 = vadd.f32 0.0, %v1367
      %v1369 = vpop.f32.mrf.mxu0
      %1370 = vmatprep.mubr.bf16.mxu0 0
      %1371 = vmatmul.mubr.bf16.gmra.mxu0 %v1322
      %v1372 = vpop.f32.mrf.mxu0
      %v1373 = vadd.f32 0.0, %v1372
      %v1374 = vpop.f32.mrf.mxu0
      %v1375 = vpop.f32.mrf.mxu0
      %v1376 = vpop.f32.mrf.mxu0
      %1377 = vdwg.mxu0
      %v1378 = vsel %vm876, %v1365, -inf
      %1379 = vmax.xlane.f32.xlu0 %v1378
      %v1380 = vpop.xlane.xlu0 %1379
      %v1381 = vsel %vm876, %v1368, -inf
      %1382 = vmax.xlane.f32.xlu0 %v1381
      %v1383 = vpop.xlane.xlu0 %1382
      %v1384 = vsel %vm883, %v1373, -inf
      %1385 = vmax.xlane.f32.xlu0 %v1384
      %v1386 = vpop.xlane.xlu0 %1385
      %v1387 = vsub.f32 %v1365, %v1380
      %v1388 = vsub.f32 %v1368, %v1383
      %v1389 = vsub.f32 %v1373, %v1386
      %v1390 = vmul.f32 %v1387, 1.442695
      %v1391 = vpow.pop %v1390
      %v1392 = vmul.f32 %v1388, 1.442695
      %v1393 = vpow.pop %v1392
      %v1394 = vmul.f32 %v1389, 1.442695
      %v1395 = vpow.pop %v1394
      %v1396 = vsel %vm876, %v1391, 0.0
      %1397 = vadd.xlane.f32.xlu0 %v1396
      %v1398 = vpop.xlane.xlu0 %1397
      %v1399 = vsel %vm876, %v1393, 0.0
      %1400 = vadd.xlane.f32.xlu0 %v1399
      %v1401 = vpop.xlane.xlu0 %1400
      %v1402 = vsel %vm883, %v1395, 0.0
      %1403 = vadd.xlane.f32.xlu0 %v1402
      %v1404 = vpop.xlane.xlu0 %1403
      %v1405 = vrcp.pop %v1398
      %v1406 = vrcp.pop %v1401
      %v1407 = vrcp.pop %v1404
      %v1408 = vmul.f32 %v1391, %v1405
      %v1409 = vmul.f32 %v1393, %v1406
      %v1410 = vmul.f32 %v1395, %v1407
      %v1411 = vpack.c.bf16 %v1409, %v1408
      %v1412 = vpack.c.bf16 %v1410, %v1410
      %1413 = vrot.lane.b32.xlu0 %v807, 40
      %v1414 = vpop.permute.xlu0 %1413
      %1415 = vrot.lane.b32.xlu0 %v808, 40
      %v1416 = vpop.permute.xlu0 %1415
      %v1419 = vsel %vm876, %v1411, 0
      %v1422 = vsel %vm876, %v1412, 0
      %v1425 = vand.u32 %v1416, %v926
      %1427 = vmatprep.subr.bf16.mxu0 0
      %1428 = vmatpush1.bf16.msra.mxu0 0
      %1429 = vmatprep.subr.bf16.mxu0 0
      %1430 = vmatpush1.bf16.msra.mxu0 0
      %1431 = vmatprep.subr.bf16.mxu0 0
      %1432 = vmatpush1.bf16.msra.mxu0 0
      %1433 = vmatprep.subr.bf16.mxu0 0
      %1434 = vmatpush1.bf16.msra.mxu0 0
      %1435 = vmatprep.subr.bf16.mxu0 0
      %1436 = vmatpush1.bf16.msra.mxu0 0
      %1437 = vmatprep.subr.bf16.mxu0 0
      %1438 = vmatpush1.bf16.msra.mxu0 0
      %1439 = vmatprep.subr.bf16.mxu0 0
      %1440 = vmatpush1.bf16.msra.mxu0 %v1425
      %1441 = vmatprep.subr.bf16.mxu0 0
      %1442 = vmatpush1.bf16.msra.mxu0 %v1414
      %1443 = vmatprep.subr.bf16.mxu0 0
      %1444 = vmatpush2.bf16.msra.mxu0 0
      %1445 = vmatprep.subr.bf16.mxu0 0
      %1446 = vmatpush2.bf16.msra.mxu0 0
      %1447 = vmatprep.subr.bf16.mxu0 0
      %1448 = vmatpush2.bf16.msra.mxu0 0
      %1449 = vmatprep.subr.bf16.mxu0 0
      %1450 = vmatpush2.bf16.msra.mxu0 0
      %1451 = vmatprep.subr.bf16.mxu0 0
      %1452 = vmatpush2.bf16.msra.mxu0 0
      %1453 = vmatprep.subr.bf16.mxu0 0
      %1454 = vmatpush2.bf16.msra.mxu0 0
      %1455 = vmatprep.subr.bf16.mxu0 0
      %1456 = vmatpush2.bf16.msra.mxu0 0
      %1457 = vmatprep.subr.bf16.mxu0 0
      %1458 = vmatpush2.bf16.msra.mxu0 0
      %1459 = vmatprep.mubr.bf16.mxu0 0
      %1460 = vmatmul.mubr.bf16.gmra.mxu0 %v1419
      %v1461 = vpop.f32.mrf.mxu0
      %v1462 = vadd.f32 0.0, %v1461
      %v1463 = vpop.f32.mrf.mxu0
      %v1464 = vpop.f32.mrf.mxu0
      %v1465 = vadd.f32 0.0, %v1464
      %v1466 = vpop.f32.mrf.mxu0
      %1467 = vmatprep.mubr.bf16.mxu0 0
      %1468 = vmatmul.mubr.bf16.gmra.mxu0 %v1422
      %v1469 = vpop.f32.mrf.mxu0
      %v1470 = vadd.f32 0.0, %v1469
      %v1471 = vpop.f32.mrf.mxu0
      %v1472 = vpop.f32.mrf.mxu0
      %v1473 = vpop.f32.mrf.mxu0
      %1474 = vdwg.mxu0
      %1478 = vrot.lane.b32.xlu0 %v1132, 8
      %v1479 = vpop.permute.xlu0 %1478
      %1480 = vrot.lane.b32.xlu0 %v1135, 8
      %v1481 = vpop.permute.xlu0 %1480
      %1482 = vrot.lane.b32.xlu0 %v1140, 8
      %v1483 = vpop.permute.xlu0 %1482
      %1490 = vrot.lane.b32.xlu0 %v1297, 16
      %v1491 = vpop.permute.xlu0 %1490
      %1492 = vrot.lane.b32.xlu0 %v1300, 16
      %v1493 = vpop.permute.xlu0 %1492
      %1494 = vrot.lane.b32.xlu0 %v1305, 16
      %v1495 = vpop.permute.xlu0 %1494
      %1502 = vrot.lane.b32.xlu0 %v1462, 24
      %v1503 = vpop.permute.xlu0 %1502
      %1504 = vrot.lane.b32.xlu0 %v1465, 24
      %v1505 = vpop.permute.xlu0 %1504
      %1506 = vrot.lane.b32.xlu0 %v1470, 24
      %v1507 = vpop.permute.xlu0 %1506
      %v1511 = vsel %vm815, %v965, %v1479
      %v1512 = vsel %vm815, %v968, %v1481
      %v1513 = vsel %vm815, %v973, %v1483
      %vm1514 = vcmask 130048
      %v1515 = vsel %vm1514, %v1511, %v1491
      %v1516 = vsel %vm1514, %v1512, %v1493
      %v1517 = vsel %vm1514, %v1513, %v1495
      %vm1518 = vcmask 195584
      %v1519 = vsel %vm1518, %v1515, %v1503
      %v1520 = vsel %vm1518, %v1516, %v1505
      %v1521 = vsel %vm1518, %v1517, %v1507
      %v1522 = vpack.c.bf16 %v1520, %v1519
      %v1523 = vpack.c.bf16 %v1521, %v1521
      %v1524 = vld [vmem:[%s614] sm:$0xf]
      %v1525 = vld [vmem:[%s614 + $0x4] sm:$0xf]
      %v1526 = vld [vmem:[%s614 + $0x8] sm:$0xf]
      %v1527 = vld [vmem:[%s614 + $0xc] sm:$0xf]
      %v1532 = vunpack.c.l.b16 %v1524
      %v1533 = vunpack.c.l.b16 %v1525
      %v1534 = vunpack.c.l.b16 %v1526
      %v1535 = vunpack.c.l.b16 %v1527
      %v1536 = vpack.c.b16 %v1533, %v1532
      %v1537 = vpack.c.b16 %v1535, %v1534
      %v1541 = vsel %vm663, %v1522, 0
      %v1544 = vsel %vm663, %v1523, 0
      %1546 = vmatprep.subr.bf16.mxu0 0
      %1547 = vmatpush1.bf16.msra.mxu0 0
      %1548 = vmatprep.subr.bf16.mxu0 0
      %1549 = vmatpush1.bf16.msra.mxu0 0
      %1550 = vmatprep.subr.bf16.mxu0 0
      %1551 = vmatpush1.bf16.msra.mxu0 0
      %1552 = vmatprep.subr.bf16.mxu0 0
      %1553 = vmatpush1.bf16.msra.mxu0 0
      %1554 = vmatprep.subr.bf16.mxu0 0
      %1555 = vmatpush1.bf16.msra.mxu0 0
      %1556 = vmatprep.subr.bf16.mxu0 0
      %1557 = vmatpush1.bf16.msra.mxu0 0
      %1558 = vmatprep.subr.bf16.mxu0 0
      %1559 = vmatpush1.bf16.msra.mxu0 %v1537
      %1560 = vmatprep.subr.bf16.mxu0 0
      %1561 = vmatpush1.bf16.msra.mxu0 %v1536
      %1562 = vmatprep.subr.bf16.mxu0 0
      %1563 = vmatpush2.bf16.msra.mxu0 0
      %1564 = vmatprep.subr.bf16.mxu0 0
      %1565 = vmatpush2.bf16.msra.mxu0 0
      %1566 = vmatprep.subr.bf16.mxu0 0
      %1567 = vmatpush2.bf16.msra.mxu0 0
      %1568 = vmatprep.subr.bf16.mxu0 0
      %1569 = vmatpush2.bf16.msra.mxu0 0
      %1570 = vmatprep.subr.bf16.mxu0 0
      %1571 = vmatpush2.bf16.msra.mxu0 0
      %1572 = vmatprep.subr.bf16.mxu0 0
      %1573 = vmatpush2.bf16.msra.mxu0 0
      %1574 = vmatprep.subr.bf16.mxu0 0
      %1575 = vmatpush2.bf16.msra.mxu0 0
      %1576 = vmatprep.subr.bf16.mxu0 0
      %1577 = vmatpush2.bf16.msra.mxu0 0
      %1578 = vmatprep.mubr.bf16.mxu0 0
      %1579 = vmatmul.mubr.bf16.gmra.mxu0 %v1541
      %v1580 = vpop.f32.mrf.mxu0
      %v1581 = vadd.f32 0.0, %v1580
      %v1582 = vpop.f32.mrf.mxu0
      %v1583 = vpop.f32.mrf.mxu0
      %v1584 = vadd.f32 0.0, %v1583
      %v1585 = vpop.f32.mrf.mxu0
      %1586 = vmatprep.mubr.bf16.mxu0 0
      %1587 = vmatmul.mubr.bf16.gmra.mxu0 %v1544
      %v1588 = vpop.f32.mrf.mxu0
      %v1589 = vadd.f32 0.0, %v1588
      %v1590 = vpop.f32.mrf.mxu0
      %v1591 = vpop.f32.mrf.mxu0
      %v1592 = vpop.f32.mrf.mxu0
      %1593 = vdwg.mxu0
      %v1594 = vadd.f32 %v658, %v1581
      %v1595 = vadd.f32 %v659, %v1584
      %v1596 = vadd.f32 %v660, %v1589
      %v1597 = vld [vmem:[%s617] sm:$0x1]
      %v1599 = vlaneseq
      %v1600 = vshrl.u32 %v1599, 7
      %v1601 = vsub.s32 0, %v1600
      %v1602 = vrot.slane %v1597, %v1601
      %v1604 = vadd.f32 %v1594, %v1602
      %v1605 = vadd.f32 %v1595, %v1602
      %v1606 = vadd.f32 %v1596, %v1602
      %v1607 = vld [vmem:[%s620] sm:$0x1]
      %v1608 = vld [vmem:[%s623] sm:$0x1]
      %v1609 = vsel %vm663, %v1604, 0.0
      %1610 = vadd.xlane.f32.xlu0 %v1609
      %v1611 = vpop.xlane.xlu0 %1610
      %v1612 = vsel %vm663, %v1605, 0.0
      %1613 = vadd.xlane.f32.xlu0 %v1612
      %v1614 = vpop.xlane.xlu0 %1613
      %v1615 = vsel %vm670, %v1606, 0.0
      %1616 = vadd.xlane.f32.xlu0 %v1615
      %v1617 = vpop.xlane.xlu0 %1616
      %v1618 = vmul.f32 %v1611, %v674
      %v1619 = vmul.f32 %v1614, %v674
      %v1620 = vmul.f32 %v1617, %v674
      %v1621 = vsub.f32 %v1604, %v1618
      %v1622 = vsub.f32 %v1605, %v1619
      %v1623 = vsub.f32 %v1606, %v1620
      %v1624 = vmul.f32 %v1621, %v1621
      %v1625 = vmul.f32 %v1622, %v1622
      %v1626 = vmul.f32 %v1623, %v1623
      %v1627 = vsel %vm663, %v1624, 0.0
      %1628 = vadd.xlane.f32.xlu0 %v1627
      %v1629 = vpop.xlane.xlu0 %1628
      %v1630 = vsel %vm663, %v1625, 0.0
      %1631 = vadd.xlane.f32.xlu0 %v1630
      %v1632 = vpop.xlane.xlu0 %1631
      %v1633 = vsel %vm670, %v1626, 0.0
      %1634 = vadd.xlane.f32.xlu0 %v1633
      %v1635 = vpop.xlane.xlu0 %1634
      %v1636 = vmul.f32 %v1629, %v674
      %v1637 = vmul.f32 %v1632, %v674
      %v1638 = vmul.f32 %v1635, %v674
      %v1639 = vadd.f32 %v1636, 1e-05
      %v1640 = vadd.f32 %v1637, 1e-05
      %v1641 = vadd.f32 %v1638, 1e-05
      %v1642 = vrsqrt.pop %v1639
      %v1643 = vrsqrt.pop %v1640
      %v1644 = vrsqrt.pop %v1641
      %v1645 = vmul.f32 %v1621, %v1642
      %v1646 = vmul.f32 %v1622, %v1643
      %v1647 = vmul.f32 %v1623, %v1644
      %v1649 = vlaneseq
      %v1650 = vshrl.u32 %v1649, 7
      %v1651 = vsub.s32 0, %v1650
      %v1652 = vrot.slane %v1607, %v1651
      %v1654 = vmul.f32 %v1645, %v1652
      %v1655 = vmul.f32 %v1646, %v1652
      %v1656 = vmul.f32 %v1647, %v1652
      %v1658 = vlaneseq
      %v1659 = vshrl.u32 %v1658, 7
      %v1660 = vsub.s32 0, %v1659
      %v1661 = vrot.slane %v1608, %v1660
      %v1663 = vadd.f32 %v1654, %v1661
      %v1664 = vadd.f32 %v1655, %v1661
      %v1665 = vadd.f32 %v1656, %v1661
      %v1666 = vpack.c.bf16 %v1664, %v1663
      %v1667 = vpack.c.bf16 %v1665, %v1665
      %v1668 = vld [vmem:[%s628] sm:$0xf]
      %v1669 = vld [vmem:[%s628 + $0x4] sm:$0xf]
      %v1670 = vld [vmem:[%s628 + $0x8] sm:$0xf]
      %v1671 = vld [vmem:[%s628 + $0xc] sm:$0xf]
      %v1672 = vld [vmem:[%s631] sm:$0x1]
      %v1674 = vlaneseq
      %v1675 = vshrl.u32 %v1674, 7
      %v1676 = vsub.s32 0, %v1675
      %v1677 = vrot.slane %v1672, %v1676
      %v1683 = vunpack.c.l.b16 %v1668
      %v1684 = vunpack.c.l.b16 %v1669
      %v1685 = vunpack.c.l.b16 %v1670
      %v1686 = vunpack.c.l.b16 %v1671
      %v1687 = vpack.c.b16 %v1684, %v1683
      %v1688 = vpack.c.b16 %v1686, %v1685
      %v1692 = vsel %vm663, %v1666, 0
      %v1695 = vsel %vm663, %v1667, 0
      %1697 = vmatprep.subr.bf16.mxu0 0
      %1698 = vmatpush1.bf16.msra.mxu0 0
      %1699 = vmatprep.subr.bf16.mxu0 0
      %1700 = vmatpush1.bf16.msra.mxu0 0
      %1701 = vmatprep.subr.bf16.mxu0 0
      %1702 = vmatpush1.bf16.msra.mxu0 0
      %1703 = vmatprep.subr.bf16.mxu0 0
      %1704 = vmatpush1.bf16.msra.mxu0 0
      %1705 = vmatprep.subr.bf16.mxu0 0
      %1706 = vmatpush1.bf16.msra.mxu0 0
      %1707 = vmatprep.subr.bf16.mxu0 0
      %1708 = vmatpush1.bf16.msra.mxu0 0
      %1709 = vmatprep.subr.bf16.mxu0 0
      %1710 = vmatpush1.bf16.msra.mxu0 %v1688
      %1711 = vmatprep.subr.bf16.mxu0 0
      %1712 = vmatpush1.bf16.msra.mxu0 %v1687
      %1713 = vmatprep.subr.bf16.mxu0 0
      %1714 = vmatpush2.bf16.msra.mxu0 0
      %1715 = vmatprep.subr.bf16.mxu0 0
      %1716 = vmatpush2.bf16.msra.mxu0 0
      %1717 = vmatprep.subr.bf16.mxu0 0
      %1718 = vmatpush2.bf16.msra.mxu0 0
      %1719 = vmatprep.subr.bf16.mxu0 0
      %1720 = vmatpush2.bf16.msra.mxu0 0
      %1721 = vmatprep.subr.bf16.mxu0 0
      %1722 = vmatpush2.bf16.msra.mxu0 0
      %1723 = vmatprep.subr.bf16.mxu0 0
      %1724 = vmatpush2.bf16.msra.mxu0 0
      %1725 = vmatprep.subr.bf16.mxu0 0
      %1726 = vmatpush2.bf16.msra.mxu0 0
      %1727 = vmatprep.subr.bf16.mxu0 0
      %1728 = vmatpush2.bf16.msra.mxu0 0
      %1729 = vmatprep.mubr.bf16.mxu0 0
      %1730 = vmatmul.mubr.bf16.gmra.mxu0 %v1692
      %v1731 = vpop.f32.mrf.mxu0
      %v1732 = vadd.f32 %v1677, %v1731
      %v1733 = vpop.f32.mrf.mxu0
      %v1734 = vpop.f32.mrf.mxu0
      %v1735 = vadd.f32 %v1677, %v1734
      %v1736 = vpop.f32.mrf.mxu0
      %1737 = vmatprep.mubr.bf16.mxu0 0
      %1738 = vmatmul.mubr.bf16.gmra.mxu0 %v1695
      %v1739 = vpop.f32.mrf.mxu0
      %v1740 = vadd.f32 %v1677, %v1739
      %v1741 = vpop.f32.mrf.mxu0
      %v1742 = vpop.f32.mrf.mxu0
      %v1743 = vpop.f32.mrf.mxu0
      %1744 = vdwg.mxu0
      %v1745 = vmul.f32 %v1732, 0.5
      %v1746 = vmul.f32 %v1735, 0.5
      %v1747 = vmul.f32 %v1740, 0.5
      %v1748 = vmul.f32 %v1732, 0.044715
      %v1749 = vmul.f32 %v1735, 0.044715
      %v1750 = vmul.f32 %v1740, 0.044715
      %v1751 = vmul.f32 %v1748, %v1732
      %v1752 = vmul.f32 %v1749, %v1735
      %v1753 = vmul.f32 %v1750, %v1740
      %v1754 = vmul.f32 %v1751, %v1732
      %v1755 = vmul.f32 %v1752, %v1735
      %v1756 = vmul.f32 %v1753, %v1740
      %v1757 = vadd.f32 %v1732, %v1754
      %v1758 = vadd.f32 %v1735, %v1755
      %v1759 = vadd.f32 %v1740, %v1756
      %v1760 = vmul.f32 %v1757, 0.7978846
      %v1761 = vmul.f32 %v1758, 0.7978846
      %v1762 = vmul.f32 %v1759, 0.7978846
      %v1763 = vtanh.pop %v1760
      %v1764 = vtanh.pop %v1761
      %v1765 = vtanh.pop %v1762
      %v1766 = vadd.f32 %v1763, 1.0
      %v1767 = vadd.f32 %v1764, 1.0
      %v1768 = vadd.f32 %v1765, 1.0
      %v1769 = vmul.f32 %v1745, %v1766
      %v1770 = vmul.f32 %v1746, %v1767
      %v1771 = vmul.f32 %v1747, %v1768
      %v1772 = vpack.c.bf16 %v1770, %v1769
      %v1773 = vpack.c.bf16 %v1771, %v1771
      %v1774 = vld [vmem:[%s636] sm:$0xf]
      %v1775 = vld [vmem:[%s636 + $0x4] sm:$0xf]
      %v1776 = vld [vmem:[%s636 + $0x8] sm:$0xf]
      %v1777 = vld [vmem:[%s636 + $0xc] sm:$0xf]
      %v1778 = vld [vmem:[%s636 + $0x10] sm:$0xf]
      %v1779 = vld [vmem:[%s636 + $0x14] sm:$0xf]
      %v1780 = vld [vmem:[%s636 + $0x18] sm:$0xf]
      %v1781 = vld [vmem:[%s636 + $0x1c] sm:$0xf]
      %v1782 = vld [vmem:[%s636 + $0x20] sm:$0xf]
      %v1783 = vld [vmem:[%s636 + $0x24] sm:$0xf]
      %v1784 = vld [vmem:[%s636 + $0x28] sm:$0xf]
      %v1785 = vld [vmem:[%s636 + $0x2c] sm:$0xf]
      %v1786 = vld [vmem:[%s636 + $0x30] sm:$0xf]
      %v1787 = vld [vmem:[%s636 + $0x34] sm:$0xf]
      %v1788 = vld [vmem:[%s636 + $0x38] sm:$0xf]
      %v1789 = vld [vmem:[%s636 + $0x3c] sm:$0xf]
      %v1806 = vunpack.c.l.b16 %v1774
      %v1807 = vunpack.c.l.b16 %v1775
      %v1808 = vunpack.c.l.b16 %v1776
      %v1809 = vunpack.c.l.b16 %v1777
      %v1810 = vunpack.c.l.b16 %v1778
      %v1811 = vunpack.c.l.b16 %v1779
      %v1812 = vunpack.c.l.b16 %v1780
      %v1813 = vunpack.c.l.b16 %v1781
      %v1814 = vunpack.c.l.b16 %v1782
      %v1815 = vunpack.c.l.b16 %v1783
      %v1816 = vunpack.c.l.b16 %v1784
      %v1817 = vunpack.c.l.b16 %v1785
      %v1818 = vunpack.c.l.b16 %v1786
      %v1819 = vunpack.c.l.b16 %v1787
      %v1820 = vunpack.c.l.b16 %v1788
      %v1821 = vunpack.c.l.b16 %v1789
      %v1822 = vpack.c.b16 %v1807, %v1806
      %v1823 = vpack.c.b16 %v1809, %v1808
      %v1824 = vpack.c.b16 %v1811, %v1810
      %v1825 = vpack.c.b16 %v1813, %v1812
      %v1826 = vpack.c.b16 %v1815, %v1814
      %v1827 = vpack.c.b16 %v1817, %v1816
      %v1828 = vpack.c.b16 %v1819, %v1818
      %v1829 = vpack.c.b16 %v1821, %v1820
      %1838 = vmatprep.subr.bf16.mxu0 0
      %1839 = vmatpush1.bf16.msra.mxu0 %v1829
      %1840 = vmatprep.subr.bf16.mxu0 0
      %1841 = vmatpush1.bf16.msra.mxu0 %v1828
      %1842 = vmatprep.subr.bf16.mxu0 0
      %1843 = vmatpush1.bf16.msra.mxu0 %v1827
      %1844 = vmatprep.subr.bf16.mxu0 0
      %1845 = vmatpush1.bf16.msra.mxu0 %v1826
      %1846 = vmatprep.subr.bf16.mxu0 0
      %1847 = vmatpush1.bf16.msra.mxu0 %v1825
      %1848 = vmatprep.subr.bf16.mxu0 0
      %1849 = vmatpush1.bf16.msra.mxu0 %v1824
      %1850 = vmatprep.subr.bf16.mxu0 0
      %1851 = vmatpush1.bf16.msra.mxu0 %v1823
      %1852 = vmatprep.subr.bf16.mxu0 0
      %1853 = vmatpush1.bf16.msra.mxu0 %v1822
      %1854 = vmatprep.subr.bf16.mxu0 0
      %1855 = vmatpush2.bf16.msra.mxu0 0
      %1856 = vmatprep.subr.bf16.mxu0 0
      %1857 = vmatpush2.bf16.msra.mxu0 0
      %1858 = vmatprep.subr.bf16.mxu0 0
      %1859 = vmatpush2.bf16.msra.mxu0 0
      %1860 = vmatprep.subr.bf16.mxu0 0
      %1861 = vmatpush2.bf16.msra.mxu0 0
      %1862 = vmatprep.subr.bf16.mxu0 0
      %1863 = vmatpush2.bf16.msra.mxu0 0
      %1864 = vmatprep.subr.bf16.mxu0 0
      %1865 = vmatpush2.bf16.msra.mxu0 0
      %1866 = vmatprep.subr.bf16.mxu0 0
      %1867 = vmatpush2.bf16.msra.mxu0 0
      %1868 = vmatprep.subr.bf16.mxu0 0
      %1869 = vmatpush2.bf16.msra.mxu0 0
      %1870 = vmatprep.mubr.bf16.mxu0 0
      %1871 = vmatmul.mubr.bf16.gmra.mxu0 %v1772
      %v1872 = vpop.f32.mrf.mxu0
      %v1873 = vadd.f32 0.0, %v1872
      %v1874 = vpop.f32.mrf.mxu0
      %v1875 = vpop.f32.mrf.mxu0
      %v1876 = vadd.f32 0.0, %v1875
      %v1877 = vpop.f32.mrf.mxu0
      %1878 = vmatprep.mubr.bf16.mxu0 0
      %1879 = vmatmul.mubr.bf16.gmra.mxu0 %v1773
      %v1880 = vpop.f32.mrf.mxu0
      %v1881 = vadd.f32 0.0, %v1880
      %v1882 = vpop.f32.mrf.mxu0
      %v1883 = vpop.f32.mrf.mxu0
      %v1884 = vpop.f32.mrf.mxu0
      %1885 = vdwg.mxu0
      %v1886 = vadd.f32 %v1604, %v1873
      %v1887 = vadd.f32 %v1605, %v1876
      %v1888 = vadd.f32 %v1606, %v1881
      %v1889 = vld [vmem:[%s639] sm:$0x1]
      %v1891 = vlaneseq
      %v1892 = vshrl.u32 %v1891, 7
      %v1893 = vsub.s32 0, %v1892
      %v1894 = vrot.slane %v1889, %v1893
      %v1896 = vadd.f32 %v1886, %v1894
      %v1897 = vadd.f32 %v1887, %v1894
      %v1898 = vadd.f32 %v1888, %v1894
      %1899 = vst.msk [vmem:[#allocation2] sm:$0xff] %vm663, %v1896
      %1900 = vst.msk [vmem:[#allocation2 + $0x8] sm:$0xff] %vm663, %v1897
      %1901 = vst.msk [vmem:[#allocation2 + $0x10] sm:$0x1] %vm670, %v1898
      %p1902 = scmp.eq.s32.totalorder %s29, 1
      // Predicated region
      $region77: #{_lambda_.8} parent=71 // pred_check
        %p1903 = pneg %p1902
      $region78: #{_lambda_.8} parent=71 // pred_check_branch
        %1905 = sbr.rel (%p1903) target = $region80
      $region79: #{_lambda_.8} parent=71 // pred_region
        %1906 = vst.msk [vmem:[%s644] sm:$0xff] %vm663, %v1896
        %1907 = vst.msk [vmem:[%s644 + $0x8] sm:$0xff] %vm663, %v1897
        %1908 = vst.msk [vmem:[%s644 + $0x10] sm:$0x1] %vm670, %v1898
      $region80: #{_lambda_.8} parent=71 // pred_fallthru
        _
      %p1909 = scmp.lt.s32.totalorder %s28, 1
      %s1910 = scalar_select %p1909, %s28, 1
      %s1911 = smul.addr %s1910, 3
      %s1912 = smul.addr %s1911, 8
      %s1913 = scalar_lea.vmem %s13, %s1912
      // Predicated region
      $region81: #{_lambda_.8} parent=71 // pred_check
        %p1914 = pneg %p392
      $region82: #{_lambda_.8} parent=71 // pred_check_branch
        %1916 = sbr.rel (%p1914) target = $region84
      $region83: #{_lambda_.8} parent=71 // pred_region
        _
      $region84: #{_lambda_.8} parent=71 // pred_fallthru
        _
    $region72: #{_lambda_.8} parent=5 // pred_fallthru
      _
    %p1917 = scmp.le.s32.totalorder 2, %s19
    // Predicated region
    $region85: #{_lambda_.8} parent=5 // pred_check
      %p1918 = pneg %p1917
    $region86: #{_lambda_.8} parent=5 // pred_check_branch
      %1920 = sbr.rel (%p1918) target = $region88
    $region87: #{_lambda_.8} parent=5 // pred_region
      %s1921 = ssub.s32 %s19, 2
      // Predicated region
      $region89: #{_lambda_.8} parent=87 // pred_check
        %p1922 = pneg %p398
      $region90: #{_lambda_.8} parent=87 // pred_check_branch
        %1924 = sbr.rel (%p1922) target = $region92
      $region91: #{_lambda_.8} parent=87 // pred_region
        %p1925 = scmp.lt.s32.totalorder %s30, 1
        %s1926 = scalar_select %p1925, %s30, 1
        %s1927 = smul.addr %s1926, 3
        %s1928 = smul.addr %s1927, 8
        %s1929 = scalar_lea.vmem %s13, %s1928
      $region92: #{_lambda_.8} parent=87 // pred_fallthru
        _
    $region88: #{_lambda_.8} parent=5 // pred_fallthru
      _
  $region6: #{_lambda_.8} parent=0 // loop_footer
    %s23 = sadd.s32 1, %s19
  $region7: #{_lambda_.8} parent=0 // loop_footer_branch
    %18 = sbr.rel target = $region3
  $region8: #{_lambda_.8} parent=0 // loop_exit
    _

</llo_original>
